<compile_context>
chip_gen: v6e
topology: v6e:2x2x1
jax: 0.10.0
libtpu: 0.0.40
codegen_flags: <defaults>
</compile_context>

<pallas_src>
import jax
import jax.numpy as jnp
from jax.experimental import pallas as pl
from jax.experimental.pallas import tpu as pltpu


_CPARAMS = pltpu.CompilerParams(dimension_semantics=("arbitrary",))


def _full_spec(shape):
    """Whole-array block for a grid=(1,) kernel (no padding/slicing needed)."""
    return pl.BlockSpec(shape, lambda i: (0,) * len(shape))


# ----------------------------- Pallas kernels -------------------------------

def _bn_relu_epilogue(y, gamma, beta, residual=None):
    """Training-mode BatchNorm over axis 0 (+ residual) + ReLU, in VMEM."""
    mean = jnp.mean(y, axis=0, keepdims=True)
    var = jnp.mean((y - mean) ** 2, axis=0, keepdims=True)   # biased variance
    out = (y - mean) * jax.lax.rsqrt(var + 1e-5) * gamma + beta
    if residual is not None:
        out = out + residual
    return jnp.maximum(out, 0.0)


def _conv_bn_relu_kernel(a_ref, w_ref, g_ref, b_ref, o_ref):
    y = jnp.dot(a_ref[...], w_ref[...], preferred_element_type=jnp.float32)
    o_ref[...] = _bn_relu_epilogue(y, g_ref[...], b_ref[...])


def _conv_bn_add_relu_kernel(a_ref, w_ref, g_ref, b_ref, res_ref, o_ref):
    y = jnp.dot(a_ref[...], w_ref[...], preferred_element_type=jnp.float32)
    o_ref[...] = _bn_relu_epilogue(y, g_ref[...], b_ref[...], res_ref[...])


def _conv_bn_proj_add_relu_kernel(a_ref, w_ref, g_ref, b_ref,
                                  xs_ref, w3_ref, b3_ref, o_ref):
    # main path matmul + fused 1x1-projection shortcut matmul (bias kept: it
    # is NOT followed by a BatchNorm, so it affects the output).
    y = jnp.dot(a_ref[...], w_ref[...], preferred_element_type=jnp.float32)
    res = (jnp.dot(xs_ref[...], w3_ref[...], preferred_element_type=jnp.float32)
           + b3_ref[...])
    o_ref[...] = _bn_relu_epilogue(y, g_ref[...], b_ref[...], res)


def _max9_kernel(x_ref, o_ref):
    o_ref[...] = jnp.max(x_ref[...], axis=0)


def _avgpool_fc_kernel(x_ref, w_ref, b_ref, o_ref):
    pooled = jnp.mean(x_ref[...], axis=1)                     # [N, C]
    o_ref[...] = (jnp.dot(pooled, w_ref[...],
                          preferred_element_type=jnp.float32) + b_ref[...])


# ------------------------------ glue (JAX) ----------------------------------

def im2col(x, kh, kw, stride, padding, dilation=1):
    """NHWC -> ([N*OH*OW, kh*kw*C], N, OH, OW); window index major, C minor."""
    N, H, W, C = x.shape
    xp = jnp.pad(x, ((0, 0), (padding, padding), (padding, padding), (0, 0)))
    Hp, Wp = H + 2 * padding, W + 2 * padding
    eff_kh = dilation * (kh - 1) + 1
    eff_kw = dilation * (kw - 1) + 1
    OH = (Hp - eff_kh) // stride + 1
    OW = (Wp - eff_kw) // stride + 1
    cols = []
    for i in range(kh):
        for j in range(kw):
            di, dj = i * dilation, j * dilation
            cols.append(xp[:, di:di + stride * OH:stride,
                           dj:dj + stride * OW:stride, :])
    patches = jnp.stack(cols, axis=3)                 # [N, OH, OW, kh*kw, C]
    return patches.reshape(N * OH * OW, kh * kw * C), N, OH, OW


def _wmat(w):
    """PyTorch [Cout, Cin, KH, KW] -> [KH*KW*Cin, Cout] matching im2col order."""
    Cout, Cin, KH, KW = w.shape
    return jnp.transpose(w, (2, 3, 1, 0)).reshape(KH * KW * Cin, Cout)


def conv_bn_relu(x, w, gamma, beta, *, stride=1, padding=1, dilation=1):
    """relu(batchnorm_train(conv2d(x, w))).  Conv bias is cancelled by BN."""
    Cout = w.shape[0]
    a, N, OH, OW = im2col(x, w.shape[2], w.shape[3], stride, padding, dilation)
    M, K = a.shape
    out = pl.pallas_call(
        _conv_bn_relu_kernel,
        out_shape=jax.ShapeDtypeStruct((M, Cout), jnp.float32),
        grid=(1,),
        in_specs=[_full_spec((M, K)), _full_spec((K, Cout)),
                  _full_spec((1, Cout)), _full_spec((1, Cout))],
        out_specs=_full_spec((M, Cout)),
        compiler_params=_CPARAMS,
    )(a, _wmat(w), gamma.reshape(1, Cout), beta.reshape(1, Cout))
    return out.reshape(N, OH, OW, Cout)


def conv_bn_add_relu(x, w, gamma, beta, residual, *, padding=1):
    """relu(batchnorm_train(conv2d(x, w)) + residual)  (identity shortcut)."""
    Cout = w.shape[0]
    a, N, OH, OW = im2col(x, w.shape[2], w.shape[3], 1, padding)
    M, K = a.shape
    res2 = residual.reshape(M, Cout)
    out = pl.pallas_call(
        _conv_bn_add_relu_kernel,
        out_shape=jax.ShapeDtypeStruct((M, Cout), jnp.float32),
        grid=(1,),
        in_specs=[_full_spec((M, K)), _full_spec((K, Cout)),
                  _full_spec((1, Cout)), _full_spec((1, Cout)),
                  _full_spec((M, Cout))],
        out_specs=_full_spec((M, Cout)),
        compiler_params=_CPARAMS,
    )(a, _wmat(w), gamma.reshape(1, Cout), beta.reshape(1, Cout), res2)
    return out.reshape(N, OH, OW, Cout)


def conv_bn_proj_add_relu(x, w, gamma, beta, shortcut_in, w3, b3,
                          *, padding=1, proj_stride=2):
    """relu(batchnorm_train(conv2d(x, w)) + conv1x1_s{proj_stride}(shortcut))."""
    Cout = w.shape[0]
    a, N, OH, OW = im2col(x, w.shape[2], w.shape[3], 1, padding)
    M, K = a.shape
    xs = shortcut_in[:, ::proj_stride, ::proj_stride, :]      # 1x1 conv taps
    Cin3 = xs.shape[-1]
    xs2 = xs.reshape(M, Cin3)
    out = pl.pallas_call(
        _conv_bn_proj_add_relu_kernel,
        out_shape=jax.ShapeDtypeStruct((M, Cout), jnp.float32),
        grid=(1,),
        in_specs=[_full_spec((M, K)), _full_spec((K, Cout)),
                  _full_spec((1, Cout)), _full_spec((1, Cout)),
                  _full_spec((M, Cin3)), _full_spec((Cin3, Cout)),
                  _full_spec((1, Cout))],
        out_specs=_full_spec((M, Cout)),
        compiler_params=_CPARAMS,
    )(a, _wmat(w), gamma.reshape(1, Cout), beta.reshape(1, Cout),
      xs2, _wmat(w3), b3.reshape(1, Cout))
    return out.reshape(N, OH, OW, Cout)


def maxpool3x3_s2_p1(x):
    N, H, W, C = x.shape
    xp = jnp.pad(x, ((0, 0), (1, 1), (1, 1), (0, 0)),
                 constant_values=-jnp.inf)
    OH = (H + 2 - 3) // 2 + 1
    OW = (W + 2 - 3) // 2 + 1
    wins = [xp[:, i:i + 2 * OH:2, j:j + 2 * OW:2, :]
            for i in range(3) for j in range(3)]
    stacked = jnp.stack(wins, axis=0).reshape(9, N * OH * OW, C)
    out = pl.pallas_call(
        _max9_kernel,
        out_shape=jax.ShapeDtypeStruct((N * OH * OW, C), jnp.float32),
        grid=(1,),
        in_specs=[_full_spec((9, N * OH * OW, C))],
        out_specs=_full_spec((N * OH * OW, C)),
        compiler_params=_CPARAMS,
    )(stacked)
    return out.reshape(N, OH, OW, C)


def avgpool_fc(x, fc_w, fc_b):
    """AdaptiveAvgPool2d((1,1)) + Flatten + Linear, fused into one kernel."""
    N, H, W, C = x.shape
    x3 = x.reshape(N, H * W, C)
    nc = fc_w.shape[0]                                  # fc_w: [classes, C]
    return pl.pallas_call(
        _avgpool_fc_kernel,
        out_shape=jax.ShapeDtypeStruct((N, nc), jnp.float32),
        grid=(1,),
        in_specs=[_full_spec((N, H * W, C)), _full_spec((C, nc)),
                  _full_spec((1, nc))],
        out_specs=_full_spec((N, nc)),
        compiler_params=_CPARAMS,
    )(x3, fc_w.T, fc_b.reshape(1, nc))


def residual_block(x, p, *, use_1x1=False, stride=1):
    y = conv_bn_relu(x, p["w1"], p["g1"], p["be1"], stride=stride, padding=1)
    if use_1x1:
        return conv_bn_proj_add_relu(y, p["w2"], p["g2"], p["be2"],
                                     shortcut_in=x, w3=p["w3"], b3=p["b3"],
                                     proj_stride=stride)
    return conv_bn_add_relu(y, p["w2"], p["g2"], p["be2"], residual=x)


# ------------------------------ parameters ----------------------------------

def init_params(key):
    keys = iter(jax.random.split(key, 32))

    def conv_w(cout, cin, k):
        fan_in = cin * k * k
        return (jax.random.normal(next(keys), (cout, cin, k, k), jnp.float32)
                / jnp.sqrt(jnp.float32(fan_in)))

    def conv_b(cout):
        return jax.random.normal(next(keys), (cout,), jnp.float32) * 0.01

    def residual(cin, cout, use_1x1):
        p = {
            # conv1/conv2 biases exist in nn.Conv2d but are exactly cancelled
            # by the following BatchNorm's mean subtraction -> never used.
            "w1": conv_w(cout, cin, 3), "b1_unused": conv_b(cout),
            "w2": conv_w(cout, cout, 3), "b2_unused": conv_b(cout),
            "g1": jnp.ones((cout,), jnp.float32),
            "be1": jnp.zeros((cout,), jnp.float32),
            "g2": jnp.ones((cout,), jnp.float32),
            "be2": jnp.zeros((cout,), jnp.float32),
        }
        if use_1x1:
            p["w3"] = conv_w(cout, cin, 1)
            p["b3"] = conv_b(cout)
        return p

    return {
        "b1_w": conv_w(32, 1, 3), "b1_b_unused": conv_b(32),   # bias BN-cancelled
        "b1_g": jnp.ones((32,), jnp.float32),
        "b1_beta": jnp.zeros((32,), jnp.float32),
        "b2_0": residual(32, 32, False),
        "b2_1": residual(32, 32, False),
        "b3_0": residual(32, 64, True),
        "b3_1": residual(64, 64, False),
        "fc_w": (jax.random.normal(next(keys), (10, 64), jnp.float32)
                 / jnp.sqrt(jnp.float32(64))),
        "fc_b": jnp.zeros((10,), jnp.float32),
    }


# ------------------------------- forward ------------------------------------

@jax.jit
def my_resnet_forward(x_nchw, params):
    x = jnp.transpose(x_nchw, (0, 2, 3, 1)).astype(jnp.float32)  # NCHW -> NHWC
    # b1: Conv2d(1, 32, k=3, s=2, p=3, dilation=2) + BN + ReLU  (one kernel)
    x = conv_bn_relu(x, params["b1_w"], params["b1_g"], params["b1_beta"],
                     stride=2, padding=3, dilation=2)
    x = maxpool3x3_s2_p1(x)                              # MaxPool2d(3, 2, 1)
    # b2: two Residual(32, 32)
    x = residual_block(x, params["b2_0"])
    x = residual_block(x, params["b2_1"])
    # b3: Residual(32, 64, use_1x1conv=True, strides=2), then Residual(64, 64)
    x = residual_block(x, params["b3_0"], use_1x1=True, stride=2)
    x = residual_block(x, params["b3_1"])
    # AdaptiveAvgPool2d((1,1)) + Flatten + Linear(64, 10)  (one kernel)
    return avgpool_fc(x, params["fc_w"], params["fc_b"])


if __name__ == "__main__":
    key = jax.random.PRNGKey(0)
    pkey, xkey = jax.random.split(key)
    params = init_params(pkey)
    x = jax.random.normal(xkey, (2, 1, 28, 28), jnp.float32)  # MNIST-like NCHW
    out = my_resnet_forward(x, params)
    out = jax.block_until_ready(out)
    assert out.shape == (2, 10) and out.dtype == jnp.float32
    print("KERNEL_OK")
</pallas_src>

<mosaic_0001>
module attributes {stable_mosaic.version = 11 : i64} {
  func.func @_conv_bn_relu_kernel(%arg0: i32, %arg1: memref<450x9xf32, #tpu.memory_space<vmem>>, %arg2: memref<9x32xf32, #tpu.memory_space<vmem>>, %arg3: memref<1x32xf32, #tpu.memory_space<vmem>>, %arg4: memref<1x32xf32, #tpu.memory_space<vmem>>, %arg5: memref<450x32xf32, #tpu.memory_space<vmem>>) attributes {dimension_semantics = [#tpu.dimension_semantics<arbitrary>], iteration_bounds = array<i64: 1>, scalar_prefetch = 0 : i64, scratch_operands = 0 : i64, tpu.core_type = #tpu.core_type<tc>, window_params = [{pipeline_mode = #tpu.pipeline_mode<synchronous>, transform_indices = @transform_0, window_bounds = array<i64: 450, 9>}, {pipeline_mode = #tpu.pipeline_mode<synchronous>, transform_indices = @transform_1, window_bounds = array<i64: 9, 32>}, {pipeline_mode = #tpu.pipeline_mode<synchronous>, transform_indices = @transform_2, window_bounds = array<i64: 1, 32>}, {pipeline_mode = #tpu.pipeline_mode<synchronous>, transform_indices = @transform_3, window_bounds = array<i64: 1, 32>}, {pipeline_mode = #tpu.pipeline_mode<synchronous>, transform_indices = @transform_4, window_bounds = array<i64: 450, 32>}]} {
    %c0 = arith.constant 0 : index
    %c0_0 = arith.constant 0 : index
    %0 = vector.load %arg1[%c0, %c0_0] : memref<450x9xf32, #tpu.memory_space<vmem>>, vector<450x9xf32>
    %c0_1 = arith.constant 0 : index
    %c0_2 = arith.constant 0 : index
    %1 = vector.load %arg2[%c0_1, %c0_2] : memref<9x32xf32, #tpu.memory_space<vmem>>, vector<9x32xf32>
    %cst = arith.constant dense<0.000000e+00> : vector<450x32xf32>
    %2 = tpu.matmul %0, %1, %cst {dimension_numbers = #tpu.dot_dimension_numbers<[1], [0], [0], [1], [0, 0, 1, 1], [], []>} : vector<450x9xf32>, vector<9x32xf32>, vector<450x32xf32> -> vector<450x32xf32>
    %c0_3 = arith.constant 0 : index
    %c0_4 = arith.constant 0 : index
    %3 = vector.load %arg3[%c0_3, %c0_4] : memref<1x32xf32, #tpu.memory_space<vmem>>, vector<1x32xf32>
    %c0_5 = arith.constant 0 : index
    %c0_6 = arith.constant 0 : index
    %4 = vector.load %arg4[%c0_5, %c0_6] : memref<1x32xf32, #tpu.memory_space<vmem>>, vector<1x32xf32>
    %cst_7 = arith.constant dense<0.000000e+00> : vector<32xf32>
    %5 = vector.multi_reduction <add>, %2, %cst_7 [0] : vector<450x32xf32> to vector<32xf32>
    %6 = vector.shape_cast %5 : vector<32xf32> to vector<1x32xf32>
    %cst_8 = arith.constant 4.500000e+02 : f32
    %7 = vector.broadcast %cst_8 : f32 to vector<1x32xf32>
    %8 = arith.divf %6, %7 : vector<1x32xf32>
    %9 = vector.broadcast %8 : vector<1x32xf32> to vector<450x32xf32>
    %10 = arith.subf %2, %9 : vector<450x32xf32>
    %11 = arith.mulf %10, %10 : vector<450x32xf32>
    %cst_9 = arith.constant dense<0.000000e+00> : vector<32xf32>
    %12 = vector.multi_reduction <add>, %11, %cst_9 [0] : vector<450x32xf32> to vector<32xf32>
    %13 = vector.shape_cast %12 : vector<32xf32> to vector<1x32xf32>
    %cst_10 = arith.constant 4.500000e+02 : f32
    %14 = vector.broadcast %cst_10 : f32 to vector<1x32xf32>
    %15 = arith.divf %13, %14 : vector<1x32xf32>
    %16 = vector.broadcast %8 : vector<1x32xf32> to vector<450x32xf32>
    %17 = arith.subf %2, %16 : vector<450x32xf32>
    %cst_11 = arith.constant 9.99999974E-6 : f32
    %18 = vector.broadcast %cst_11 : f32 to vector<1x32xf32>
    %19 = arith.addf %15, %18 : vector<1x32xf32>
    %20 = math.rsqrt %19 : vector<1x32xf32>
    %21 = vector.broadcast %20 : vector<1x32xf32> to vector<450x32xf32>
    %22 = arith.mulf %17, %21 : vector<450x32xf32>
    %23 = vector.broadcast %3 : vector<1x32xf32> to vector<450x32xf32>
    %24 = arith.mulf %22, %23 : vector<450x32xf32>
    %25 = vector.broadcast %4 : vector<1x32xf32> to vector<450x32xf32>
    %26 = arith.addf %24, %25 : vector<450x32xf32>
    %cst_12 = arith.constant 0.000000e+00 : f32
    %27 = vector.broadcast %cst_12 : f32 to vector<450x32xf32>
    %28 = arith.maximumf %26, %27 : vector<450x32xf32>
    %c0_13 = arith.constant 0 : index
    %c0_14 = arith.constant 0 : index
    %29 = vector.load %arg5[%c0_13, %c0_14] : memref<450x32xf32, #tpu.memory_space<vmem>>, vector<450x32xf32>
    tpu.vector_store %arg5[%c0_13, %c0_14], %28 {strides = array<i32>} : memref<450x32xf32, #tpu.memory_space<vmem>>, vector<450x32xf32>,
    return
  }
  func.func @transform_0(%arg0: i32) -> (i32, i32) {
    %c0_i32 = arith.constant 0 : i32
    %c0_i32_0 = arith.constant 0 : i32
    %c0_i32_1 = arith.constant 0 : i32
    return %c0_i32, %c0_i32_0 : i32, i32
  }
  func.func @transform_1(%arg0: i32) -> (i32, i32) {
    %c0_i32 = arith.constant 0 : i32
    %c0_i32_0 = arith.constant 0 : i32
    %c0_i32_1 = arith.constant 0 : i32
    return %c0_i32, %c0_i32_0 : i32, i32
  }
  func.func @transform_2(%arg0: i32) -> (i32, i32) {
    %c0_i32 = arith.constant 0 : i32
    %c0_i32_0 = arith.constant 0 : i32
    %c0_i32_1 = arith.constant 0 : i32
    return %c0_i32, %c0_i32_0 : i32, i32
  }
  func.func @transform_3(%arg0: i32) -> (i32, i32) {
    %c0_i32 = arith.constant 0 : i32
    %c0_i32_0 = arith.constant 0 : i32
    %c0_i32_1 = arith.constant 0 : i32
    return %c0_i32, %c0_i32_0 : i32, i32
  }
  func.func @transform_4(%arg0: i32) -> (i32, i32) {
    %c0_i32 = arith.constant 0 : i32
    %c0_i32_0 = arith.constant 0 : i32
    %c0_i32_1 = arith.constant 0 : i32
    return %c0_i32, %c0_i32_0 : i32, i32
  }
}

module attributes {stable_mosaic.version = 11 : i64} {
  func.func @_max9_kernel(%arg0: i32, %arg1: memref<9x128x32xf32, #tpu.memory_space<vmem>>, %arg2: memref<128x32xf32, #tpu.memory_space<vmem>>) attributes {dimension_semantics = [#tpu.dimension_semantics<arbitrary>], iteration_bounds = array<i64: 1>, scalar_prefetch = 0 : i64, scratch_operands = 0 : i64, tpu.core_type = #tpu.core_type<tc>, window_params = [{pipeline_mode = #tpu.pipeline_mode<synchronous>, transform_indices = @transform_0, window_bounds = array<i64: 9, 128, 32>}, {pipeline_mode = #tpu.pipeline_mode<synchronous>, transform_indices = @transform_1, window_bounds = array<i64: 128, 32>}]} {
    %c0 = arith.constant 0 : index
    %c0_0 = arith.constant 0 : index
    %c0_1 = arith.constant 0 : index
    %0 = vector.load %arg1[%c0, %c0_0, %c0_1] : memref<9x128x32xf32, #tpu.memory_space<vmem>>, vector<9x128x32xf32>
    %cst = arith.constant dense<0xFF800000> : vector<128x32xf32>
    %1 = vector.multi_reduction <maximumf>, %0, %cst [0] : vector<9x128x32xf32> to vector<128x32xf32>
    %c0_2 = arith.constant 0 : index
    %c0_3 = arith.constant 0 : index
    %2 = vector.load %arg2[%c0_2, %c0_3] : memref<128x32xf32, #tpu.memory_space<vmem>>, vector<128x32xf32>
    tpu.vector_store %arg2[%c0_2, %c0_3], %1 {strides = array<i32>} : memref<128x32xf32, #tpu.memory_space<vmem>>, vector<128x32xf32>,
    return
  }
  func.func @transform_0(%arg0: i32) -> (i32, i32, i32) {
    %c0_i32 = arith.constant 0 : i32
    %c0_i32_0 = arith.constant 0 : i32
    %c0_i32_1 = arith.constant 0 : i32
    %c0_i32_2 = arith.constant 0 : i32
    return %c0_i32, %c0_i32_0, %c0_i32_1 : i32, i32, i32
  }
  func.func @transform_1(%arg0: i32) -> (i32, i32) {
    %c0_i32 = arith.constant 0 : i32
    %c0_i32_0 = arith.constant 0 : i32
    %c0_i32_1 = arith.constant 0 : i32
    return %c0_i32, %c0_i32_0 : i32, i32
  }
}

module attributes {stable_mosaic.version = 11 : i64} {
  func.func @_conv_bn_relu_kernel(%arg0: i32, %arg1: memref<128x288xf32, #tpu.memory_space<vmem>>, %arg2: memref<288x32xf32, #tpu.memory_space<vmem>>, %arg3: memref<1x32xf32, #tpu.memory_space<vmem>>, %arg4: memref<1x32xf32, #tpu.memory_space<vmem>>, %arg5: memref<128x32xf32, #tpu.memory_space<vmem>>) attributes {dimension_semantics = [#tpu.dimension_semantics<arbitrary>], iteration_bounds = array<i64: 1>, scalar_prefetch = 0 : i64, scratch_operands = 0 : i64, tpu.core_type = #tpu.core_type<tc>, window_params = [{pipeline_mode = #tpu.pipeline_mode<synchronous>, transform_indices = @transform_0, window_bounds = array<i64: 128, 288>}, {pipeline_mode = #tpu.pipeline_mode<synchronous>, transform_indices = @transform_1, window_bounds = array<i64: 288, 32>}, {pipeline_mode = #tpu.pipeline_mode<synchronous>, transform_indices = @transform_2, window_bounds = array<i64: 1, 32>}, {pipeline_mode = #tpu.pipeline_mode<synchronous>, transform_indices = @transform_3, window_bounds = array<i64: 1, 32>}, {pipeline_mode = #tpu.pipeline_mode<synchronous>, transform_indices = @transform_4, window_bounds = array<i64: 128, 32>}]} {
    %c0 = arith.constant 0 : index
    %c0_0 = arith.constant 0 : index
    %0 = vector.load %arg1[%c0, %c0_0] : memref<128x288xf32, #tpu.memory_space<vmem>>, vector<128x288xf32>
    %c0_1 = arith.constant 0 : index
    %c0_2 = arith.constant 0 : index
    %1 = vector.load %arg2[%c0_1, %c0_2] : memref<288x32xf32, #tpu.memory_space<vmem>>, vector<288x32xf32>
    %cst = arith.constant dense<0.000000e+00> : vector<128x32xf32>
    %2 = tpu.matmul %0, %1, %cst {dimension_numbers = #tpu.dot_dimension_numbers<[1], [0], [0], [1], [0, 0, 1, 1], [], []>} : vector<128x288xf32>, vector<288x32xf32>, vector<128x32xf32> -> vector<128x32xf32>
    %c0_3 = arith.constant 0 : index
    %c0_4 = arith.constant 0 : index
    %3 = vector.load %arg3[%c0_3, %c0_4] : memref<1x32xf32, #tpu.memory_space<vmem>>, vector<1x32xf32>
    %c0_5 = arith.constant 0 : index
    %c0_6 = arith.constant 0 : index
    %4 = vector.load %arg4[%c0_5, %c0_6] : memref<1x32xf32, #tpu.memory_space<vmem>>, vector<1x32xf32>
    %cst_7 = arith.constant dense<0.000000e+00> : vector<32xf32>
    %5 = vector.multi_reduction <add>, %2, %cst_7 [0] : vector<128x32xf32> to vector<32xf32>
    %6 = vector.shape_cast %5 : vector<32xf32> to vector<1x32xf32>
    %cst_8 = arith.constant 1.280000e+02 : f32
    %7 = vector.broadcast %cst_8 : f32 to vector<1x32xf32>
    %8 = arith.divf %6, %7 : vector<1x32xf32>
    %9 = vector.broadcast %8 : vector<1x32xf32> to vector<128x32xf32>
    %10 = arith.subf %2, %9 : vector<128x32xf32>
    %11 = arith.mulf %10, %10 : vector<128x32xf32>
    %cst_9 = arith.constant dense<0.000000e+00> : vector<32xf32>
    %12 = vector.multi_reduction <add>, %11, %cst_9 [0] : vector<128x32xf32> to vector<32xf32>
    %13 = vector.shape_cast %12 : vector<32xf32> to vector<1x32xf32>
    %cst_10 = arith.constant 1.280000e+02 : f32
    %14 = vector.broadcast %cst_10 : f32 to vector<1x32xf32>
    %15 = arith.divf %13, %14 : vector<1x32xf32>
    %16 = vector.broadcast %8 : vector<1x32xf32> to vector<128x32xf32>
    %17 = arith.subf %2, %16 : vector<128x32xf32>
    %cst_11 = arith.constant 9.99999974E-6 : f32
    %18 = vector.broadcast %cst_11 : f32 to vector<1x32xf32>
    %19 = arith.addf %15, %18 : vector<1x32xf32>
    %20 = math.rsqrt %19 : vector<1x32xf32>
    %21 = vector.broadcast %20 : vector<1x32xf32> to vector<128x32xf32>
    %22 = arith.mulf %17, %21 : vector<128x32xf32>
    %23 = vector.broadcast %3 : vector<1x32xf32> to vector<128x32xf32>
    %24 = arith.mulf %22, %23 : vector<128x32xf32>
    %25 = vector.broadcast %4 : vector<1x32xf32> to vector<128x32xf32>
    %26 = arith.addf %24, %25 : vector<128x32xf32>
    %cst_12 = arith.constant 0.000000e+00 : f32
    %27 = vector.broadcast %cst_12 : f32 to vector<128x32xf32>
    %28 = arith.maximumf %26, %27 : vector<128x32xf32>
    %c0_13 = arith.constant 0 : index
    %c0_14 = arith.constant 0 : index
    %29 = vector.load %arg5[%c0_13, %c0_14] : memref<128x32xf32, #tpu.memory_space<vmem>>, vector<128x32xf32>
    tpu.vector_store %arg5[%c0_13, %c0_14], %28 {strides = array<i32>} : memref<128x32xf32, #tpu.memory_space<vmem>>, vector<128x32xf32>,
    return
  }
  func.func @transform_0(%arg0: i32) -> (i32, i32) {
    %c0_i32 = arith.constant 0 : i32
    %c0_i32_0 = arith.constant 0 : i32
    %c0_i32_1 = arith.constant 0 : i32
    return %c0_i32, %c0_i32_0 : i32, i32
  }
  func.func @transform_1(%arg0: i32) -> (i32, i32) {
    %c0_i32 = arith.constant 0 : i32
    %c0_i32_0 = arith.constant 0 : i32
    %c0_i32_1 = arith.constant 0 : i32
    return %c0_i32, %c0_i32_0 : i32, i32
  }
  func.func @transform_2(%arg0: i32) -> (i32, i32) {
    %c0_i32 = arith.constant 0 : i32
    %c0_i32_0 = arith.constant 0 : i32
    %c0_i32_1 = arith.constant 0 : i32
    return %c0_i32, %c0_i32_0 : i32, i32
  }
  func.func @transform_3(%arg0: i32) -> (i32, i32) {
    %c0_i32 = arith.constant 0 : i32
    %c0_i32_0 = arith.constant 0 : i32
    %c0_i32_1 = arith.constant 0 : i32
    return %c0_i32, %c0_i32_0 : i32, i32
  }
  func.func @transform_4(%arg0: i32) -> (i32, i32) {
    %c0_i32 = arith.constant 0 : i32
    %c0_i32_0 = arith.constant 0 : i32
    %c0_i32_1 = arith.constant 0 : i32
    return %c0_i32, %c0_i32_0 : i32, i32
  }
}

module attributes {stable_mosaic.version = 11 : i64} {
  func.func @_conv_bn_add_relu_kernel(%arg0: i32, %arg1: memref<128x288xf32, #tpu.memory_space<vmem>>, %arg2: memref<288x32xf32, #tpu.memory_space<vmem>>, %arg3: memref<1x32xf32, #tpu.memory_space<vmem>>, %arg4: memref<1x32xf32, #tpu.memory_space<vmem>>, %arg5: memref<128x32xf32, #tpu.memory_space<vmem>>, %arg6: memref<128x32xf32, #tpu.memory_space<vmem>>) attributes {dimension_semantics = [#tpu.dimension_semantics<arbitrary>], iteration_bounds = array<i64: 1>, scalar_prefetch = 0 : i64, scratch_operands = 0 : i64, tpu.core_type = #tpu.core_type<tc>, window_params = [{pipeline_mode = #tpu.pipeline_mode<synchronous>, transform_indices = @transform_0, window_bounds = array<i64: 128, 288>}, {pipeline_mode = #tpu.pipeline_mode<synchronous>, transform_indices = @transform_1, window_bounds = array<i64: 288, 32>}, {pipeline_mode = #tpu.pipeline_mode<synchronous>, transform_indices = @transform_2, window_bounds = array<i64: 1, 32>}, {pipeline_mode = #tpu.pipeline_mode<synchronous>, transform_indices = @transform_3, window_bounds = array<i64: 1, 32>}, {pipeline_mode = #tpu.pipeline_mode<synchronous>, transform_indices = @transform_4, window_bounds = array<i64: 128, 32>}, {pipeline_mode = #tpu.pipeline_mode<synchronous>, transform_indices = @transform_5, window_bounds = array<i64: 128, 32>}]} {
    %c0 = arith.constant 0 : index
    %c0_0 = arith.constant 0 : index
    %0 = vector.load %arg1[%c0, %c0_0] : memref<128x288xf32, #tpu.memory_space<vmem>>, vector<128x288xf32>
    %c0_1 = arith.constant 0 : index
    %c0_2 = arith.constant 0 : index
    %1 = vector.load %arg2[%c0_1, %c0_2] : memref<288x32xf32, #tpu.memory_space<vmem>>, vector<288x32xf32>
    %cst = arith.constant dense<0.000000e+00> : vector<128x32xf32>
    %2 = tpu.matmul %0, %1, %cst {dimension_numbers = #tpu.dot_dimension_numbers<[1], [0], [0], [1], [0, 0, 1, 1], [], []>} : vector<128x288xf32>, vector<288x32xf32>, vector<128x32xf32> -> vector<128x32xf32>
    %c0_3 = arith.constant 0 : index
    %c0_4 = arith.constant 0 : index
    %3 = vector.load %arg3[%c0_3, %c0_4] : memref<1x32xf32, #tpu.memory_space<vmem>>, vector<1x32xf32>
    %c0_5 = arith.constant 0 : index
    %c0_6 = arith.constant 0 : index
    %4 = vector.load %arg4[%c0_5, %c0_6] : memref<1x32xf32, #tpu.memory_space<vmem>>, vector<1x32xf32>
    %c0_7 = arith.constant 0 : index
    %c0_8 = arith.constant 0 : index
    %5 = vector.load %arg5[%c0_7, %c0_8] : memref<128x32xf32, #tpu.memory_space<vmem>>, vector<128x32xf32>
    %cst_9 = arith.constant dense<0.000000e+00> : vector<32xf32>
    %6 = vector.multi_reduction <add>, %2, %cst_9 [0] : vector<128x32xf32> to vector<32xf32>
    %7 = vector.shape_cast %6 : vector<32xf32> to vector<1x32xf32>
    %cst_10 = arith.constant 1.280000e+02 : f32
    %8 = vector.broadcast %cst_10 : f32 to vector<1x32xf32>
    %9 = arith.divf %7, %8 : vector<1x32xf32>
    %10 = vector.broadcast %9 : vector<1x32xf32> to vector<128x32xf32>
    %11 = arith.subf %2, %10 : vector<128x32xf32>
    %12 = arith.mulf %11, %11 : vector<128x32xf32>
    %cst_11 = arith.constant dense<0.000000e+00> : vector<32xf32>
    %13 = vector.multi_reduction <add>, %12, %cst_11 [0] : vector<128x32xf32> to vector<32xf32>
    %14 = vector.shape_cast %13 : vector<32xf32> to vector<1x32xf32>
    %cst_12 = arith.constant 1.280000e+02 : f32
    %15 = vector.broadcast %cst_12 : f32 to vector<1x32xf32>
    %16 = arith.divf %14, %15 : vector<1x32xf32>
    %17 = vector.broadcast %9 : vector<1x32xf32> to vector<128x32xf32>
    %18 = arith.subf %2, %17 : vector<128x32xf32>
    %cst_13 = arith.constant 9.99999974E-6 : f32
    %19 = vector.broadcast %cst_13 : f32 to vector<1x32xf32>
    %20 = arith.addf %16, %19 : vector<1x32xf32>
    %21 = math.rsqrt %20 : vector<1x32xf32>
    %22 = vector.broadcast %21 : vector<1x32xf32> to vector<128x32xf32>
    %23 = arith.mulf %18, %22 : vector<128x32xf32>
    %24 = vector.broadcast %3 : vector<1x32xf32> to vector<128x32xf32>
    %25 = arith.mulf %23, %24 : vector<128x32xf32>
    %26 = vector.broadcast %4 : vector<1x32xf32> to vector<128x32xf32>
    %27 = arith.addf %25, %26 : vector<128x32xf32>
    %28 = arith.addf %27, %5 : vector<128x32xf32>
    %cst_14 = arith.constant 0.000000e+00 : f32
    %29 = vector.broadcast %cst_14 : f32 to vector<128x32xf32>
    %30 = arith.maximumf %28, %29 : vector<128x32xf32>
    %c0_15 = arith.constant 0 : index
    %c0_16 = arith.constant 0 : index
    %31 = vector.load %arg6[%c0_15, %c0_16] : memref<128x32xf32, #tpu.memory_space<vmem>>, vector<128x32xf32>
    tpu.vector_store %arg6[%c0_15, %c0_16], %30 {strides = array<i32>} : memref<128x32xf32, #tpu.memory_space<vmem>>, vector<128x32xf32>,
    return
  }
  func.func @transform_0(%arg0: i32) -> (i32, i32) {
    %c0_i32 = arith.constant 0 : i32
    %c0_i32_0 = arith.constant 0 : i32
    %c0_i32_1 = arith.constant 0 : i32
    return %c0_i32, %c0_i32_0 : i32, i32
  }
  func.func @transform_1(%arg0: i32) -> (i32, i32) {
    %c0_i32 = arith.constant 0 : i32
    %c0_i32_0 = arith.constant 0 : i32
    %c0_i32_1 = arith.constant 0 : i32
    return %c0_i32, %c0_i32_0 : i32, i32
  }
  func.func @transform_2(%arg0: i32) -> (i32, i32) {
    %c0_i32 = arith.constant 0 : i32
    %c0_i32_0 = arith.constant 0 : i32
    %c0_i32_1 = arith.constant 0 : i32
    return %c0_i32, %c0_i32_0 : i32, i32
  }
  func.func @transform_3(%arg0: i32) -> (i32, i32) {
    %c0_i32 = arith.constant 0 : i32
    %c0_i32_0 = arith.constant 0 : i32
    %c0_i32_1 = arith.constant 0 : i32
    return %c0_i32, %c0_i32_0 : i32, i32
  }
  func.func @transform_4(%arg0: i32) -> (i32, i32) {
    %c0_i32 = arith.constant 0 : i32
    %c0_i32_0 = arith.constant 0 : i32
    %c0_i32_1 = arith.constant 0 : i32
    return %c0_i32, %c0_i32_0 : i32, i32
  }
  func.func @transform_5(%arg0: i32) -> (i32, i32) {
    %c0_i32 = arith.constant 0 : i32
    %c0_i32_0 = arith.constant 0 : i32
    %c0_i32_1 = arith.constant 0 : i32
    return %c0_i32, %c0_i32_0 : i32, i32
  }
}

module attributes {stable_mosaic.version = 11 : i64} {
  func.func @_conv_bn_relu_kernel(%arg0: i32, %arg1: memref<32x288xf32, #tpu.memory_space<vmem>>, %arg2: memref<288x64xf32, #tpu.memory_space<vmem>>, %arg3: memref<1x64xf32, #tpu.memory_space<vmem>>, %arg4: memref<1x64xf32, #tpu.memory_space<vmem>>, %arg5: memref<32x64xf32, #tpu.memory_space<vmem>>) attributes {dimension_semantics = [#tpu.dimension_semantics<arbitrary>], iteration_bounds = array<i64: 1>, scalar_prefetch = 0 : i64, scratch_operands = 0 : i64, tpu.core_type = #tpu.core_type<tc>, window_params = [{pipeline_mode = #tpu.pipeline_mode<synchronous>, transform_indices = @transform_0, window_bounds = array<i64: 32, 288>}, {pipeline_mode = #tpu.pipeline_mode<synchronous>, transform_indices = @transform_1, window_bounds = array<i64: 288, 64>}, {pipeline_mode = #tpu.pipeline_mode<synchronous>, transform_indices = @transform_2, window_bounds = array<i64: 1, 64>}, {pipeline_mode = #tpu.pipeline_mode<synchronous>, transform_indices = @transform_3, window_bounds = array<i64: 1, 64>}, {pipeline_mode = #tpu.pipeline_mode<synchronous>, transform_indices = @transform_4, window_bounds = array<i64: 32, 64>}]} {
    %c0 = arith.constant 0 : index
    %c0_0 = arith.constant 0 : index
    %0 = vector.load %arg1[%c0, %c0_0] : memref<32x288xf32, #tpu.memory_space<vmem>>, vector<32x288xf32>
    %c0_1 = arith.constant 0 : index
    %c0_2 = arith.constant 0 : index
    %1 = vector.load %arg2[%c0_1, %c0_2] : memref<288x64xf32, #tpu.memory_space<vmem>>, vector<288x64xf32>
    %cst = arith.constant dense<0.000000e+00> : vector<32x64xf32>
    %2 = tpu.matmul %0, %1, %cst {dimension_numbers = #tpu.dot_dimension_numbers<[1], [0], [0], [1], [0, 0, 1, 1], [], []>} : vector<32x288xf32>, vector<288x64xf32>, vector<32x64xf32> -> vector<32x64xf32>
    %c0_3 = arith.constant 0 : index
    %c0_4 = arith.constant 0 : index
    %3 = vector.load %arg3[%c0_3, %c0_4] : memref<1x64xf32, #tpu.memory_space<vmem>>, vector<1x64xf32>
    %c0_5 = arith.constant 0 : index
    %c0_6 = arith.constant 0 : index
    %4 = vector.load %arg4[%c0_5, %c0_6] : memref<1x64xf32, #tpu.memory_space<vmem>>, vector<1x64xf32>
    %cst_7 = arith.constant dense<0.000000e+00> : vector<64xf32>
    %5 = vector.multi_reduction <add>, %2, %cst_7 [0] : vector<32x64xf32> to vector<64xf32>
    %6 = vector.shape_cast %5 : vector<64xf32> to vector<1x64xf32>
    %cst_8 = arith.constant 3.200000e+01 : f32
    %7 = vector.broadcast %cst_8 : f32 to vector<1x64xf32>
    %8 = arith.divf %6, %7 : vector<1x64xf32>
    %9 = vector.broadcast %8 : vector<1x64xf32> to vector<32x64xf32>
    %10 = arith.subf %2, %9 : vector<32x64xf32>
    %11 = arith.mulf %10, %10 : vector<32x64xf32>
    %cst_9 = arith.constant dense<0.000000e+00> : vector<64xf32>
    %12 = vector.multi_reduction <add>, %11, %cst_9 [0] : vector<32x64xf32> to vector<64xf32>
    %13 = vector.shape_cast %12 : vector<64xf32> to vector<1x64xf32>
    %cst_10 = arith.constant 3.200000e+01 : f32
    %14 = vector.broadcast %cst_10 : f32 to vector<1x64xf32>
    %15 = arith.divf %13, %14 : vector<1x64xf32>
    %16 = vector.broadcast %8 : vector<1x64xf32> to vector<32x64xf32>
    %17 = arith.subf %2, %16 : vector<32x64xf32>
    %cst_11 = arith.constant 9.99999974E-6 : f32
    %18 = vector.broadcast %cst_11 : f32 to vector<1x64xf32>
    %19 = arith.addf %15, %18 : vector<1x64xf32>
    %20 = math.rsqrt %19 : vector<1x64xf32>
    %21 = vector.broadcast %20 : vector<1x64xf32> to vector<32x64xf32>
    %22 = arith.mulf %17, %21 : vector<32x64xf32>
    %23 = vector.broadcast %3 : vector<1x64xf32> to vector<32x64xf32>
    %24 = arith.mulf %22, %23 : vector<32x64xf32>
    %25 = vector.broadcast %4 : vector<1x64xf32> to vector<32x64xf32>
    %26 = arith.addf %24, %25 : vector<32x64xf32>
    %cst_12 = arith.constant 0.000000e+00 : f32
    %27 = vector.broadcast %cst_12 : f32 to vector<32x64xf32>
    %28 = arith.maximumf %26, %27 : vector<32x64xf32>
    %c0_13 = arith.constant 0 : index
    %c0_14 = arith.constant 0 : index
    %29 = vector.load %arg5[%c0_13, %c0_14] : memref<32x64xf32, #tpu.memory_space<vmem>>, vector<32x64xf32>
    tpu.vector_store %arg5[%c0_13, %c0_14], %28 {strides = array<i32>} : memref<32x64xf32, #tpu.memory_space<vmem>>, vector<32x64xf32>,
    return
  }
  func.func @transform_0(%arg0: i32) -> (i32, i32) {
    %c0_i32 = arith.constant 0 : i32
    %c0_i32_0 = arith.constant 0 : i32
    %c0_i32_1 = arith.constant 0 : i32
    return %c0_i32, %c0_i32_0 : i32, i32
  }
  func.func @transform_1(%arg0: i32) -> (i32, i32) {
    %c0_i32 = arith.constant 0 : i32
    %c0_i32_0 = arith.constant 0 : i32
    %c0_i32_1 = arith.constant 0 : i32
    return %c0_i32, %c0_i32_0 : i32, i32
  }
  func.func @transform_2(%arg0: i32) -> (i32, i32) {
    %c0_i32 = arith.constant 0 : i32
    %c0_i32_0 = arith.constant 0 : i32
    %c0_i32_1 = arith.constant 0 : i32
    return %c0_i32, %c0_i32_0 : i32, i32
  }
  func.func @transform_3(%arg0: i32) -> (i32, i32) {
    %c0_i32 = arith.constant 0 : i32
    %c0_i32_0 = arith.constant 0 : i32
    %c0_i32_1 = arith.constant 0 : i32
    return %c0_i32, %c0_i32_0 : i32, i32
  }
  func.func @transform_4(%arg0: i32) -> (i32, i32) {
    %c0_i32 = arith.constant 0 : i32
    %c0_i32_0 = arith.constant 0 : i32
    %c0_i32_1 = arith.constant 0 : i32
    return %c0_i32, %c0_i32_0 : i32, i32
  }
}

module attributes {stable_mosaic.version = 11 : i64} {
  func.func @_conv_bn_relu_kernel(%arg0: i32, %arg1: memref<32x576xf32, #tpu.memory_space<vmem>>, %arg2: memref<576x64xf32, #tpu.memory_space<vmem>>, %arg3: memref<1x64xf32, #tpu.memory_space<vmem>>, %arg4: memref<1x64xf32, #tpu.memory_space<vmem>>, %arg5: memref<32x64xf32, #tpu.memory_space<vmem>>) attributes {dimension_semantics = [#tpu.dimension_semantics<arbitrary>], iteration_bounds = array<i64: 1>, scalar_prefetch = 0 : i64, scratch_operands = 0 : i64, tpu.core_type = #tpu.core_type<tc>, window_params = [{pipeline_mode = #tpu.pipeline_mode<synchronous>, transform_indices = @transform_0, window_bounds = array<i64: 32, 576>}, {pipeline_mode = #tpu.pipeline_mode<synchronous>, transform_indices = @transform_1, window_bounds = array<i64: 576, 64>}, {pipeline_mode = #tpu.pipeline_mode<synchronous>, transform_indices = @transform_2, window_bounds = array<i64: 1, 64>}, {pipeline_mode = #tpu.pipeline_mode<synchronous>, transform_indices = @transform_3, window_bounds = array<i64: 1, 64>}, {pipeline_mode = #tpu.pipeline_mode<synchronous>, transform_indices = @transform_4, window_bounds = array<i64: 32, 64>}]} {
    %c0 = arith.constant 0 : index
    %c0_0 = arith.constant 0 : index
    %0 = vector.load %arg1[%c0, %c0_0] : memref<32x576xf32, #tpu.memory_space<vmem>>, vector<32x576xf32>
    %c0_1 = arith.constant 0 : index
    %c0_2 = arith.constant 0 : index
    %1 = vector.load %arg2[%c0_1, %c0_2] : memref<576x64xf32, #tpu.memory_space<vmem>>, vector<576x64xf32>
    %cst = arith.constant dense<0.000000e+00> : vector<32x64xf32>
    %2 = tpu.matmul %0, %1, %cst {dimension_numbers = #tpu.dot_dimension_numbers<[1], [0], [0], [1], [0, 0, 1, 1], [], []>} : vector<32x576xf32>, vector<576x64xf32>, vector<32x64xf32> -> vector<32x64xf32>
    %c0_3 = arith.constant 0 : index
    %c0_4 = arith.constant 0 : index
    %3 = vector.load %arg3[%c0_3, %c0_4] : memref<1x64xf32, #tpu.memory_space<vmem>>, vector<1x64xf32>
    %c0_5 = arith.constant 0 : index
    %c0_6 = arith.constant 0 : index
    %4 = vector.load %arg4[%c0_5, %c0_6] : memref<1x64xf32, #tpu.memory_space<vmem>>, vector<1x64xf32>
    %cst_7 = arith.constant dense<0.000000e+00> : vector<64xf32>
    %5 = vector.multi_reduction <add>, %2, %cst_7 [0] : vector<32x64xf32> to vector<64xf32>
    %6 = vector.shape_cast %5 : vector<64xf32> to vector<1x64xf32>
    %cst_8 = arith.constant 3.200000e+01 : f32
    %7 = vector.broadcast %cst_8 : f32 to vector<1x64xf32>
    %8 = arith.divf %6, %7 : vector<1x64xf32>
    %9 = vector.broadcast %8 : vector<1x64xf32> to vector<32x64xf32>
    %10 = arith.subf %2, %9 : vector<32x64xf32>
    %11 = arith.mulf %10, %10 : vector<32x64xf32>
    %cst_9 = arith.constant dense<0.000000e+00> : vector<64xf32>
    %12 = vector.multi_reduction <add>, %11, %cst_9 [0] : vector<32x64xf32> to vector<64xf32>
    %13 = vector.shape_cast %12 : vector<64xf32> to vector<1x64xf32>
    %cst_10 = arith.constant 3.200000e+01 : f32
    %14 = vector.broadcast %cst_10 : f32 to vector<1x64xf32>
    %15 = arith.divf %13, %14 : vector<1x64xf32>
    %16 = vector.broadcast %8 : vector<1x64xf32> to vector<32x64xf32>
    %17 = arith.subf %2, %16 : vector<32x64xf32>
    %cst_11 = arith.constant 9.99999974E-6 : f32
    %18 = vector.broadcast %cst_11 : f32 to vector<1x64xf32>
    %19 = arith.addf %15, %18 : vector<1x64xf32>
    %20 = math.rsqrt %19 : vector<1x64xf32>
    %21 = vector.broadcast %20 : vector<1x64xf32> to vector<32x64xf32>
    %22 = arith.mulf %17, %21 : vector<32x64xf32>
    %23 = vector.broadcast %3 : vector<1x64xf32> to vector<32x64xf32>
    %24 = arith.mulf %22, %23 : vector<32x64xf32>
    %25 = vector.broadcast %4 : vector<1x64xf32> to vector<32x64xf32>
    %26 = arith.addf %24, %25 : vector<32x64xf32>
    %cst_12 = arith.constant 0.000000e+00 : f32
    %27 = vector.broadcast %cst_12 : f32 to vector<32x64xf32>
    %28 = arith.maximumf %26, %27 : vector<32x64xf32>
    %c0_13 = arith.constant 0 : index
    %c0_14 = arith.constant 0 : index
    %29 = vector.load %arg5[%c0_13, %c0_14] : memref<32x64xf32, #tpu.memory_space<vmem>>, vector<32x64xf32>
    tpu.vector_store %arg5[%c0_13, %c0_14], %28 {strides = array<i32>} : memref<32x64xf32, #tpu.memory_space<vmem>>, vector<32x64xf32>,
    return
  }
  func.func @transform_0(%arg0: i32) -> (i32, i32) {
    %c0_i32 = arith.constant 0 : i32
    %c0_i32_0 = arith.constant 0 : i32
    %c0_i32_1 = arith.constant 0 : i32
    return %c0_i32, %c0_i32_0 : i32, i32
  }
  func.func @transform_1(%arg0: i32) -> (i32, i32) {
    %c0_i32 = arith.constant 0 : i32
    %c0_i32_0 = arith.constant 0 : i32
    %c0_i32_1 = arith.constant 0 : i32
    return %c0_i32, %c0_i32_0 : i32, i32
  }
  func.func @transform_2(%arg0: i32) -> (i32, i32) {
    %c0_i32 = arith.constant 0 : i32
    %c0_i32_0 = arith.constant 0 : i32
    %c0_i32_1 = arith.constant 0 : i32
    return %c0_i32, %c0_i32_0 : i32, i32
  }
  func.func @transform_3(%arg0: i32) -> (i32, i32) {
    %c0_i32 = arith.constant 0 : i32
    %c0_i32_0 = arith.constant 0 : i32
    %c0_i32_1 = arith.constant 0 : i32
    return %c0_i32, %c0_i32_0 : i32, i32
  }
  func.func @transform_4(%arg0: i32) -> (i32, i32) {
    %c0_i32 = arith.constant 0 : i32
    %c0_i32_0 = arith.constant 0 : i32
    %c0_i32_1 = arith.constant 0 : i32
    return %c0_i32, %c0_i32_0 : i32, i32
  }
}

module attributes {stable_mosaic.version = 11 : i64} {
  func.func @_conv_bn_proj_add_relu_kernel(%arg0: i32, %arg1: memref<32x576xf32, #tpu.memory_space<vmem>>, %arg2: memref<576x64xf32, #tpu.memory_space<vmem>>, %arg3: memref<1x64xf32, #tpu.memory_space<vmem>>, %arg4: memref<1x64xf32, #tpu.memory_space<vmem>>, %arg5: memref<32x32xf32, #tpu.memory_space<vmem>>, %arg6: memref<32x64xf32, #tpu.memory_space<vmem>>, %arg7: memref<1x64xf32, #tpu.memory_space<vmem>>, %arg8: memref<32x64xf32, #tpu.memory_space<vmem>>) attributes {dimension_semantics = [#tpu.dimension_semantics<arbitrary>], iteration_bounds = array<i64: 1>, scalar_prefetch = 0 : i64, scratch_operands = 0 : i64, tpu.core_type = #tpu.core_type<tc>, window_params = [{pipeline_mode = #tpu.pipeline_mode<synchronous>, transform_indices = @transform_0, window_bounds = array<i64: 32, 576>}, {pipeline_mode = #tpu.pipeline_mode<synchronous>, transform_indices = @transform_1, window_bounds = array<i64: 576, 64>}, {pipeline_mode = #tpu.pipeline_mode<synchronous>, transform_indices = @transform_2, window_bounds = array<i64: 1, 64>}, {pipeline_mode = #tpu.pipeline_mode<synchronous>, transform_indices = @transform_3, window_bounds = array<i64: 1, 64>}, {pipeline_mode = #tpu.pipeline_mode<synchronous>, transform_indices = @transform_4, window_bounds = array<i64: 32, 32>}, {pipeline_mode = #tpu.pipeline_mode<synchronous>, transform_indices = @transform_5, window_bounds = array<i64: 32, 64>}, {pipeline_mode = #tpu.pipeline_mode<synchronous>, transform_indices = @transform_6, window_bounds = array<i64: 1, 64>}, {pipeline_mode = #tpu.pipeline_mode<synchronous>, transform_indices = @transform_7, window_bounds = array<i64: 32, 64>}]} {
    %c0 = arith.constant 0 : index
    %c0_0 = arith.constant 0 : index
    %0 = vector.load %arg1[%c0, %c0_0] : memref<32x576xf32, #tpu.memory_space<vmem>>, vector<32x576xf32>
    %c0_1 = arith.constant 0 : index
    %c0_2 = arith.constant 0 : index
    %1 = vector.load %arg2[%c0_1, %c0_2] : memref<576x64xf32, #tpu.memory_space<vmem>>, vector<576x64xf32>
    %cst = arith.constant dense<0.000000e+00> : vector<32x64xf32>
    %2 = tpu.matmul %0, %1, %cst {dimension_numbers = #tpu.dot_dimension_numbers<[1], [0], [0], [1], [0, 0, 1, 1], [], []>} : vector<32x576xf32>, vector<576x64xf32>, vector<32x64xf32> -> vector<32x64xf32>
    %c0_3 = arith.constant 0 : index
    %c0_4 = arith.constant 0 : index
    %3 = vector.load %arg5[%c0_3, %c0_4] : memref<32x32xf32, #tpu.memory_space<vmem>>, vector<32x32xf32>
    %c0_5 = arith.constant 0 : index
    %c0_6 = arith.constant 0 : index
    %4 = vector.load %arg6[%c0_5, %c0_6] : memref<32x64xf32, #tpu.memory_space<vmem>>, vector<32x64xf32>
    %cst_7 = arith.constant dense<0.000000e+00> : vector<32x64xf32>
    %5 = tpu.matmul %3, %4, %cst_7 {dimension_numbers = #tpu.dot_dimension_numbers<[1], [0], [0], [1], [0, 0, 1, 1], [], []>} : vector<32x32xf32>, vector<32x64xf32>, vector<32x64xf32> -> vector<32x64xf32>
    %c0_8 = arith.constant 0 : index
    %c0_9 = arith.constant 0 : index
    %6 = vector.load %arg7[%c0_8, %c0_9] : memref<1x64xf32, #tpu.memory_space<vmem>>, vector<1x64xf32>
    %7 = vector.broadcast %6 : vector<1x64xf32> to vector<32x64xf32>
    %8 = arith.addf %5, %7 : vector<32x64xf32>
    %c0_10 = arith.constant 0 : index
    %c0_11 = arith.constant 0 : index
    %9 = vector.load %arg3[%c0_10, %c0_11] : memref<1x64xf32, #tpu.memory_space<vmem>>, vector<1x64xf32>
    %c0_12 = arith.constant 0 : index
    %c0_13 = arith.constant 0 : index
    %10 = vector.load %arg4[%c0_12, %c0_13] : memref<1x64xf32, #tpu.memory_space<vmem>>, vector<1x64xf32>
    %cst_14 = arith.constant dense<0.000000e+00> : vector<64xf32>
    %11 = vector.multi_reduction <add>, %2, %cst_14 [0] : vector<32x64xf32> to vector<64xf32>
    %12 = vector.shape_cast %11 : vector<64xf32> to vector<1x64xf32>
    %cst_15 = arith.constant 3.200000e+01 : f32
    %13 = vector.broadcast %cst_15 : f32 to vector<1x64xf32>
    %14 = arith.divf %12, %13 : vector<1x64xf32>
    %15 = vector.broadcast %14 : vector<1x64xf32> to vector<32x64xf32>
    %16 = arith.subf %2, %15 : vector<32x64xf32>
    %17 = arith.mulf %16, %16 : vector<32x64xf32>
    %cst_16 = arith.constant dense<0.000000e+00> : vector<64xf32>
    %18 = vector.multi_reduction <add>, %17, %cst_16 [0] : vector<32x64xf32> to vector<64xf32>
    %19 = vector.shape_cast %18 : vector<64xf32> to vector<1x64xf32>
    %cst_17 = arith.constant 3.200000e+01 : f32
    %20 = vector.broadcast %cst_17 : f32 to vector<1x64xf32>
    %21 = arith.divf %19, %20 : vector<1x64xf32>
    %22 = vector.broadcast %14 : vector<1x64xf32> to vector<32x64xf32>
    %23 = arith.subf %2, %22 : vector<32x64xf32>
    %cst_18 = arith.constant 9.99999974E-6 : f32
    %24 = vector.broadcast %cst_18 : f32 to vector<1x64xf32>
    %25 = arith.addf %21, %24 : vector<1x64xf32>
    %26 = math.rsqrt %25 : vector<1x64xf32>
    %27 = vector.broadcast %26 : vector<1x64xf32> to vector<32x64xf32>
    %28 = arith.mulf %23, %27 : vector<32x64xf32>
    %29 = vector.broadcast %9 : vector<1x64xf32> to vector<32x64xf32>
    %30 = arith.mulf %28, %29 : vector<32x64xf32>
    %31 = vector.broadcast %10 : vector<1x64xf32> to vector<32x64xf32>
    %32 = arith.addf %30, %31 : vector<32x64xf32>
    %33 = arith.addf %32, %8 : vector<32x64xf32>
    %cst_19 = arith.constant 0.000000e+00 : f32
    %34 = vector.broadcast %cst_19 : f32 to vector<32x64xf32>
    %35 = arith.maximumf %33, %34 : vector<32x64xf32>
    %c0_20 = arith.constant 0 : index
    %c0_21 = arith.constant 0 : index
    %36 = vector.load %arg8[%c0_20, %c0_21] : memref<32x64xf32, #tpu.memory_space<vmem>>, vector<32x64xf32>
    tpu.vector_store %arg8[%c0_20, %c0_21], %35 {strides = array<i32>} : memref<32x64xf32, #tpu.memory_space<vmem>>, vector<32x64xf32>,
    return
  }
  func.func @transform_0(%arg0: i32) -> (i32, i32) {
    %c0_i32 = arith.constant 0 : i32
    %c0_i32_0 = arith.constant 0 : i32
    %c0_i32_1 = arith.constant 0 : i32
    return %c0_i32, %c0_i32_0 : i32, i32
  }
  func.func @transform_1(%arg0: i32) -> (i32, i32) {
    %c0_i32 = arith.constant 0 : i32
    %c0_i32_0 = arith.constant 0 : i32
    %c0_i32_1 = arith.constant 0 : i32
    return %c0_i32, %c0_i32_0 : i32, i32
  }
  func.func @transform_2(%arg0: i32) -> (i32, i32) {
    %c0_i32 = arith.constant 0 : i32
    %c0_i32_0 = arith.constant 0 : i32
    %c0_i32_1 = arith.constant 0 : i32
    return %c0_i32, %c0_i32_0 : i32, i32
  }
  func.func @transform_3(%arg0: i32) -> (i32, i32) {
    %c0_i32 = arith.constant 0 : i32
    %c0_i32_0 = arith.constant 0 : i32
    %c0_i32_1 = arith.constant 0 : i32
    return %c0_i32, %c0_i32_0 : i32, i32
  }
  func.func @transform_4(%arg0: i32) -> (i32, i32) {
    %c0_i32 = arith.constant 0 : i32
    %c0_i32_0 = arith.constant 0 : i32
    %c0_i32_1 = arith.constant 0 : i32
    return %c0_i32, %c0_i32_0 : i32, i32
  }
  func.func @transform_5(%arg0: i32) -> (i32, i32) {
    %c0_i32 = arith.constant 0 : i32
    %c0_i32_0 = arith.constant 0 : i32
    %c0_i32_1 = arith.constant 0 : i32
    return %c0_i32, %c0_i32_0 : i32, i32
  }
  func.func @transform_6(%arg0: i32) -> (i32, i32) {
    %c0_i32 = arith.constant 0 : i32
    %c0_i32_0 = arith.constant 0 : i32
    %c0_i32_1 = arith.constant 0 : i32
    return %c0_i32, %c0_i32_0 : i32, i32
  }
  func.func @transform_7(%arg0: i32) -> (i32, i32) {
    %c0_i32 = arith.constant 0 : i32
    %c0_i32_0 = arith.constant 0 : i32
    %c0_i32_1 = arith.constant 0 : i32
    return %c0_i32, %c0_i32_0 : i32, i32
  }
}

module attributes {stable_mosaic.version = 11 : i64} {
  func.func @_conv_bn_add_relu_kernel(%arg0: i32, %arg1: memref<32x576xf32, #tpu.memory_space<vmem>>, %arg2: memref<576x64xf32, #tpu.memory_space<vmem>>, %arg3: memref<1x64xf32, #tpu.memory_space<vmem>>, %arg4: memref<1x64xf32, #tpu.memory_space<vmem>>, %arg5: memref<32x64xf32, #tpu.memory_space<vmem>>, %arg6: memref<32x64xf32, #tpu.memory_space<vmem>>) attributes {dimension_semantics = [#tpu.dimension_semantics<arbitrary>], iteration_bounds = array<i64: 1>, scalar_prefetch = 0 : i64, scratch_operands = 0 : i64, tpu.core_type = #tpu.core_type<tc>, window_params = [{pipeline_mode = #tpu.pipeline_mode<synchronous>, transform_indices = @transform_0, window_bounds = array<i64: 32, 576>}, {pipeline_mode = #tpu.pipeline_mode<synchronous>, transform_indices = @transform_1, window_bounds = array<i64: 576, 64>}, {pipeline_mode = #tpu.pipeline_mode<synchronous>, transform_indices = @transform_2, window_bounds = array<i64: 1, 64>}, {pipeline_mode = #tpu.pipeline_mode<synchronous>, transform_indices = @transform_3, window_bounds = array<i64: 1, 64>}, {pipeline_mode = #tpu.pipeline_mode<synchronous>, transform_indices = @transform_4, window_bounds = array<i64: 32, 64>}, {pipeline_mode = #tpu.pipeline_mode<synchronous>, transform_indices = @transform_5, window_bounds = array<i64: 32, 64>}]} {
    %c0 = arith.constant 0 : index
    %c0_0 = arith.constant 0 : index
    %0 = vector.load %arg1[%c0, %c0_0] : memref<32x576xf32, #tpu.memory_space<vmem>>, vector<32x576xf32>
    %c0_1 = arith.constant 0 : index
    %c0_2 = arith.constant 0 : index
    %1 = vector.load %arg2[%c0_1, %c0_2] : memref<576x64xf32, #tpu.memory_space<vmem>>, vector<576x64xf32>
    %cst = arith.constant dense<0.000000e+00> : vector<32x64xf32>
    %2 = tpu.matmul %0, %1, %cst {dimension_numbers = #tpu.dot_dimension_numbers<[1], [0], [0], [1], [0, 0, 1, 1], [], []>} : vector<32x576xf32>, vector<576x64xf32>, vector<32x64xf32> -> vector<32x64xf32>
    %c0_3 = arith.constant 0 : index
    %c0_4 = arith.constant 0 : index
    %3 = vector.load %arg3[%c0_3, %c0_4] : memref<1x64xf32, #tpu.memory_space<vmem>>, vector<1x64xf32>
    %c0_5 = arith.constant 0 : index
    %c0_6 = arith.constant 0 : index
    %4 = vector.load %arg4[%c0_5, %c0_6] : memref<1x64xf32, #tpu.memory_space<vmem>>, vector<1x64xf32>
    %c0_7 = arith.constant 0 : index
    %c0_8 = arith.constant 0 : index
    %5 = vector.load %arg5[%c0_7, %c0_8] : memref<32x64xf32, #tpu.memory_space<vmem>>, vector<32x64xf32>
    %cst_9 = arith.constant dense<0.000000e+00> : vector<64xf32>
    %6 = vector.multi_reduction <add>, %2, %cst_9 [0] : vector<32x64xf32> to vector<64xf32>
    %7 = vector.shape_cast %6 : vector<64xf32> to vector<1x64xf32>
    %cst_10 = arith.constant 3.200000e+01 : f32
    %8 = vector.broadcast %cst_10 : f32 to vector<1x64xf32>
    %9 = arith.divf %7, %8 : vector<1x64xf32>
    %10 = vector.broadcast %9 : vector<1x64xf32> to vector<32x64xf32>
    %11 = arith.subf %2, %10 : vector<32x64xf32>
    %12 = arith.mulf %11, %11 : vector<32x64xf32>
    %cst_11 = arith.constant dense<0.000000e+00> : vector<64xf32>
    %13 = vector.multi_reduction <add>, %12, %cst_11 [0] : vector<32x64xf32> to vector<64xf32>
    %14 = vector.shape_cast %13 : vector<64xf32> to vector<1x64xf32>
    %cst_12 = arith.constant 3.200000e+01 : f32
    %15 = vector.broadcast %cst_12 : f32 to vector<1x64xf32>
    %16 = arith.divf %14, %15 : vector<1x64xf32>
    %17 = vector.broadcast %9 : vector<1x64xf32> to vector<32x64xf32>
    %18 = arith.subf %2, %17 : vector<32x64xf32>
    %cst_13 = arith.constant 9.99999974E-6 : f32
    %19 = vector.broadcast %cst_13 : f32 to vector<1x64xf32>
    %20 = arith.addf %16, %19 : vector<1x64xf32>
    %21 = math.rsqrt %20 : vector<1x64xf32>
    %22 = vector.broadcast %21 : vector<1x64xf32> to vector<32x64xf32>
    %23 = arith.mulf %18, %22 : vector<32x64xf32>
    %24 = vector.broadcast %3 : vector<1x64xf32> to vector<32x64xf32>
    %25 = arith.mulf %23, %24 : vector<32x64xf32>
    %26 = vector.broadcast %4 : vector<1x64xf32> to vector<32x64xf32>
    %27 = arith.addf %25, %26 : vector<32x64xf32>
    %28 = arith.addf %27, %5 : vector<32x64xf32>
    %cst_14 = arith.constant 0.000000e+00 : f32
    %29 = vector.broadcast %cst_14 : f32 to vector<32x64xf32>
    %30 = arith.maximumf %28, %29 : vector<32x64xf32>
    %c0_15 = arith.constant 0 : index
    %c0_16 = arith.constant 0 : index
    %31 = vector.load %arg6[%c0_15, %c0_16] : memref<32x64xf32, #tpu.memory_space<vmem>>, vector<32x64xf32>
    tpu.vector_store %arg6[%c0_15, %c0_16], %30 {strides = array<i32>} : memref<32x64xf32, #tpu.memory_space<vmem>>, vector<32x64xf32>,
    return
  }
  func.func @transform_0(%arg0: i32) -> (i32, i32) {
    %c0_i32 = arith.constant 0 : i32
    %c0_i32_0 = arith.constant 0 : i32
    %c0_i32_1 = arith.constant 0 : i32
    return %c0_i32, %c0_i32_0 : i32, i32
  }
  func.func @transform_1(%arg0: i32) -> (i32, i32) {
    %c0_i32 = arith.constant 0 : i32
    %c0_i32_0 = arith.constant 0 : i32
    %c0_i32_1 = arith.constant 0 : i32
    return %c0_i32, %c0_i32_0 : i32, i32
  }
  func.func @transform_2(%arg0: i32) -> (i32, i32) {
    %c0_i32 = arith.constant 0 : i32
    %c0_i32_0 = arith.constant 0 : i32
    %c0_i32_1 = arith.constant 0 : i32
    return %c0_i32, %c0_i32_0 : i32, i32
  }
  func.func @transform_3(%arg0: i32) -> (i32, i32) {
    %c0_i32 = arith.constant 0 : i32
    %c0_i32_0 = arith.constant 0 : i32
    %c0_i32_1 = arith.constant 0 : i32
    return %c0_i32, %c0_i32_0 : i32, i32
  }
  func.func @transform_4(%arg0: i32) -> (i32, i32) {
    %c0_i32 = arith.constant 0 : i32
    %c0_i32_0 = arith.constant 0 : i32
    %c0_i32_1 = arith.constant 0 : i32
    return %c0_i32, %c0_i32_0 : i32, i32
  }
  func.func @transform_5(%arg0: i32) -> (i32, i32) {
    %c0_i32 = arith.constant 0 : i32
    %c0_i32_0 = arith.constant 0 : i32
    %c0_i32_1 = arith.constant 0 : i32
    return %c0_i32, %c0_i32_0 : i32, i32
  }
}

module attributes {stable_mosaic.version = 11 : i64} {
  func.func @_avgpool_fc_kernel(%arg0: i32, %arg1: memref<2x16x64xf32, #tpu.memory_space<vmem>>, %arg2: memref<64x10xf32, #tpu.memory_space<vmem>>, %arg3: memref<1x10xf32, #tpu.memory_space<vmem>>, %arg4: memref<2x10xf32, #tpu.memory_space<vmem>>) attributes {dimension_semantics = [#tpu.dimension_semantics<arbitrary>], iteration_bounds = array<i64: 1>, scalar_prefetch = 0 : i64, scratch_operands = 0 : i64, tpu.core_type = #tpu.core_type<tc>, window_params = [{pipeline_mode = #tpu.pipeline_mode<synchronous>, transform_indices = @transform_0, window_bounds = array<i64: 2, 16, 64>}, {pipeline_mode = #tpu.pipeline_mode<synchronous>, transform_indices = @transform_1, window_bounds = array<i64: 64, 10>}, {pipeline_mode = #tpu.pipeline_mode<synchronous>, transform_indices = @transform_2, window_bounds = array<i64: 1, 10>}, {pipeline_mode = #tpu.pipeline_mode<synchronous>, transform_indices = @transform_3, window_bounds = array<i64: 2, 10>}]} {
    %c0 = arith.constant 0 : index
    %c0_0 = arith.constant 0 : index
    %c0_1 = arith.constant 0 : index
    %0 = vector.load %arg1[%c0, %c0_0, %c0_1] : memref<2x16x64xf32, #tpu.memory_space<vmem>>, vector<2x16x64xf32>
    %cst = arith.constant dense<0.000000e+00> : vector<2x64xf32>
    %1 = vector.multi_reduction <add>, %0, %cst [1] : vector<2x16x64xf32> to vector<2x64xf32>
    %cst_2 = arith.constant 1.600000e+01 : f32
    %2 = vector.broadcast %cst_2 : f32 to vector<2x64xf32>
    %3 = arith.divf %1, %2 : vector<2x64xf32>
    %c0_3 = arith.constant 0 : index
    %c0_4 = arith.constant 0 : index
    %4 = vector.load %arg2[%c0_3, %c0_4] : memref<64x10xf32, #tpu.memory_space<vmem>>, vector<64x10xf32>
    %cst_5 = arith.constant dense<0.000000e+00> : vector<2x10xf32>
    %5 = tpu.matmul %3, %4, %cst_5 {dimension_numbers = #tpu.dot_dimension_numbers<[1], [0], [0], [1], [0, 0, 1, 1], [], []>} : vector<2x64xf32>, vector<64x10xf32>, vector<2x10xf32> -> vector<2x10xf32>
    %c0_6 = arith.constant 0 : index
    %c0_7 = arith.constant 0 : index
    %6 = vector.load %arg3[%c0_6, %c0_7] : memref<1x10xf32, #tpu.memory_space<vmem>>, vector<1x10xf32>
    %7 = vector.broadcast %6 : vector<1x10xf32> to vector<2x10xf32>
    %8 = arith.addf %5, %7 : vector<2x10xf32>
    %c0_8 = arith.constant 0 : index
    %c0_9 = arith.constant 0 : index
    %9 = vector.load %arg4[%c0_8, %c0_9] : memref<2x10xf32, #tpu.memory_space<vmem>>, vector<2x10xf32>
    tpu.vector_store %arg4[%c0_8, %c0_9], %8 {strides = array<i32>} : memref<2x10xf32, #tpu.memory_space<vmem>>, vector<2x10xf32>,
    return
  }
  func.func @transform_0(%arg0: i32) -> (i32, i32, i32) {
    %c0_i32 = arith.constant 0 : i32
    %c0_i32_0 = arith.constant 0 : i32
    %c0_i32_1 = arith.constant 0 : i32
    %c0_i32_2 = arith.constant 0 : i32
    return %c0_i32, %c0_i32_0, %c0_i32_1 : i32, i32, i32
  }
  func.func @transform_1(%arg0: i32) -> (i32, i32) {
    %c0_i32 = arith.constant 0 : i32
    %c0_i32_0 = arith.constant 0 : i32
    %c0_i32_1 = arith.constant 0 : i32
    return %c0_i32, %c0_i32_0 : i32, i32
  }
  func.func @transform_2(%arg0: i32) -> (i32, i32) {
    %c0_i32 = arith.constant 0 : i32
    %c0_i32_0 = arith.constant 0 : i32
    %c0_i32_1 = arith.constant 0 : i32
    return %c0_i32, %c0_i32_0 : i32, i32
  }
  func.func @transform_3(%arg0: i32) -> (i32, i32) {
    %c0_i32 = arith.constant 0 : i32
    %c0_i32_0 = arith.constant 0 : i32
    %c0_i32_1 = arith.constant 0 : i32
    return %c0_i32, %c0_i32_0 : i32, i32
  }
}

</mosaic_0001>

<llo_original>
// kernel: my_resnet_forward.12
$region0: #{my_resnet_forward.12}
  #allocation0 [shape = 'u32[]', space=smem, size = 0x4, offset = 0x4, fixed_abs, tag = 'smem constant byte address 0x4 - core index']
  #allocation1 [shape = 'u32[144,128]{1,0:T(1,128)}', space=vmem, size = 0x12000, scoped, tag = 'internal scratch']
  %s0 = inlined_call_operand.vmem [shape: f32[9,128,32], index: 0, kind: input, shape index: {}]
  %s1 = inlined_call_operand.vmem [shape: f32[128,32], index: 1, kind: output, shape index: {}]
  %s2 = sld [smem:[#allocation0]]
  $region14: #{my_resnet_forward.12} parent=0
    _
  %s4 = ssub.s32 1, %s2
  %s5 = scalar_select 0, %s4, %s2
  // Predicated region
  $region2: #{my_resnet_forward.12} parent=0 // pred_check
    _
  $region3: #{my_resnet_forward.12} parent=0 // pred_check_branch
    %7 = sbr.rel (0) target = $region5
  $region4: #{my_resnet_forward.12} parent=0 // pred_region
    _
  $region5: #{my_resnet_forward.12} parent=0 // pred_fallthru
    _
  %v8 = vld [vmem:[%s0] sm:$0xff]
  %v9 = vld [vmem:[%s0 + $0x8] sm:$0xff]
  %v10 = vld [vmem:[%s0 + $0x10] sm:$0xff]
  %v11 = vld [vmem:[%s0 + $0x18] sm:$0xff]
  %v12 = vld [vmem:[%s0 + $0x20] sm:$0xff]
  %v13 = vld [vmem:[%s0 + $0x28] sm:$0xff]
  %v14 = vld [vmem:[%s0 + $0x30] sm:$0xff]
  %v15 = vld [vmem:[%s0 + $0x38] sm:$0xff]
  %v16 = vld [vmem:[%s0 + $0x40] sm:$0xff]
  %v17 = vld [vmem:[%s0 + $0x48] sm:$0xff]
  %v18 = vld [vmem:[%s0 + $0x50] sm:$0xff]
  %v19 = vld [vmem:[%s0 + $0x58] sm:$0xff]
  %v20 = vld [vmem:[%s0 + $0x60] sm:$0xff]
  %v21 = vld [vmem:[%s0 + $0x68] sm:$0xff]
  %v22 = vld [vmem:[%s0 + $0x70] sm:$0xff]
  %v23 = vld [vmem:[%s0 + $0x78] sm:$0xff]
  %v24 = vld [vmem:[%s0 + $0x80] sm:$0xff]
  %v25 = vld [vmem:[%s0 + $0x88] sm:$0xff]
  %v26 = vld [vmem:[%s0 + $0x90] sm:$0xff]
  %v27 = vld [vmem:[%s0 + $0x98] sm:$0xff]
  %v28 = vld [vmem:[%s0 + $0xa0] sm:$0xff]
  %v29 = vld [vmem:[%s0 + $0xa8] sm:$0xff]
  %v30 = vld [vmem:[%s0 + $0xb0] sm:$0xff]
  %v31 = vld [vmem:[%s0 + $0xb8] sm:$0xff]
  %v32 = vld [vmem:[%s0 + $0xc0] sm:$0xff]
  %v33 = vld [vmem:[%s0 + $0xc8] sm:$0xff]
  %v34 = vld [vmem:[%s0 + $0xd0] sm:$0xff]
  %v35 = vld [vmem:[%s0 + $0xd8] sm:$0xff]
  %v36 = vld [vmem:[%s0 + $0xe0] sm:$0xff]
  %v37 = vld [vmem:[%s0 + $0xe8] sm:$0xff]
  %v38 = vld [vmem:[%s0 + $0xf0] sm:$0xff]
  %v39 = vld [vmem:[%s0 + $0xf8] sm:$0xff]
  %v40 = vld [vmem:[%s0 + $0x100] sm:$0xff]
  %v41 = vld [vmem:[%s0 + $0x108] sm:$0xff]
  %v42 = vld [vmem:[%s0 + $0x110] sm:$0xff]
  %v43 = vld [vmem:[%s0 + $0x118] sm:$0xff]
  %v44 = vld [vmem:[%s0 + $0x120] sm:$0xff]
  %v45 = vld [vmem:[%s0 + $0x128] sm:$0xff]
  %v46 = vld [vmem:[%s0 + $0x130] sm:$0xff]
  %v47 = vld [vmem:[%s0 + $0x138] sm:$0xff]
  %v48 = vld [vmem:[%s0 + $0x140] sm:$0xff]
  %v49 = vld [vmem:[%s0 + $0x148] sm:$0xff]
  %v50 = vld [vmem:[%s0 + $0x150] sm:$0xff]
  %v51 = vld [vmem:[%s0 + $0x158] sm:$0xff]
  %v52 = vld [vmem:[%s0 + $0x160] sm:$0xff]
  %v53 = vld [vmem:[%s0 + $0x168] sm:$0xff]
  %v54 = vld [vmem:[%s0 + $0x170] sm:$0xff]
  %v55 = vld [vmem:[%s0 + $0x178] sm:$0xff]
  %v56 = vld [vmem:[%s0 + $0x180] sm:$0xff]
  %v57 = vld [vmem:[%s0 + $0x188] sm:$0xff]
  %v58 = vld [vmem:[%s0 + $0x190] sm:$0xff]
  %v59 = vld [vmem:[%s0 + $0x198] sm:$0xff]
  %v60 = vld [vmem:[%s0 + $0x1a0] sm:$0xff]
  %v61 = vld [vmem:[%s0 + $0x1a8] sm:$0xff]
  %v62 = vld [vmem:[%s0 + $0x1b0] sm:$0xff]
  %v63 = vld [vmem:[%s0 + $0x1b8] sm:$0xff]
  %v64 = vld [vmem:[%s0 + $0x1c0] sm:$0xff]
  %v65 = vld [vmem:[%s0 + $0x1c8] sm:$0xff]
  %v66 = vld [vmem:[%s0 + $0x1d0] sm:$0xff]
  %v67 = vld [vmem:[%s0 + $0x1d8] sm:$0xff]
  %v68 = vld [vmem:[%s0 + $0x1e0] sm:$0xff]
  %v69 = vld [vmem:[%s0 + $0x1e8] sm:$0xff]
  %v70 = vld [vmem:[%s0 + $0x1f0] sm:$0xff]
  %v71 = vld [vmem:[%s0 + $0x1f8] sm:$0xff]
  %v72 = vld [vmem:[%s0 + $0x200] sm:$0xff]
  %v73 = vld [vmem:[%s0 + $0x208] sm:$0xff]
  %v74 = vld [vmem:[%s0 + $0x210] sm:$0xff]
  %v75 = vld [vmem:[%s0 + $0x218] sm:$0xff]
  %v76 = vld [vmem:[%s0 + $0x220] sm:$0xff]
  %v77 = vld [vmem:[%s0 + $0x228] sm:$0xff]
  %v78 = vld [vmem:[%s0 + $0x230] sm:$0xff]
  %v79 = vld [vmem:[%s0 + $0x238] sm:$0xff]
  %v80 = vld [vmem:[%s0 + $0x240] sm:$0xff]
  %v81 = vld [vmem:[%s0 + $0x248] sm:$0xff]
  %v82 = vld [vmem:[%s0 + $0x250] sm:$0xff]
  %v83 = vld [vmem:[%s0 + $0x258] sm:$0xff]
  %v84 = vld [vmem:[%s0 + $0x260] sm:$0xff]
  %v85 = vld [vmem:[%s0 + $0x268] sm:$0xff]
  %v86 = vld [vmem:[%s0 + $0x270] sm:$0xff]
  %v87 = vld [vmem:[%s0 + $0x278] sm:$0xff]
  %v88 = vld [vmem:[%s0 + $0x280] sm:$0xff]
  %v89 = vld [vmem:[%s0 + $0x288] sm:$0xff]
  %v90 = vld [vmem:[%s0 + $0x290] sm:$0xff]
  %v91 = vld [vmem:[%s0 + $0x298] sm:$0xff]
  %v92 = vld [vmem:[%s0 + $0x2a0] sm:$0xff]
  %v93 = vld [vmem:[%s0 + $0x2a8] sm:$0xff]
  %v94 = vld [vmem:[%s0 + $0x2b0] sm:$0xff]
  %v95 = vld [vmem:[%s0 + $0x2b8] sm:$0xff]
  %v96 = vld [vmem:[%s0 + $0x2c0] sm:$0xff]
  %v97 = vld [vmem:[%s0 + $0x2c8] sm:$0xff]
  %v98 = vld [vmem:[%s0 + $0x2d0] sm:$0xff]
  %v99 = vld [vmem:[%s0 + $0x2d8] sm:$0xff]
  %v100 = vld [vmem:[%s0 + $0x2e0] sm:$0xff]
  %v101 = vld [vmem:[%s0 + $0x2e8] sm:$0xff]
  %v102 = vld [vmem:[%s0 + $0x2f0] sm:$0xff]
  %v103 = vld [vmem:[%s0 + $0x2f8] sm:$0xff]
  %v104 = vld [vmem:[%s0 + $0x300] sm:$0xff]
  %v105 = vld [vmem:[%s0 + $0x308] sm:$0xff]
  %v106 = vld [vmem:[%s0 + $0x310] sm:$0xff]
  %v107 = vld [vmem:[%s0 + $0x318] sm:$0xff]
  %v108 = vld [vmem:[%s0 + $0x320] sm:$0xff]
  %v109 = vld [vmem:[%s0 + $0x328] sm:$0xff]
  %v110 = vld [vmem:[%s0 + $0x330] sm:$0xff]
  %v111 = vld [vmem:[%s0 + $0x338] sm:$0xff]
  %v112 = vld [vmem:[%s0 + $0x340] sm:$0xff]
  %v113 = vld [vmem:[%s0 + $0x348] sm:$0xff]
  %v114 = vld [vmem:[%s0 + $0x350] sm:$0xff]
  %v115 = vld [vmem:[%s0 + $0x358] sm:$0xff]
  %v116 = vld [vmem:[%s0 + $0x360] sm:$0xff]
  %v117 = vld [vmem:[%s0 + $0x368] sm:$0xff]
  %v118 = vld [vmem:[%s0 + $0x370] sm:$0xff]
  %v119 = vld [vmem:[%s0 + $0x378] sm:$0xff]
  %v120 = vld [vmem:[%s0 + $0x380] sm:$0xff]
  %v121 = vld [vmem:[%s0 + $0x388] sm:$0xff]
  %v122 = vld [vmem:[%s0 + $0x390] sm:$0xff]
  %v123 = vld [vmem:[%s0 + $0x398] sm:$0xff]
  %v124 = vld [vmem:[%s0 + $0x3a0] sm:$0xff]
  %v125 = vld [vmem:[%s0 + $0x3a8] sm:$0xff]
  %v126 = vld [vmem:[%s0 + $0x3b0] sm:$0xff]
  %v127 = vld [vmem:[%s0 + $0x3b8] sm:$0xff]
  %v128 = vld [vmem:[%s0 + $0x3c0] sm:$0xff]
  %v129 = vld [vmem:[%s0 + $0x3c8] sm:$0xff]
  %v130 = vld [vmem:[%s0 + $0x3d0] sm:$0xff]
  %v131 = vld [vmem:[%s0 + $0x3d8] sm:$0xff]
  %v132 = vld [vmem:[%s0 + $0x3e0] sm:$0xff]
  %v133 = vld [vmem:[%s0 + $0x3e8] sm:$0xff]
  %v134 = vld [vmem:[%s0 + $0x3f0] sm:$0xff]
  %v135 = vld [vmem:[%s0 + $0x3f8] sm:$0xff]
  %v136 = vld [vmem:[%s0 + $0x400] sm:$0xff]
  %v137 = vld [vmem:[%s0 + $0x408] sm:$0xff]
  %v138 = vld [vmem:[%s0 + $0x410] sm:$0xff]
  %v139 = vld [vmem:[%s0 + $0x418] sm:$0xff]
  %v140 = vld [vmem:[%s0 + $0x420] sm:$0xff]
  %v141 = vld [vmem:[%s0 + $0x428] sm:$0xff]
  %v142 = vld [vmem:[%s0 + $0x430] sm:$0xff]
  %v143 = vld [vmem:[%s0 + $0x438] sm:$0xff]
  %v144 = vld [vmem:[%s0 + $0x440] sm:$0xff]
  %v145 = vld [vmem:[%s0 + $0x448] sm:$0xff]
  %v146 = vld [vmem:[%s0 + $0x450] sm:$0xff]
  %v147 = vld [vmem:[%s0 + $0x458] sm:$0xff]
  %v148 = vld [vmem:[%s0 + $0x460] sm:$0xff]
  %v149 = vld [vmem:[%s0 + $0x468] sm:$0xff]
  %v150 = vld [vmem:[%s0 + $0x470] sm:$0xff]
  %v151 = vld [vmem:[%s0 + $0x478] sm:$0xff]
  %vm152 = vcmask 261120
  %v153 = vsel %vm152, %v8, -inf
  %v154 = vsel %vm152, %v24, -inf
  %v155 = vmax.f32 %v153, %v154
  %v156 = vsel %vm152, %v40, -inf
  %v157 = vmax.f32 %v155, %v156
  %v158 = vsel %vm152, %v56, -inf
  %v159 = vmax.f32 %v157, %v158
  %v160 = vsel %vm152, %v72, -inf
  %v161 = vmax.f32 %v159, %v160
  %v162 = vsel %vm152, %v88, -inf
  %v163 = vmax.f32 %v161, %v162
  %v164 = vsel %vm152, %v104, -inf
  %v165 = vmax.f32 %v163, %v164
  %v166 = vsel %vm152, %v120, -inf
  %v167 = vmax.f32 %v165, %v166
  %v168 = vsel %vm152, %v136, -inf
  %v169 = vmax.f32 %v167, %v168
  %v170 = vsel %vm152, %v9, -inf
  %v171 = vsel %vm152, %v25, -inf
  %v172 = vmax.f32 %v170, %v171
  %v173 = vsel %vm152, %v41, -inf
  %v174 = vmax.f32 %v172, %v173
  %v175 = vsel %vm152, %v57, -inf
  %v176 = vmax.f32 %v174, %v175
  %v177 = vsel %vm152, %v73, -inf
  %v178 = vmax.f32 %v176, %v177
  %v179 = vsel %vm152, %v89, -inf
  %v180 = vmax.f32 %v178, %v179
  %v181 = vsel %vm152, %v105, -inf
  %v182 = vmax.f32 %v180, %v181
  %v183 = vsel %vm152, %v121, -inf
  %v184 = vmax.f32 %v182, %v183
  %v185 = vsel %vm152, %v137, -inf
  %v186 = vmax.f32 %v184, %v185
  %v187 = vsel %vm152, %v10, -inf
  %v188 = vsel %vm152, %v26, -inf
  %v189 = vmax.f32 %v187, %v188
  %v190 = vsel %vm152, %v42, -inf
  %v191 = vmax.f32 %v189, %v190
  %v192 = vsel %vm152, %v58, -inf
  %v193 = vmax.f32 %v191, %v192
  %v194 = vsel %vm152, %v74, -inf
  %v195 = vmax.f32 %v193, %v194
  %v196 = vsel %vm152, %v90, -inf
  %v197 = vmax.f32 %v195, %v196
  %v198 = vsel %vm152, %v106, -inf
  %v199 = vmax.f32 %v197, %v198
  %v200 = vsel %vm152, %v122, -inf
  %v201 = vmax.f32 %v199, %v200
  %v202 = vsel %vm152, %v138, -inf
  %v203 = vmax.f32 %v201, %v202
  %v204 = vsel %vm152, %v11, -inf
  %v205 = vsel %vm152, %v27, -inf
  %v206 = vmax.f32 %v204, %v205
  %v207 = vsel %vm152, %v43, -inf
  %v208 = vmax.f32 %v206, %v207
  %v209 = vsel %vm152, %v59, -inf
  %v210 = vmax.f32 %v208, %v209
  %v211 = vsel %vm152, %v75, -inf
  %v212 = vmax.f32 %v210, %v211
  %v213 = vsel %vm152, %v91, -inf
  %v214 = vmax.f32 %v212, %v213
  %v215 = vsel %vm152, %v107, -inf
  %v216 = vmax.f32 %v214, %v215
  %v217 = vsel %vm152, %v123, -inf
  %v218 = vmax.f32 %v216, %v217
  %v219 = vsel %vm152, %v139, -inf
  %v220 = vmax.f32 %v218, %v219
  %v221 = vsel %vm152, %v12, -inf
  %v222 = vsel %vm152, %v28, -inf
  %v223 = vmax.f32 %v221, %v222
  %v224 = vsel %vm152, %v44, -inf
  %v225 = vmax.f32 %v223, %v224
  %v226 = vsel %vm152, %v60, -inf
  %v227 = vmax.f32 %v225, %v226
  %v228 = vsel %vm152, %v76, -inf
  %v229 = vmax.f32 %v227, %v228
  %v230 = vsel %vm152, %v92, -inf
  %v231 = vmax.f32 %v229, %v230
  %v232 = vsel %vm152, %v108, -inf
  %v233 = vmax.f32 %v231, %v232
  %v234 = vsel %vm152, %v124, -inf
  %v235 = vmax.f32 %v233, %v234
  %v236 = vsel %vm152, %v140, -inf
  %v237 = vmax.f32 %v235, %v236
  %v238 = vsel %vm152, %v13, -inf
  %v239 = vsel %vm152, %v29, -inf
  %v240 = vmax.f32 %v238, %v239
  %v241 = vsel %vm152, %v45, -inf
  %v242 = vmax.f32 %v240, %v241
  %v243 = vsel %vm152, %v61, -inf
  %v244 = vmax.f32 %v242, %v243
  %v245 = vsel %vm152, %v77, -inf
  %v246 = vmax.f32 %v244, %v245
  %v247 = vsel %vm152, %v93, -inf
  %v248 = vmax.f32 %v246, %v247
  %v249 = vsel %vm152, %v109, -inf
  %v250 = vmax.f32 %v248, %v249
  %v251 = vsel %vm152, %v125, -inf
  %v252 = vmax.f32 %v250, %v251
  %v253 = vsel %vm152, %v141, -inf
  %v254 = vmax.f32 %v252, %v253
  %v255 = vsel %vm152, %v14, -inf
  %v256 = vsel %vm152, %v30, -inf
  %v257 = vmax.f32 %v255, %v256
  %v258 = vsel %vm152, %v46, -inf
  %v259 = vmax.f32 %v257, %v258
  %v260 = vsel %vm152, %v62, -inf
  %v261 = vmax.f32 %v259, %v260
  %v262 = vsel %vm152, %v78, -inf
  %v263 = vmax.f32 %v261, %v262
  %v264 = vsel %vm152, %v94, -inf
  %v265 = vmax.f32 %v263, %v264
  %v266 = vsel %vm152, %v110, -inf
  %v267 = vmax.f32 %v265, %v266
  %v268 = vsel %vm152, %v126, -inf
  %v269 = vmax.f32 %v267, %v268
  %v270 = vsel %vm152, %v142, -inf
  %v271 = vmax.f32 %v269, %v270
  %v272 = vsel %vm152, %v15, -inf
  %v273 = vsel %vm152, %v31, -inf
  %v274 = vmax.f32 %v272, %v273
  %v275 = vsel %vm152, %v47, -inf
  %v276 = vmax.f32 %v274, %v275
  %v277 = vsel %vm152, %v63, -inf
  %v278 = vmax.f32 %v276, %v277
  %v279 = vsel %vm152, %v79, -inf
  %v280 = vmax.f32 %v278, %v279
  %v281 = vsel %vm152, %v95, -inf
  %v282 = vmax.f32 %v280, %v281
  %v283 = vsel %vm152, %v111, -inf
  %v284 = vmax.f32 %v282, %v283
  %v285 = vsel %vm152, %v127, -inf
  %v286 = vmax.f32 %v284, %v285
  %v287 = vsel %vm152, %v143, -inf
  %v288 = vmax.f32 %v286, %v287
  %v289 = vsel %vm152, %v16, -inf
  %v290 = vsel %vm152, %v32, -inf
  %v291 = vmax.f32 %v289, %v290
  %v292 = vsel %vm152, %v48, -inf
  %v293 = vmax.f32 %v291, %v292
  %v294 = vsel %vm152, %v64, -inf
  %v295 = vmax.f32 %v293, %v294
  %v296 = vsel %vm152, %v80, -inf
  %v297 = vmax.f32 %v295, %v296
  %v298 = vsel %vm152, %v96, -inf
  %v299 = vmax.f32 %v297, %v298
  %v300 = vsel %vm152, %v112, -inf
  %v301 = vmax.f32 %v299, %v300
  %v302 = vsel %vm152, %v128, -inf
  %v303 = vmax.f32 %v301, %v302
  %v304 = vsel %vm152, %v144, -inf
  %v305 = vmax.f32 %v303, %v304
  %v306 = vsel %vm152, %v17, -inf
  %v307 = vsel %vm152, %v33, -inf
  %v308 = vmax.f32 %v306, %v307
  %v309 = vsel %vm152, %v49, -inf
  %v310 = vmax.f32 %v308, %v309
  %v311 = vsel %vm152, %v65, -inf
  %v312 = vmax.f32 %v310, %v311
  %v313 = vsel %vm152, %v81, -inf
  %v314 = vmax.f32 %v312, %v313
  %v315 = vsel %vm152, %v97, -inf
  %v316 = vmax.f32 %v314, %v315
  %v317 = vsel %vm152, %v113, -inf
  %v318 = vmax.f32 %v316, %v317
  %v319 = vsel %vm152, %v129, -inf
  %v320 = vmax.f32 %v318, %v319
  %v321 = vsel %vm152, %v145, -inf
  %v322 = vmax.f32 %v320, %v321
  %v323 = vsel %vm152, %v18, -inf
  %v324 = vsel %vm152, %v34, -inf
  %v325 = vmax.f32 %v323, %v324
  %v326 = vsel %vm152, %v50, -inf
  %v327 = vmax.f32 %v325, %v326
  %v328 = vsel %vm152, %v66, -inf
  %v329 = vmax.f32 %v327, %v328
  %v330 = vsel %vm152, %v82, -inf
  %v331 = vmax.f32 %v329, %v330
  %v332 = vsel %vm152, %v98, -inf
  %v333 = vmax.f32 %v331, %v332
  %v334 = vsel %vm152, %v114, -inf
  %v335 = vmax.f32 %v333, %v334
  %v336 = vsel %vm152, %v130, -inf
  %v337 = vmax.f32 %v335, %v336
  %v338 = vsel %vm152, %v146, -inf
  %v339 = vmax.f32 %v337, %v338
  %v340 = vsel %vm152, %v19, -inf
  %v341 = vsel %vm152, %v35, -inf
  %v342 = vmax.f32 %v340, %v341
  %v343 = vsel %vm152, %v51, -inf
  %v344 = vmax.f32 %v342, %v343
  %v345 = vsel %vm152, %v67, -inf
  %v346 = vmax.f32 %v344, %v345
  %v347 = vsel %vm152, %v83, -inf
  %v348 = vmax.f32 %v346, %v347
  %v349 = vsel %vm152, %v99, -inf
  %v350 = vmax.f32 %v348, %v349
  %v351 = vsel %vm152, %v115, -inf
  %v352 = vmax.f32 %v350, %v351
  %v353 = vsel %vm152, %v131, -inf
  %v354 = vmax.f32 %v352, %v353
  %v355 = vsel %vm152, %v147, -inf
  %v356 = vmax.f32 %v354, %v355
  %v357 = vsel %vm152, %v20, -inf
  %v358 = vsel %vm152, %v36, -inf
  %v359 = vmax.f32 %v357, %v358
  %v360 = vsel %vm152, %v52, -inf
  %v361 = vmax.f32 %v359, %v360
  %v362 = vsel %vm152, %v68, -inf
  %v363 = vmax.f32 %v361, %v362
  %v364 = vsel %vm152, %v84, -inf
  %v365 = vmax.f32 %v363, %v364
  %v366 = vsel %vm152, %v100, -inf
  %v367 = vmax.f32 %v365, %v366
  %v368 = vsel %vm152, %v116, -inf
  %v369 = vmax.f32 %v367, %v368
  %v370 = vsel %vm152, %v132, -inf
  %v371 = vmax.f32 %v369, %v370
  %v372 = vsel %vm152, %v148, -inf
  %v373 = vmax.f32 %v371, %v372
  %v374 = vsel %vm152, %v21, -inf
  %v375 = vsel %vm152, %v37, -inf
  %v376 = vmax.f32 %v374, %v375
  %v377 = vsel %vm152, %v53, -inf
  %v378 = vmax.f32 %v376, %v377
  %v379 = vsel %vm152, %v69, -inf
  %v380 = vmax.f32 %v378, %v379
  %v381 = vsel %vm152, %v85, -inf
  %v382 = vmax.f32 %v380, %v381
  %v383 = vsel %vm152, %v101, -inf
  %v384 = vmax.f32 %v382, %v383
  %v385 = vsel %vm152, %v117, -inf
  %v386 = vmax.f32 %v384, %v385
  %v387 = vsel %vm152, %v133, -inf
  %v388 = vmax.f32 %v386, %v387
  %v389 = vsel %vm152, %v149, -inf
  %v390 = vmax.f32 %v388, %v389
  %v391 = vsel %vm152, %v22, -inf
  %v392 = vsel %vm152, %v38, -inf
  %v393 = vmax.f32 %v391, %v392
  %v394 = vsel %vm152, %v54, -inf
  %v395 = vmax.f32 %v393, %v394
  %v396 = vsel %vm152, %v70, -inf
  %v397 = vmax.f32 %v395, %v396
  %v398 = vsel %vm152, %v86, -inf
  %v399 = vmax.f32 %v397, %v398
  %v400 = vsel %vm152, %v102, -inf
  %v401 = vmax.f32 %v399, %v400
  %v402 = vsel %vm152, %v118, -inf
  %v403 = vmax.f32 %v401, %v402
  %v404 = vsel %vm152, %v134, -inf
  %v405 = vmax.f32 %v403, %v404
  %v406 = vsel %vm152, %v150, -inf
  %v407 = vmax.f32 %v405, %v406
  %v408 = vsel %vm152, %v23, -inf
  %v409 = vsel %vm152, %v39, -inf
  %v410 = vmax.f32 %v408, %v409
  %v411 = vsel %vm152, %v55, -inf
  %v412 = vmax.f32 %v410, %v411
  %v413 = vsel %vm152, %v71, -inf
  %v414 = vmax.f32 %v412, %v413
  %v415 = vsel %vm152, %v87, -inf
  %v416 = vmax.f32 %v414, %v415
  %v417 = vsel %vm152, %v103, -inf
  %v418 = vmax.f32 %v416, %v417
  %v419 = vsel %vm152, %v119, -inf
  %v420 = vmax.f32 %v418, %v419
  %v421 = vsel %vm152, %v135, -inf
  %v422 = vmax.f32 %v420, %v421
  %v423 = vsel %vm152, %v151, -inf
  %v424 = vmax.f32 %v422, %v423
  %425 = vst.msk [vmem:[%s1] sm:$0xff] %vm152, %v169
  %426 = vst.msk [vmem:[%s1 + $0x8] sm:$0xff] %vm152, %v186
  %427 = vst.msk [vmem:[%s1 + $0x10] sm:$0xff] %vm152, %v203
  %428 = vst.msk [vmem:[%s1 + $0x18] sm:$0xff] %vm152, %v220
  %429 = vst.msk [vmem:[%s1 + $0x20] sm:$0xff] %vm152, %v237
  %430 = vst.msk [vmem:[%s1 + $0x28] sm:$0xff] %vm152, %v254
  %431 = vst.msk [vmem:[%s1 + $0x30] sm:$0xff] %vm152, %v271
  %432 = vst.msk [vmem:[%s1 + $0x38] sm:$0xff] %vm152, %v288
  %433 = vst.msk [vmem:[%s1 + $0x40] sm:$0xff] %vm152, %v305
  %434 = vst.msk [vmem:[%s1 + $0x48] sm:$0xff] %vm152, %v322
  %435 = vst.msk [vmem:[%s1 + $0x50] sm:$0xff] %vm152, %v339
  %436 = vst.msk [vmem:[%s1 + $0x58] sm:$0xff] %vm152, %v356
  %437 = vst.msk [vmem:[%s1 + $0x60] sm:$0xff] %vm152, %v373
  %438 = vst.msk [vmem:[%s1 + $0x68] sm:$0xff] %vm152, %v390
  %439 = vst.msk [vmem:[%s1 + $0x70] sm:$0xff] %vm152, %v407
  %440 = vst.msk [vmem:[%s1 + $0x78] sm:$0xff] %vm152, %v424
  // Predicated region
  $region6: #{my_resnet_forward.12} parent=0 // pred_check
    _
  $region7: #{my_resnet_forward.12} parent=0 // pred_check_branch
    %442 = sbr.rel (0) target = $region9
  $region8: #{my_resnet_forward.12} parent=0 // pred_region
    _
  $region9: #{my_resnet_forward.12} parent=0 // pred_fallthru
    _
  // Predicated region
  $region10: #{my_resnet_forward.12} parent=0 // pred_check
    _
  $region11: #{my_resnet_forward.12} parent=0 // pred_check_branch
    %444 = sbr.rel (0) target = $region13
  $region12: #{my_resnet_forward.12} parent=0 // pred_region
    _
  $region13: #{my_resnet_forward.12} parent=0 // pred_fallthru
    _

// kernel: my_resnet_forward.11
$region0: #{my_resnet_forward.11}
  #allocation0 [shape = 'u32[]', space=smem, size = 0x4, offset = 0x4, fixed_abs, tag = 'smem constant byte address 0x4 - core index']
  #allocation1 [shape = 'u32[144,128]{1,0:T(1,128)}', space=vmem, size = 0x12000, scoped, tag = 'internal scratch']
  %s0 = inlined_call_operand.vmem [shape: f32[450,9], index: 0, kind: input, shape index: {}]
  %s1 = inlined_call_operand.vmem [shape: f32[9,32], index: 1, kind: input, shape index: {}]
  %s2 = inlined_call_operand.vmem [shape: f32[1,32], index: 2, kind: input, shape index: {}]
  %s3 = inlined_call_operand.vmem [shape: f32[1,32], index: 3, kind: input, shape index: {}]
  %s4 = inlined_call_operand.vmem [shape: f32[450,32], index: 4, kind: output, shape index: {}]
  %s5 = sld [smem:[#allocation0]]
  $region26: #{my_resnet_forward.11} parent=0
    _
  %s7 = ssub.s32 1, %s5
  %s8 = scalar_select 0, %s7, %s5
  // Predicated region
  $region2: #{my_resnet_forward.11} parent=0 // pred_check
    _
  $region3: #{my_resnet_forward.11} parent=0 // pred_check_branch
    %10 = sbr.rel (0) target = $region5
  $region4: #{my_resnet_forward.11} parent=0 // pred_region
    _
  $region5: #{my_resnet_forward.11} parent=0 // pred_fallthru
    _
  // Predicated region
  $region6: #{my_resnet_forward.11} parent=0 // pred_check
    _
  $region7: #{my_resnet_forward.11} parent=0 // pred_check_branch
    %12 = sbr.rel (0) target = $region9
  $region8: #{my_resnet_forward.11} parent=0 // pred_region
    _
  $region9: #{my_resnet_forward.11} parent=0 // pred_fallthru
    _
  // Predicated region
  $region10: #{my_resnet_forward.11} parent=0 // pred_check
    _
  $region11: #{my_resnet_forward.11} parent=0 // pred_check_branch
    %14 = sbr.rel (0) target = $region13
  $region12: #{my_resnet_forward.11} parent=0 // pred_region
    _
  $region13: #{my_resnet_forward.11} parent=0 // pred_fallthru
    _
  // Predicated region
  $region14: #{my_resnet_forward.11} parent=0 // pred_check
    _
  $region15: #{my_resnet_forward.11} parent=0 // pred_check_branch
    %16 = sbr.rel (0) target = $region17
  $region16: #{my_resnet_forward.11} parent=0 // pred_region
    _
  $region17: #{my_resnet_forward.11} parent=0 // pred_fallthru
    _
  %v17 = vld [vmem:[%s0] sm:$0xff]
  %v18 = vld [vmem:[%s0 + $0x8] sm:$0xff]
  %v19 = vld [vmem:[%s0 + $0x10] sm:$0xff]
  %v20 = vld [vmem:[%s0 + $0x18] sm:$0xff]
  %v21 = vld [vmem:[%s0 + $0x20] sm:$0xff]
  %v22 = vld [vmem:[%s0 + $0x28] sm:$0xff]
  %v23 = vld [vmem:[%s0 + $0x30] sm:$0xff]
  %v24 = vld [vmem:[%s0 + $0x38] sm:$0xff]
  %v25 = vld [vmem:[%s0 + $0x40] sm:$0xff]
  %v26 = vld [vmem:[%s0 + $0x48] sm:$0xff]
  %v27 = vld [vmem:[%s0 + $0x50] sm:$0xff]
  %v28 = vld [vmem:[%s0 + $0x58] sm:$0xff]
  %v29 = vld [vmem:[%s0 + $0x60] sm:$0xff]
  %v30 = vld [vmem:[%s0 + $0x68] sm:$0xff]
  %v31 = vld [vmem:[%s0 + $0x70] sm:$0xff]
  %v32 = vld [vmem:[%s0 + $0x78] sm:$0xff]
  %v33 = vld [vmem:[%s0 + $0x80] sm:$0xff]
  %v34 = vld [vmem:[%s0 + $0x88] sm:$0xff]
  %v35 = vld [vmem:[%s0 + $0x90] sm:$0xff]
  %v36 = vld [vmem:[%s0 + $0x98] sm:$0xff]
  %v37 = vld [vmem:[%s0 + $0xa0] sm:$0xff]
  %v38 = vld [vmem:[%s0 + $0xa8] sm:$0xff]
  %v39 = vld [vmem:[%s0 + $0xb0] sm:$0xff]
  %v40 = vld [vmem:[%s0 + $0xb8] sm:$0xff]
  %v41 = vld [vmem:[%s0 + $0xc0] sm:$0xff]
  %v42 = vld [vmem:[%s0 + $0xc8] sm:$0xff]
  %v43 = vld [vmem:[%s0 + $0xd0] sm:$0xff]
  %v44 = vld [vmem:[%s0 + $0xd8] sm:$0xff]
  %v45 = vld [vmem:[%s0 + $0xe0] sm:$0xff]
  %v46 = vld [vmem:[%s0 + $0xe8] sm:$0xff]
  %v47 = vld [vmem:[%s0 + $0xf0] sm:$0xff]
  %v48 = vld [vmem:[%s0 + $0xf8] sm:$0xff]
  %v49 = vld [vmem:[%s0 + $0x100] sm:$0xff]
  %v50 = vld [vmem:[%s0 + $0x108] sm:$0xff]
  %v51 = vld [vmem:[%s0 + $0x110] sm:$0xff]
  %v52 = vld [vmem:[%s0 + $0x118] sm:$0xff]
  %v53 = vld [vmem:[%s0 + $0x120] sm:$0xff]
  %v54 = vld [vmem:[%s0 + $0x128] sm:$0xff]
  %v55 = vld [vmem:[%s0 + $0x130] sm:$0xff]
  %v56 = vld [vmem:[%s0 + $0x138] sm:$0xff]
  %v57 = vld [vmem:[%s0 + $0x140] sm:$0xff]
  %v58 = vld [vmem:[%s0 + $0x148] sm:$0xff]
  %v59 = vld [vmem:[%s0 + $0x150] sm:$0xff]
  %v60 = vld [vmem:[%s0 + $0x158] sm:$0xff]
  %v61 = vld [vmem:[%s0 + $0x160] sm:$0xff]
  %v62 = vld [vmem:[%s0 + $0x168] sm:$0xff]
  %v63 = vld [vmem:[%s0 + $0x170] sm:$0xff]
  %v64 = vld [vmem:[%s0 + $0x178] sm:$0xff]
  %v65 = vld [vmem:[%s0 + $0x180] sm:$0xff]
  %v66 = vld [vmem:[%s0 + $0x188] sm:$0xff]
  %v67 = vld [vmem:[%s0 + $0x190] sm:$0xff]
  %v68 = vld [vmem:[%s0 + $0x198] sm:$0xff]
  %v69 = vld [vmem:[%s0 + $0x1a0] sm:$0xff]
  %v70 = vld [vmem:[%s0 + $0x1a8] sm:$0xff]
  %v71 = vld [vmem:[%s0 + $0x1b0] sm:$0xff]
  %v72 = vld [vmem:[%s0 + $0x1b8] sm:$0xff]
  %v73 = vld [vmem:[%s0 + $0x1c0] sm:$0x3]
  %v74 = vld [vmem:[%s1] sm:$0xff]
  %v75 = vld [vmem:[%s1 + $0x8] sm:$0x1]
  %vm76 = vcmask 72704
  %v78 = vsel %vm76, %v17, 0
  %v81 = vsel %vm76, %v18, 0
  %v84 = vsel %vm76, %v19, 0
  %v87 = vsel %vm76, %v20, 0
  %v90 = vsel %vm76, %v21, 0
  %v93 = vsel %vm76, %v22, 0
  %v96 = vsel %vm76, %v23, 0
  %v99 = vsel %vm76, %v24, 0
  %v102 = vsel %vm76, %v25, 0
  %v105 = vsel %vm76, %v26, 0
  %v108 = vsel %vm76, %v27, 0
  %v111 = vsel %vm76, %v28, 0
  %v114 = vsel %vm76, %v29, 0
  %v117 = vsel %vm76, %v30, 0
  %v120 = vsel %vm76, %v31, 0
  %v123 = vsel %vm76, %v32, 0
  %v126 = vsel %vm76, %v33, 0
  %v129 = vsel %vm76, %v34, 0
  %v132 = vsel %vm76, %v35, 0
  %v135 = vsel %vm76, %v36, 0
  %v138 = vsel %vm76, %v37, 0
  %v141 = vsel %vm76, %v38, 0
  %v144 = vsel %vm76, %v39, 0
  %v147 = vsel %vm76, %v40, 0
  %v150 = vsel %vm76, %v41, 0
  %v153 = vsel %vm76, %v42, 0
  %v156 = vsel %vm76, %v43, 0
  %v159 = vsel %vm76, %v44, 0
  %v162 = vsel %vm76, %v45, 0
  %v165 = vsel %vm76, %v46, 0
  %v168 = vsel %vm76, %v47, 0
  %v171 = vsel %vm76, %v48, 0
  %v174 = vsel %vm76, %v49, 0
  %v177 = vsel %vm76, %v50, 0
  %v180 = vsel %vm76, %v51, 0
  %v183 = vsel %vm76, %v52, 0
  %v186 = vsel %vm76, %v53, 0
  %v189 = vsel %vm76, %v54, 0
  %v192 = vsel %vm76, %v55, 0
  %v195 = vsel %vm76, %v56, 0
  %v198 = vsel %vm76, %v57, 0
  %v201 = vsel %vm76, %v58, 0
  %v204 = vsel %vm76, %v59, 0
  %v207 = vsel %vm76, %v60, 0
  %v210 = vsel %vm76, %v61, 0
  %v213 = vsel %vm76, %v62, 0
  %v216 = vsel %vm76, %v63, 0
  %v219 = vsel %vm76, %v64, 0
  %v222 = vsel %vm76, %v65, 0
  %v225 = vsel %vm76, %v66, 0
  %v228 = vsel %vm76, %v67, 0
  %v231 = vsel %vm76, %v68, 0
  %v234 = vsel %vm76, %v69, 0
  %v237 = vsel %vm76, %v70, 0
  %v240 = vsel %vm76, %v71, 0
  %v243 = vsel %vm76, %v72, 0
  %v246 = vsel %vm76, %v73, 0
  %vm248 = vcmask 1040384
  %v250 = vsel %vm248, %v75, 0
  %252 = vmatprep.subr.mxu0 0.0
  %253 = vmatpush1.msra.mxu0 0.0
  %254 = vmatprep.subr.mxu0 0.0
  %255 = vmatpush1.msra.mxu0 0.0
  %256 = vmatprep.subr.mxu0 0.0
  %257 = vmatpush1.msra.mxu0 0.0
  %258 = vmatprep.subr.mxu0 0.0
  %259 = vmatpush1.msra.mxu0 0.0
  %260 = vmatprep.subr.mxu0 0.0
  %261 = vmatpush1.msra.mxu0 0.0
  %262 = vmatprep.subr.mxu0 0.0
  %263 = vmatpush1.msra.mxu0 0.0
  %264 = vmatprep.subr.mxu0 0.0
  %265 = vmatpush1.msra.mxu0 0.0
  %266 = vmatprep.subr.mxu0 0.0
  %267 = vmatpush1.msra.mxu0 0.0
  %268 = vmatprep.subr.mxu0 0.0
  %269 = vmatpush1.msra.mxu0 0.0
  %270 = vmatprep.subr.mxu0 0.0
  %271 = vmatpush1.msra.mxu0 0.0
  %272 = vmatprep.subr.mxu0 0.0
  %273 = vmatpush1.msra.mxu0 0.0
  %274 = vmatprep.subr.mxu0 0.0
  %275 = vmatpush1.msra.mxu0 0.0
  %276 = vmatprep.subr.mxu0 0.0
  %277 = vmatpush1.msra.mxu0 0.0
  %278 = vmatprep.subr.mxu0 0.0
  %279 = vmatpush1.msra.mxu0 0.0
  %280 = vmatprep.subr.mxu0 0.0
  %281 = vmatpush1.msra.mxu0 %v250
  %282 = vmatprep.subr.mxu0 0.0
  %283 = vmatpush1.msra.mxu0 %v74
  %284 = vmatprep.subr.mxu0 0.0
  %285 = vmatpush2.msra.mxu0 0.0
  %286 = vmatprep.subr.mxu0 0.0
  %287 = vmatpush2.msra.mxu0 0.0
  %288 = vmatprep.subr.mxu0 0.0
  %289 = vmatpush2.msra.mxu0 0.0
  %290 = vmatprep.subr.mxu0 0.0
  %291 = vmatpush2.msra.mxu0 0.0
  %292 = vmatprep.subr.mxu0 0.0
  %293 = vmatpush2.msra.mxu0 0.0
  %294 = vmatprep.subr.mxu0 0.0
  %295 = vmatpush2.msra.mxu0 0.0
  %296 = vmatprep.subr.mxu0 0.0
  %297 = vmatpush2.msra.mxu0 0.0
  %298 = vmatprep.subr.mxu0 0.0
  %299 = vmatpush2.msra.mxu0 0.0
  %300 = vmatprep.subr.mxu0 0.0
  %301 = vmatpush2.msra.mxu0 0.0
  %302 = vmatprep.subr.mxu0 0.0
  %303 = vmatpush2.msra.mxu0 0.0
  %304 = vmatprep.subr.mxu0 0.0
  %305 = vmatpush2.msra.mxu0 0.0
  %306 = vmatprep.subr.mxu0 0.0
  %307 = vmatpush2.msra.mxu0 0.0
  %308 = vmatprep.subr.mxu0 0.0
  %309 = vmatpush2.msra.mxu0 0.0
  %310 = vmatprep.subr.mxu0 0.0
  %311 = vmatpush2.msra.mxu0 0.0
  %312 = vmatprep.subr.mxu0 0.0
  %313 = vmatpush2.msra.mxu0 0.0
  %314 = vmatprep.subr.mxu0 0.0
  %315 = vmatpush2.msra.mxu0 0.0
  %316 = vmatprep.mubr.f32.mxu0 0.0
  %317 = vmatmul.mubr.f32.gmra.mxu0 %v78
  %v318 = vpop.f32.mrf.mxu0
  %v319 = vadd.f32 0.0, %v318
  %v320 = vpop.f32.mrf.mxu0
  %321 = vmatprep.mubr.f32.mxu0 0.0
  %322 = vmatmul.mubr.f32.gmra.mxu0 %v81
  %v323 = vpop.f32.mrf.mxu0
  %v324 = vadd.f32 0.0, %v323
  %v325 = vpop.f32.mrf.mxu0
  %326 = vmatprep.mubr.f32.mxu0 0.0
  %327 = vmatmul.mubr.f32.gmra.mxu0 %v84
  %v328 = vpop.f32.mrf.mxu0
  %v329 = vadd.f32 0.0, %v328
  %v330 = vpop.f32.mrf.mxu0
  %331 = vmatprep.mubr.f32.mxu0 0.0
  %332 = vmatmul.mubr.f32.gmra.mxu0 %v87
  %v333 = vpop.f32.mrf.mxu0
  %v334 = vadd.f32 0.0, %v333
  %v335 = vpop.f32.mrf.mxu0
  %336 = vmatprep.mubr.f32.mxu0 0.0
  %337 = vmatmul.mubr.f32.gmra.mxu0 %v90
  %v338 = vpop.f32.mrf.mxu0
  %v339 = vadd.f32 0.0, %v338
  %v340 = vpop.f32.mrf.mxu0
  %341 = vmatprep.mubr.f32.mxu0 0.0
  %342 = vmatmul.mubr.f32.gmra.mxu0 %v93
  %v343 = vpop.f32.mrf.mxu0
  %v344 = vadd.f32 0.0, %v343
  %v345 = vpop.f32.mrf.mxu0
  %346 = vmatprep.mubr.f32.mxu0 0.0
  %347 = vmatmul.mubr.f32.gmra.mxu0 %v96
  %v348 = vpop.f32.mrf.mxu0
  %v349 = vadd.f32 0.0, %v348
  %v350 = vpop.f32.mrf.mxu0
  %351 = vmatprep.mubr.f32.mxu0 0.0
  %352 = vmatmul.mubr.f32.gmra.mxu0 %v99
  %v353 = vpop.f32.mrf.mxu0
  %v354 = vadd.f32 0.0, %v353
  %v355 = vpop.f32.mrf.mxu0
  %356 = vmatprep.mubr.f32.mxu0 0.0
  %357 = vmatmul.mubr.f32.gmra.mxu0 %v102
  %v358 = vpop.f32.mrf.mxu0
  %v359 = vadd.f32 0.0, %v358
  %v360 = vpop.f32.mrf.mxu0
  %361 = vmatprep.mubr.f32.mxu0 0.0
  %362 = vmatmul.mubr.f32.gmra.mxu0 %v105
  %v363 = vpop.f32.mrf.mxu0
  %v364 = vadd.f32 0.0, %v363
  %v365 = vpop.f32.mrf.mxu0
  %366 = vmatprep.mubr.f32.mxu0 0.0
  %367 = vmatmul.mubr.f32.gmra.mxu0 %v108
  %v368 = vpop.f32.mrf.mxu0
  %v369 = vadd.f32 0.0, %v368
  %v370 = vpop.f32.mrf.mxu0
  %371 = vmatprep.mubr.f32.mxu0 0.0
  %372 = vmatmul.mubr.f32.gmra.mxu0 %v111
  %v373 = vpop.f32.mrf.mxu0
  %v374 = vadd.f32 0.0, %v373
  %v375 = vpop.f32.mrf.mxu0
  %376 = vmatprep.mubr.f32.mxu0 0.0
  %377 = vmatmul.mubr.f32.gmra.mxu0 %v114
  %v378 = vpop.f32.mrf.mxu0
  %v379 = vadd.f32 0.0, %v378
  %v380 = vpop.f32.mrf.mxu0
  %381 = vmatprep.mubr.f32.mxu0 0.0
  %382 = vmatmul.mubr.f32.gmra.mxu0 %v117
  %v383 = vpop.f32.mrf.mxu0
  %v384 = vadd.f32 0.0, %v383
  %v385 = vpop.f32.mrf.mxu0
  %386 = vmatprep.mubr.f32.mxu0 0.0
  %387 = vmatmul.mubr.f32.gmra.mxu0 %v120
  %v388 = vpop.f32.mrf.mxu0
  %v389 = vadd.f32 0.0, %v388
  %v390 = vpop.f32.mrf.mxu0
  %391 = vmatprep.mubr.f32.mxu0 0.0
  %392 = vmatmul.mubr.f32.gmra.mxu0 %v123
  %v393 = vpop.f32.mrf.mxu0
  %v394 = vadd.f32 0.0, %v393
  %v395 = vpop.f32.mrf.mxu0
  %396 = vmatprep.mubr.f32.mxu0 0.0
  %397 = vmatmul.mubr.f32.gmra.mxu0 %v126
  %v398 = vpop.f32.mrf.mxu0
  %v399 = vadd.f32 0.0, %v398
  %v400 = vpop.f32.mrf.mxu0
  %401 = vmatprep.mubr.f32.mxu0 0.0
  %402 = vmatmul.mubr.f32.gmra.mxu0 %v129
  %v403 = vpop.f32.mrf.mxu0
  %v404 = vadd.f32 0.0, %v403
  %v405 = vpop.f32.mrf.mxu0
  %406 = vmatprep.mubr.f32.mxu0 0.0
  %407 = vmatmul.mubr.f32.gmra.mxu0 %v132
  %v408 = vpop.f32.mrf.mxu0
  %v409 = vadd.f32 0.0, %v408
  %v410 = vpop.f32.mrf.mxu0
  %411 = vmatprep.mubr.f32.mxu0 0.0
  %412 = vmatmul.mubr.f32.gmra.mxu0 %v135
  %v413 = vpop.f32.mrf.mxu0
  %v414 = vadd.f32 0.0, %v413
  %v415 = vpop.f32.mrf.mxu0
  %416 = vmatprep.mubr.f32.mxu0 0.0
  %417 = vmatmul.mubr.f32.gmra.mxu0 %v138
  %v418 = vpop.f32.mrf.mxu0
  %v419 = vadd.f32 0.0, %v418
  %v420 = vpop.f32.mrf.mxu0
  %421 = vmatprep.mubr.f32.mxu0 0.0
  %422 = vmatmul.mubr.f32.gmra.mxu0 %v141
  %v423 = vpop.f32.mrf.mxu0
  %v424 = vadd.f32 0.0, %v423
  %v425 = vpop.f32.mrf.mxu0
  %426 = vmatprep.mubr.f32.mxu0 0.0
  %427 = vmatmul.mubr.f32.gmra.mxu0 %v144
  %v428 = vpop.f32.mrf.mxu0
  %v429 = vadd.f32 0.0, %v428
  %v430 = vpop.f32.mrf.mxu0
  %431 = vmatprep.mubr.f32.mxu0 0.0
  %432 = vmatmul.mubr.f32.gmra.mxu0 %v147
  %v433 = vpop.f32.mrf.mxu0
  %v434 = vadd.f32 0.0, %v433
  %v435 = vpop.f32.mrf.mxu0
  %436 = vmatprep.mubr.f32.mxu0 0.0
  %437 = vmatmul.mubr.f32.gmra.mxu0 %v150
  %v438 = vpop.f32.mrf.mxu0
  %v439 = vadd.f32 0.0, %v438
  %v440 = vpop.f32.mrf.mxu0
  %441 = vmatprep.mubr.f32.mxu0 0.0
  %442 = vmatmul.mubr.f32.gmra.mxu0 %v153
  %v443 = vpop.f32.mrf.mxu0
  %v444 = vadd.f32 0.0, %v443
  %v445 = vpop.f32.mrf.mxu0
  %446 = vmatprep.mubr.f32.mxu0 0.0
  %447 = vmatmul.mubr.f32.gmra.mxu0 %v156
  %v448 = vpop.f32.mrf.mxu0
  %v449 = vadd.f32 0.0, %v448
  %v450 = vpop.f32.mrf.mxu0
  %451 = vmatprep.mubr.f32.mxu0 0.0
  %452 = vmatmul.mubr.f32.gmra.mxu0 %v159
  %v453 = vpop.f32.mrf.mxu0
  %v454 = vadd.f32 0.0, %v453
  %v455 = vpop.f32.mrf.mxu0
  %456 = vmatprep.mubr.f32.mxu0 0.0
  %457 = vmatmul.mubr.f32.gmra.mxu0 %v162
  %v458 = vpop.f32.mrf.mxu0
  %v459 = vadd.f32 0.0, %v458
  %v460 = vpop.f32.mrf.mxu0
  %461 = vmatprep.mubr.f32.mxu0 0.0
  %462 = vmatmul.mubr.f32.gmra.mxu0 %v165
  %v463 = vpop.f32.mrf.mxu0
  %v464 = vadd.f32 0.0, %v463
  %v465 = vpop.f32.mrf.mxu0
  %466 = vmatprep.mubr.f32.mxu0 0.0
  %467 = vmatmul.mubr.f32.gmra.mxu0 %v168
  %v468 = vpop.f32.mrf.mxu0
  %v469 = vadd.f32 0.0, %v468
  %v470 = vpop.f32.mrf.mxu0
  %471 = vmatprep.mubr.f32.mxu0 0.0
  %472 = vmatmul.mubr.f32.gmra.mxu0 %v171
  %v473 = vpop.f32.mrf.mxu0
  %v474 = vadd.f32 0.0, %v473
  %v475 = vpop.f32.mrf.mxu0
  %476 = vmatprep.mubr.f32.mxu0 0.0
  %477 = vmatmul.mubr.f32.gmra.mxu0 %v174
  %v478 = vpop.f32.mrf.mxu0
  %v479 = vadd.f32 0.0, %v478
  %v480 = vpop.f32.mrf.mxu0
  %481 = vmatprep.mubr.f32.mxu0 0.0
  %482 = vmatmul.mubr.f32.gmra.mxu0 %v177
  %v483 = vpop.f32.mrf.mxu0
  %v484 = vadd.f32 0.0, %v483
  %v485 = vpop.f32.mrf.mxu0
  %486 = vmatprep.mubr.f32.mxu0 0.0
  %487 = vmatmul.mubr.f32.gmra.mxu0 %v180
  %v488 = vpop.f32.mrf.mxu0
  %v489 = vadd.f32 0.0, %v488
  %v490 = vpop.f32.mrf.mxu0
  %491 = vmatprep.mubr.f32.mxu0 0.0
  %492 = vmatmul.mubr.f32.gmra.mxu0 %v183
  %v493 = vpop.f32.mrf.mxu0
  %v494 = vadd.f32 0.0, %v493
  %v495 = vpop.f32.mrf.mxu0
  %496 = vmatprep.mubr.f32.mxu0 0.0
  %497 = vmatmul.mubr.f32.gmra.mxu0 %v186
  %v498 = vpop.f32.mrf.mxu0
  %v499 = vadd.f32 0.0, %v498
  %v500 = vpop.f32.mrf.mxu0
  %501 = vmatprep.mubr.f32.mxu0 0.0
  %502 = vmatmul.mubr.f32.gmra.mxu0 %v189
  %v503 = vpop.f32.mrf.mxu0
  %v504 = vadd.f32 0.0, %v503
  %v505 = vpop.f32.mrf.mxu0
  %506 = vmatprep.mubr.f32.mxu0 0.0
  %507 = vmatmul.mubr.f32.gmra.mxu0 %v192
  %v508 = vpop.f32.mrf.mxu0
  %v509 = vadd.f32 0.0, %v508
  %v510 = vpop.f32.mrf.mxu0
  %511 = vmatprep.mubr.f32.mxu0 0.0
  %512 = vmatmul.mubr.f32.gmra.mxu0 %v195
  %v513 = vpop.f32.mrf.mxu0
  %v514 = vadd.f32 0.0, %v513
  %v515 = vpop.f32.mrf.mxu0
  %516 = vmatprep.mubr.f32.mxu0 0.0
  %517 = vmatmul.mubr.f32.gmra.mxu0 %v198
  %v518 = vpop.f32.mrf.mxu0
  %v519 = vadd.f32 0.0, %v518
  %v520 = vpop.f32.mrf.mxu0
  %521 = vmatprep.mubr.f32.mxu0 0.0
  %522 = vmatmul.mubr.f32.gmra.mxu0 %v201
  %v523 = vpop.f32.mrf.mxu0
  %v524 = vadd.f32 0.0, %v523
  %v525 = vpop.f32.mrf.mxu0
  %526 = vmatprep.mubr.f32.mxu0 0.0
  %527 = vmatmul.mubr.f32.gmra.mxu0 %v204
  %v528 = vpop.f32.mrf.mxu0
  %v529 = vadd.f32 0.0, %v528
  %v530 = vpop.f32.mrf.mxu0
  %531 = vmatprep.mubr.f32.mxu0 0.0
  %532 = vmatmul.mubr.f32.gmra.mxu0 %v207
  %v533 = vpop.f32.mrf.mxu0
  %v534 = vadd.f32 0.0, %v533
  %v535 = vpop.f32.mrf.mxu0
  %536 = vmatprep.mubr.f32.mxu0 0.0
  %537 = vmatmul.mubr.f32.gmra.mxu0 %v210
  %v538 = vpop.f32.mrf.mxu0
  %v539 = vadd.f32 0.0, %v538
  %v540 = vpop.f32.mrf.mxu0
  %541 = vmatprep.mubr.f32.mxu0 0.0
  %542 = vmatmul.mubr.f32.gmra.mxu0 %v213
  %v543 = vpop.f32.mrf.mxu0
  %v544 = vadd.f32 0.0, %v543
  %v545 = vpop.f32.mrf.mxu0
  %546 = vmatprep.mubr.f32.mxu0 0.0
  %547 = vmatmul.mubr.f32.gmra.mxu0 %v216
  %v548 = vpop.f32.mrf.mxu0
  %v549 = vadd.f32 0.0, %v548
  %v550 = vpop.f32.mrf.mxu0
  %551 = vmatprep.mubr.f32.mxu0 0.0
  %552 = vmatmul.mubr.f32.gmra.mxu0 %v219
  %v553 = vpop.f32.mrf.mxu0
  %v554 = vadd.f32 0.0, %v553
  %v555 = vpop.f32.mrf.mxu0
  %556 = vmatprep.mubr.f32.mxu0 0.0
  %557 = vmatmul.mubr.f32.gmra.mxu0 %v222
  %v558 = vpop.f32.mrf.mxu0
  %v559 = vadd.f32 0.0, %v558
  %v560 = vpop.f32.mrf.mxu0
  %561 = vmatprep.mubr.f32.mxu0 0.0
  %562 = vmatmul.mubr.f32.gmra.mxu0 %v225
  %v563 = vpop.f32.mrf.mxu0
  %v564 = vadd.f32 0.0, %v563
  %v565 = vpop.f32.mrf.mxu0
  %566 = vmatprep.mubr.f32.mxu0 0.0
  %567 = vmatmul.mubr.f32.gmra.mxu0 %v228
  %v568 = vpop.f32.mrf.mxu0
  %v569 = vadd.f32 0.0, %v568
  %v570 = vpop.f32.mrf.mxu0
  %571 = vmatprep.mubr.f32.mxu0 0.0
  %572 = vmatmul.mubr.f32.gmra.mxu0 %v231
  %v573 = vpop.f32.mrf.mxu0
  %v574 = vadd.f32 0.0, %v573
  %v575 = vpop.f32.mrf.mxu0
  %576 = vmatprep.mubr.f32.mxu0 0.0
  %577 = vmatmul.mubr.f32.gmra.mxu0 %v234
  %v578 = vpop.f32.mrf.mxu0
  %v579 = vadd.f32 0.0, %v578
  %v580 = vpop.f32.mrf.mxu0
  %581 = vmatprep.mubr.f32.mxu0 0.0
  %582 = vmatmul.mubr.f32.gmra.mxu0 %v237
  %v583 = vpop.f32.mrf.mxu0
  %v584 = vadd.f32 0.0, %v583
  %v585 = vpop.f32.mrf.mxu0
  %586 = vmatprep.mubr.f32.mxu0 0.0
  %587 = vmatmul.mubr.f32.gmra.mxu0 %v240
  %v588 = vpop.f32.mrf.mxu0
  %v589 = vadd.f32 0.0, %v588
  %v590 = vpop.f32.mrf.mxu0
  %591 = vmatprep.mubr.f32.mxu0 0.0
  %592 = vmatmul.mubr.f32.gmra.mxu0 %v243
  %v593 = vpop.f32.mrf.mxu0
  %v594 = vadd.f32 0.0, %v593
  %v595 = vpop.f32.mrf.mxu0
  %596 = vmatprep.mubr.f32.mxu0 0.0
  %597 = vmatmul.mubr.f32.gmra.mxu0 %v246
  %v598 = vpop.f32.mrf.mxu0
  %v599 = vadd.f32 0.0, %v598
  %v600 = vpop.f32.mrf.mxu0
  %601 = vdwg.mxu0
  %v602 = vld [vmem:[%s2] sm:$0x1]
  %v603 = vld [vmem:[%s3] sm:$0x1]
  %vm604 = vcmask 261120
  %v605 = vsel %vm604, %v319, 0.0
  %v606 = vsel %vm604, %v324, 0.0
  %v607 = vadd.f32 %v605, %v606
  %v608 = vsel %vm604, %v329, 0.0
  %v609 = vadd.f32 %v607, %v608
  %v610 = vsel %vm604, %v334, 0.0
  %v611 = vadd.f32 %v609, %v610
  %v612 = vsel %vm604, %v339, 0.0
  %v613 = vadd.f32 %v611, %v612
  %v614 = vsel %vm604, %v344, 0.0
  %v615 = vadd.f32 %v613, %v614
  %v616 = vsel %vm604, %v349, 0.0
  %v617 = vadd.f32 %v615, %v616
  %v618 = vsel %vm604, %v354, 0.0
  %v619 = vadd.f32 %v617, %v618
  %v620 = vsel %vm604, %v359, 0.0
  %v621 = vadd.f32 %v619, %v620
  %v622 = vsel %vm604, %v364, 0.0
  %v623 = vadd.f32 %v621, %v622
  %v624 = vsel %vm604, %v369, 0.0
  %v625 = vadd.f32 %v623, %v624
  %v626 = vsel %vm604, %v374, 0.0
  %v627 = vadd.f32 %v625, %v626
  %v628 = vsel %vm604, %v379, 0.0
  %v629 = vadd.f32 %v627, %v628
  %v630 = vsel %vm604, %v384, 0.0
  %v631 = vadd.f32 %v629, %v630
  %v632 = vsel %vm604, %v389, 0.0
  %v633 = vadd.f32 %v631, %v632
  %v634 = vsel %vm604, %v394, 0.0
  %v635 = vadd.f32 %v633, %v634
  %v636 = vsel %vm604, %v399, 0.0
  %v637 = vadd.f32 %v635, %v636
  %v638 = vsel %vm604, %v404, 0.0
  %v639 = vadd.f32 %v637, %v638
  %v640 = vsel %vm604, %v409, 0.0
  %v641 = vadd.f32 %v639, %v640
  %v642 = vsel %vm604, %v414, 0.0
  %v643 = vadd.f32 %v641, %v642
  %v644 = vsel %vm604, %v419, 0.0
  %v645 = vadd.f32 %v643, %v644
  %v646 = vsel %vm604, %v424, 0.0
  %v647 = vadd.f32 %v645, %v646
  %v648 = vsel %vm604, %v429, 0.0
  %v649 = vadd.f32 %v647, %v648
  %v650 = vsel %vm604, %v434, 0.0
  %v651 = vadd.f32 %v649, %v650
  %v652 = vsel %vm604, %v439, 0.0
  %v653 = vadd.f32 %v651, %v652
  %v654 = vsel %vm604, %v444, 0.0
  %v655 = vadd.f32 %v653, %v654
  %v656 = vsel %vm604, %v449, 0.0
  %v657 = vadd.f32 %v655, %v656
  %v658 = vsel %vm604, %v454, 0.0
  %v659 = vadd.f32 %v657, %v658
  %v660 = vsel %vm604, %v459, 0.0
  %v661 = vadd.f32 %v659, %v660
  %v662 = vsel %vm604, %v464, 0.0
  %v663 = vadd.f32 %v661, %v662
  %v664 = vsel %vm604, %v469, 0.0
  %v665 = vadd.f32 %v663, %v664
  %v666 = vsel %vm604, %v474, 0.0
  %v667 = vadd.f32 %v665, %v666
  %v668 = vsel %vm604, %v479, 0.0
  %v669 = vadd.f32 %v667, %v668
  %v670 = vsel %vm604, %v484, 0.0
  %v671 = vadd.f32 %v669, %v670
  %v672 = vsel %vm604, %v489, 0.0
  %v673 = vadd.f32 %v671, %v672
  %v674 = vsel %vm604, %v494, 0.0
  %v675 = vadd.f32 %v673, %v674
  %v676 = vsel %vm604, %v499, 0.0
  %v677 = vadd.f32 %v675, %v676
  %v678 = vsel %vm604, %v504, 0.0
  %v679 = vadd.f32 %v677, %v678
  %v680 = vsel %vm604, %v509, 0.0
  %v681 = vadd.f32 %v679, %v680
  %v682 = vsel %vm604, %v514, 0.0
  %v683 = vadd.f32 %v681, %v682
  %v684 = vsel %vm604, %v519, 0.0
  %v685 = vadd.f32 %v683, %v684
  %v686 = vsel %vm604, %v524, 0.0
  %v687 = vadd.f32 %v685, %v686
  %v688 = vsel %vm604, %v529, 0.0
  %v689 = vadd.f32 %v687, %v688
  %v690 = vsel %vm604, %v534, 0.0
  %v691 = vadd.f32 %v689, %v690
  %v692 = vsel %vm604, %v539, 0.0
  %v693 = vadd.f32 %v691, %v692
  %v694 = vsel %vm604, %v544, 0.0
  %v695 = vadd.f32 %v693, %v694
  %v696 = vsel %vm604, %v549, 0.0
  %v697 = vadd.f32 %v695, %v696
  %v698 = vsel %vm604, %v554, 0.0
  %v699 = vadd.f32 %v697, %v698
  %v700 = vsel %vm604, %v559, 0.0
  %v701 = vadd.f32 %v699, %v700
  %v702 = vsel %vm604, %v564, 0.0
  %v703 = vadd.f32 %v701, %v702
  %v704 = vsel %vm604, %v569, 0.0
  %v705 = vadd.f32 %v703, %v704
  %v706 = vsel %vm604, %v574, 0.0
  %v707 = vadd.f32 %v705, %v706
  %v708 = vsel %vm604, %v579, 0.0
  %v709 = vadd.f32 %v707, %v708
  %v710 = vsel %vm604, %v584, 0.0
  %v711 = vadd.f32 %v709, %v710
  %v712 = vsel %vm604, %v589, 0.0
  %v713 = vadd.f32 %v711, %v712
  %v714 = vsel %vm604, %v594, 0.0
  %v715 = vadd.f32 %v713, %v714
  %vm716 = vcmask 254976
  %v717 = vsel %vm716, %v599, 0.0
  %v718 = vadd.f32 %v715, %v717
  %v719 = vrot.slane %v718, 4
  %v720 = vadd.f32 %v718, %v719
  %v721 = vrot.slane %v720, 2
  %v722 = vadd.f32 %v720, %v721
  %v723 = vrot.slane %v722, 1
  %v724 = vadd.f32 %v722, %v723
  %v725 = vrcp.pop 450.0
  %v726 = vmul.f32 %v724, %v725
  %v727 = vsub.f32 %v319, %v726
  %v728 = vsub.f32 %v324, %v726
  %v729 = vsub.f32 %v329, %v726
  %v730 = vsub.f32 %v334, %v726
  %v731 = vsub.f32 %v339, %v726
  %v732 = vsub.f32 %v344, %v726
  %v733 = vsub.f32 %v349, %v726
  %v734 = vsub.f32 %v354, %v726
  %v735 = vsub.f32 %v359, %v726
  %v736 = vsub.f32 %v364, %v726
  %v737 = vsub.f32 %v369, %v726
  %v738 = vsub.f32 %v374, %v726
  %v739 = vsub.f32 %v379, %v726
  %v740 = vsub.f32 %v384, %v726
  %v741 = vsub.f32 %v389, %v726
  %v742 = vsub.f32 %v394, %v726
  %v743 = vsub.f32 %v399, %v726
  %v744 = vsub.f32 %v404, %v726
  %v745 = vsub.f32 %v409, %v726
  %v746 = vsub.f32 %v414, %v726
  %v747 = vsub.f32 %v419, %v726
  %v748 = vsub.f32 %v424, %v726
  %v749 = vsub.f32 %v429, %v726
  %v750 = vsub.f32 %v434, %v726
  %v751 = vsub.f32 %v439, %v726
  %v752 = vsub.f32 %v444, %v726
  %v753 = vsub.f32 %v449, %v726
  %v754 = vsub.f32 %v454, %v726
  %v755 = vsub.f32 %v459, %v726
  %v756 = vsub.f32 %v464, %v726
  %v757 = vsub.f32 %v469, %v726
  %v758 = vsub.f32 %v474, %v726
  %v759 = vsub.f32 %v479, %v726
  %v760 = vsub.f32 %v484, %v726
  %v761 = vsub.f32 %v489, %v726
  %v762 = vsub.f32 %v494, %v726
  %v763 = vsub.f32 %v499, %v726
  %v764 = vsub.f32 %v504, %v726
  %v765 = vsub.f32 %v509, %v726
  %v766 = vsub.f32 %v514, %v726
  %v767 = vsub.f32 %v519, %v726
  %v768 = vsub.f32 %v524, %v726
  %v769 = vsub.f32 %v529, %v726
  %v770 = vsub.f32 %v534, %v726
  %v771 = vsub.f32 %v539, %v726
  %v772 = vsub.f32 %v544, %v726
  %v773 = vsub.f32 %v549, %v726
  %v774 = vsub.f32 %v554, %v726
  %v775 = vsub.f32 %v559, %v726
  %v776 = vsub.f32 %v564, %v726
  %v777 = vsub.f32 %v569, %v726
  %v778 = vsub.f32 %v574, %v726
  %v779 = vsub.f32 %v579, %v726
  %v780 = vsub.f32 %v584, %v726
  %v781 = vsub.f32 %v589, %v726
  %v782 = vsub.f32 %v594, %v726
  %v783 = vsub.f32 %v599, %v726
  %v784 = vmul.f32 %v727, %v727
  %v785 = vmul.f32 %v728, %v728
  %v786 = vmul.f32 %v729, %v729
  %v787 = vmul.f32 %v730, %v730
  %v788 = vmul.f32 %v731, %v731
  %v789 = vmul.f32 %v732, %v732
  %v790 = vmul.f32 %v733, %v733
  %v791 = vmul.f32 %v734, %v734
  %v792 = vmul.f32 %v735, %v735
  %v793 = vmul.f32 %v736, %v736
  %v794 = vmul.f32 %v737, %v737
  %v795 = vmul.f32 %v738, %v738
  %v796 = vmul.f32 %v739, %v739
  %v797 = vmul.f32 %v740, %v740
  %v798 = vmul.f32 %v741, %v741
  %v799 = vmul.f32 %v742, %v742
  %v800 = vmul.f32 %v743, %v743
  %v801 = vmul.f32 %v744, %v744
  %v802 = vmul.f32 %v745, %v745
  %v803 = vmul.f32 %v746, %v746
  %v804 = vmul.f32 %v747, %v747
  %v805 = vmul.f32 %v748, %v748
  %v806 = vmul.f32 %v749, %v749
  %v807 = vmul.f32 %v750, %v750
  %v808 = vmul.f32 %v751, %v751
  %v809 = vmul.f32 %v752, %v752
  %v810 = vmul.f32 %v753, %v753
  %v811 = vmul.f32 %v754, %v754
  %v812 = vmul.f32 %v755, %v755
  %v813 = vmul.f32 %v756, %v756
  %v814 = vmul.f32 %v757, %v757
  %v815 = vmul.f32 %v758, %v758
  %v816 = vmul.f32 %v759, %v759
  %v817 = vmul.f32 %v760, %v760
  %v818 = vmul.f32 %v761, %v761
  %v819 = vmul.f32 %v762, %v762
  %v820 = vmul.f32 %v763, %v763
  %v821 = vmul.f32 %v764, %v764
  %v822 = vmul.f32 %v765, %v765
  %v823 = vmul.f32 %v766, %v766
  %v824 = vmul.f32 %v767, %v767
  %v825 = vmul.f32 %v768, %v768
  %v826 = vmul.f32 %v769, %v769
  %v827 = vmul.f32 %v770, %v770
  %v828 = vmul.f32 %v771, %v771
  %v829 = vmul.f32 %v772, %v772
  %v830 = vmul.f32 %v773, %v773
  %v831 = vmul.f32 %v774, %v774
  %v832 = vmul.f32 %v775, %v775
  %v833 = vmul.f32 %v776, %v776
  %v834 = vmul.f32 %v777, %v777
  %v835 = vmul.f32 %v778, %v778
  %v836 = vmul.f32 %v779, %v779
  %v837 = vmul.f32 %v780, %v780
  %v838 = vmul.f32 %v781, %v781
  %v839 = vmul.f32 %v782, %v782
  %v840 = vmul.f32 %v783, %v783
  %v841 = vsel %vm604, %v784, 0.0
  %v842 = vsel %vm604, %v785, 0.0
  %v843 = vadd.f32 %v841, %v842
  %v844 = vsel %vm604, %v786, 0.0
  %v845 = vadd.f32 %v843, %v844
  %v846 = vsel %vm604, %v787, 0.0
  %v847 = vadd.f32 %v845, %v846
  %v848 = vsel %vm604, %v788, 0.0
  %v849 = vadd.f32 %v847, %v848
  %v850 = vsel %vm604, %v789, 0.0
  %v851 = vadd.f32 %v849, %v850
  %v852 = vsel %vm604, %v790, 0.0
  %v853 = vadd.f32 %v851, %v852
  %v854 = vsel %vm604, %v791, 0.0
  %v855 = vadd.f32 %v853, %v854
  %v856 = vsel %vm604, %v792, 0.0
  %v857 = vadd.f32 %v855, %v856
  %v858 = vsel %vm604, %v793, 0.0
  %v859 = vadd.f32 %v857, %v858
  %v860 = vsel %vm604, %v794, 0.0
  %v861 = vadd.f32 %v859, %v860
  %v862 = vsel %vm604, %v795, 0.0
  %v863 = vadd.f32 %v861, %v862
  %v864 = vsel %vm604, %v796, 0.0
  %v865 = vadd.f32 %v863, %v864
  %v866 = vsel %vm604, %v797, 0.0
  %v867 = vadd.f32 %v865, %v866
  %v868 = vsel %vm604, %v798, 0.0
  %v869 = vadd.f32 %v867, %v868
  %v870 = vsel %vm604, %v799, 0.0
  %v871 = vadd.f32 %v869, %v870
  %v872 = vsel %vm604, %v800, 0.0
  %v873 = vadd.f32 %v871, %v872
  %v874 = vsel %vm604, %v801, 0.0
  %v875 = vadd.f32 %v873, %v874
  %v876 = vsel %vm604, %v802, 0.0
  %v877 = vadd.f32 %v875, %v876
  %v878 = vsel %vm604, %v803, 0.0
  %v879 = vadd.f32 %v877, %v878
  %v880 = vsel %vm604, %v804, 0.0
  %v881 = vadd.f32 %v879, %v880
  %v882 = vsel %vm604, %v805, 0.0
  %v883 = vadd.f32 %v881, %v882
  %v884 = vsel %vm604, %v806, 0.0
  %v885 = vadd.f32 %v883, %v884
  %v886 = vsel %vm604, %v807, 0.0
  %v887 = vadd.f32 %v885, %v886
  %v888 = vsel %vm604, %v808, 0.0
  %v889 = vadd.f32 %v887, %v888
  %v890 = vsel %vm604, %v809, 0.0
  %v891 = vadd.f32 %v889, %v890
  %v892 = vsel %vm604, %v810, 0.0
  %v893 = vadd.f32 %v891, %v892
  %v894 = vsel %vm604, %v811, 0.0
  %v895 = vadd.f32 %v893, %v894
  %v896 = vsel %vm604, %v812, 0.0
  %v897 = vadd.f32 %v895, %v896
  %v898 = vsel %vm604, %v813, 0.0
  %v899 = vadd.f32 %v897, %v898
  %v900 = vsel %vm604, %v814, 0.0
  %v901 = vadd.f32 %v899, %v900
  %v902 = vsel %vm604, %v815, 0.0
  %v903 = vadd.f32 %v901, %v902
  %v904 = vsel %vm604, %v816, 0.0
  %v905 = vadd.f32 %v903, %v904
  %v906 = vsel %vm604, %v817, 0.0
  %v907 = vadd.f32 %v905, %v906
  %v908 = vsel %vm604, %v818, 0.0
  %v909 = vadd.f32 %v907, %v908
  %v910 = vsel %vm604, %v819, 0.0
  %v911 = vadd.f32 %v909, %v910
  %v912 = vsel %vm604, %v820, 0.0
  %v913 = vadd.f32 %v911, %v912
  %v914 = vsel %vm604, %v821, 0.0
  %v915 = vadd.f32 %v913, %v914
  %v916 = vsel %vm604, %v822, 0.0
  %v917 = vadd.f32 %v915, %v916
  %v918 = vsel %vm604, %v823, 0.0
  %v919 = vadd.f32 %v917, %v918
  %v920 = vsel %vm604, %v824, 0.0
  %v921 = vadd.f32 %v919, %v920
  %v922 = vsel %vm604, %v825, 0.0
  %v923 = vadd.f32 %v921, %v922
  %v924 = vsel %vm604, %v826, 0.0
  %v925 = vadd.f32 %v923, %v924
  %v926 = vsel %vm604, %v827, 0.0
  %v927 = vadd.f32 %v925, %v926
  %v928 = vsel %vm604, %v828, 0.0
  %v929 = vadd.f32 %v927, %v928
  %v930 = vsel %vm604, %v829, 0.0
  %v931 = vadd.f32 %v929, %v930
  %v932 = vsel %vm604, %v830, 0.0
  %v933 = vadd.f32 %v931, %v932
  %v934 = vsel %vm604, %v831, 0.0
  %v935 = vadd.f32 %v933, %v934
  %v936 = vsel %vm604, %v832, 0.0
  %v937 = vadd.f32 %v935, %v936
  %v938 = vsel %vm604, %v833, 0.0
  %v939 = vadd.f32 %v937, %v938
  %v940 = vsel %vm604, %v834, 0.0
  %v941 = vadd.f32 %v939, %v940
  %v942 = vsel %vm604, %v835, 0.0
  %v943 = vadd.f32 %v941, %v942
  %v944 = vsel %vm604, %v836, 0.0
  %v945 = vadd.f32 %v943, %v944
  %v946 = vsel %vm604, %v837, 0.0
  %v947 = vadd.f32 %v945, %v946
  %v948 = vsel %vm604, %v838, 0.0
  %v949 = vadd.f32 %v947, %v948
  %v950 = vsel %vm604, %v839, 0.0
  %v951 = vadd.f32 %v949, %v950
  %v952 = vsel %vm716, %v840, 0.0
  %v953 = vadd.f32 %v951, %v952
  %v954 = vrot.slane %v953, 4
  %v955 = vadd.f32 %v953, %v954
  %v956 = vrot.slane %v955, 2
  %v957 = vadd.f32 %v955, %v956
  %v958 = vrot.slane %v957, 1
  %v959 = vadd.f32 %v957, %v958
  %v960 = vmul.f32 %v959, %v725
  %v961 = vadd.f32 %v960, 1e-05
  %v962 = vrsqrt.pop %v961
  %v963 = vmul.f32 %v727, %v962
  %v964 = vmul.f32 %v728, %v962
  %v965 = vmul.f32 %v729, %v962
  %v966 = vmul.f32 %v730, %v962
  %v967 = vmul.f32 %v731, %v962
  %v968 = vmul.f32 %v732, %v962
  %v969 = vmul.f32 %v733, %v962
  %v970 = vmul.f32 %v734, %v962
  %v971 = vmul.f32 %v735, %v962
  %v972 = vmul.f32 %v736, %v962
  %v973 = vmul.f32 %v737, %v962
  %v974 = vmul.f32 %v738, %v962
  %v975 = vmul.f32 %v739, %v962
  %v976 = vmul.f32 %v740, %v962
  %v977 = vmul.f32 %v741, %v962
  %v978 = vmul.f32 %v742, %v962
  %v979 = vmul.f32 %v743, %v962
  %v980 = vmul.f32 %v744, %v962
  %v981 = vmul.f32 %v745, %v962
  %v982 = vmul.f32 %v746, %v962
  %v983 = vmul.f32 %v747, %v962
  %v984 = vmul.f32 %v748, %v962
  %v985 = vmul.f32 %v749, %v962
  %v986 = vmul.f32 %v750, %v962
  %v987 = vmul.f32 %v751, %v962
  %v988 = vmul.f32 %v752, %v962
  %v989 = vmul.f32 %v753, %v962
  %v990 = vmul.f32 %v754, %v962
  %v991 = vmul.f32 %v755, %v962
  %v992 = vmul.f32 %v756, %v962
  %v993 = vmul.f32 %v757, %v962
  %v994 = vmul.f32 %v758, %v962
  %v995 = vmul.f32 %v759, %v962
  %v996 = vmul.f32 %v760, %v962
  %v997 = vmul.f32 %v761, %v962
  %v998 = vmul.f32 %v762, %v962
  %v999 = vmul.f32 %v763, %v962
  %v1000 = vmul.f32 %v764, %v962
  %v1001 = vmul.f32 %v765, %v962
  %v1002 = vmul.f32 %v766, %v962
  %v1003 = vmul.f32 %v767, %v962
  %v1004 = vmul.f32 %v768, %v962
  %v1005 = vmul.f32 %v769, %v962
  %v1006 = vmul.f32 %v770, %v962
  %v1007 = vmul.f32 %v771, %v962
  %v1008 = vmul.f32 %v772, %v962
  %v1009 = vmul.f32 %v773, %v962
  %v1010 = vmul.f32 %v774, %v962
  %v1011 = vmul.f32 %v775, %v962
  %v1012 = vmul.f32 %v776, %v962
  %v1013 = vmul.f32 %v777, %v962
  %v1014 = vmul.f32 %v778, %v962
  %v1015 = vmul.f32 %v779, %v962
  %v1016 = vmul.f32 %v780, %v962
  %v1017 = vmul.f32 %v781, %v962
  %v1018 = vmul.f32 %v782, %v962
  %v1019 = vmul.f32 %v783, %v962
  %v1021 = vlaneseq
  %v1022 = vshrl.u32 %v1021, 7
  %v1023 = vsub.s32 0, %v1022
  %v1024 = vrot.slane %v602, %v1023
  %v1026 = vmul.f32 %v963, %v1024
  %v1027 = vmul.f32 %v964, %v1024
  %v1028 = vmul.f32 %v965, %v1024
  %v1029 = vmul.f32 %v966, %v1024
  %v1030 = vmul.f32 %v967, %v1024
  %v1031 = vmul.f32 %v968, %v1024
  %v1032 = vmul.f32 %v969, %v1024
  %v1033 = vmul.f32 %v970, %v1024
  %v1034 = vmul.f32 %v971, %v1024
  %v1035 = vmul.f32 %v972, %v1024
  %v1036 = vmul.f32 %v973, %v1024
  %v1037 = vmul.f32 %v974, %v1024
  %v1038 = vmul.f32 %v975, %v1024
  %v1039 = vmul.f32 %v976, %v1024
  %v1040 = vmul.f32 %v977, %v1024
  %v1041 = vmul.f32 %v978, %v1024
  %v1042 = vmul.f32 %v979, %v1024
  %v1043 = vmul.f32 %v980, %v1024
  %v1044 = vmul.f32 %v981, %v1024
  %v1045 = vmul.f32 %v982, %v1024
  %v1046 = vmul.f32 %v983, %v1024
  %v1047 = vmul.f32 %v984, %v1024
  %v1048 = vmul.f32 %v985, %v1024
  %v1049 = vmul.f32 %v986, %v1024
  %v1050 = vmul.f32 %v987, %v1024
  %v1051 = vmul.f32 %v988, %v1024
  %v1052 = vmul.f32 %v989, %v1024
  %v1053 = vmul.f32 %v990, %v1024
  %v1054 = vmul.f32 %v991, %v1024
  %v1055 = vmul.f32 %v992, %v1024
  %v1056 = vmul.f32 %v993, %v1024
  %v1057 = vmul.f32 %v994, %v1024
  %v1058 = vmul.f32 %v995, %v1024
  %v1059 = vmul.f32 %v996, %v1024
  %v1060 = vmul.f32 %v997, %v1024
  %v1061 = vmul.f32 %v998, %v1024
  %v1062 = vmul.f32 %v999, %v1024
  %v1063 = vmul.f32 %v1000, %v1024
  %v1064 = vmul.f32 %v1001, %v1024
  %v1065 = vmul.f32 %v1002, %v1024
  %v1066 = vmul.f32 %v1003, %v1024
  %v1067 = vmul.f32 %v1004, %v1024
  %v1068 = vmul.f32 %v1005, %v1024
  %v1069 = vmul.f32 %v1006, %v1024
  %v1070 = vmul.f32 %v1007, %v1024
  %v1071 = vmul.f32 %v1008, %v1024
  %v1072 = vmul.f32 %v1009, %v1024
  %v1073 = vmul.f32 %v1010, %v1024
  %v1074 = vmul.f32 %v1011, %v1024
  %v1075 = vmul.f32 %v1012, %v1024
  %v1076 = vmul.f32 %v1013, %v1024
  %v1077 = vmul.f32 %v1014, %v1024
  %v1078 = vmul.f32 %v1015, %v1024
  %v1079 = vmul.f32 %v1016, %v1024
  %v1080 = vmul.f32 %v1017, %v1024
  %v1081 = vmul.f32 %v1018, %v1024
  %v1082 = vmul.f32 %v1019, %v1024
  %v1084 = vlaneseq
  %v1085 = vshrl.u32 %v1084, 7
  %v1086 = vsub.s32 0, %v1085
  %v1087 = vrot.slane %v603, %v1086
  %v1089 = vadd.f32 %v1026, %v1087
  %v1090 = vadd.f32 %v1027, %v1087
  %v1091 = vadd.f32 %v1028, %v1087
  %v1092 = vadd.f32 %v1029, %v1087
  %v1093 = vadd.f32 %v1030, %v1087
  %v1094 = vadd.f32 %v1031, %v1087
  %v1095 = vadd.f32 %v1032, %v1087
  %v1096 = vadd.f32 %v1033, %v1087
  %v1097 = vadd.f32 %v1034, %v1087
  %v1098 = vadd.f32 %v1035, %v1087
  %v1099 = vadd.f32 %v1036, %v1087
  %v1100 = vadd.f32 %v1037, %v1087
  %v1101 = vadd.f32 %v1038, %v1087
  %v1102 = vadd.f32 %v1039, %v1087
  %v1103 = vadd.f32 %v1040, %v1087
  %v1104 = vadd.f32 %v1041, %v1087
  %v1105 = vadd.f32 %v1042, %v1087
  %v1106 = vadd.f32 %v1043, %v1087
  %v1107 = vadd.f32 %v1044, %v1087
  %v1108 = vadd.f32 %v1045, %v1087
  %v1109 = vadd.f32 %v1046, %v1087
  %v1110 = vadd.f32 %v1047, %v1087
  %v1111 = vadd.f32 %v1048, %v1087
  %v1112 = vadd.f32 %v1049, %v1087
  %v1113 = vadd.f32 %v1050, %v1087
  %v1114 = vadd.f32 %v1051, %v1087
  %v1115 = vadd.f32 %v1052, %v1087
  %v1116 = vadd.f32 %v1053, %v1087
  %v1117 = vadd.f32 %v1054, %v1087
  %v1118 = vadd.f32 %v1055, %v1087
  %v1119 = vadd.f32 %v1056, %v1087
  %v1120 = vadd.f32 %v1057, %v1087
  %v1121 = vadd.f32 %v1058, %v1087
  %v1122 = vadd.f32 %v1059, %v1087
  %v1123 = vadd.f32 %v1060, %v1087
  %v1124 = vadd.f32 %v1061, %v1087
  %v1125 = vadd.f32 %v1062, %v1087
  %v1126 = vadd.f32 %v1063, %v1087
  %v1127 = vadd.f32 %v1064, %v1087
  %v1128 = vadd.f32 %v1065, %v1087
  %v1129 = vadd.f32 %v1066, %v1087
  %v1130 = vadd.f32 %v1067, %v1087
  %v1131 = vadd.f32 %v1068, %v1087
  %v1132 = vadd.f32 %v1069, %v1087
  %v1133 = vadd.f32 %v1070, %v1087
  %v1134 = vadd.f32 %v1071, %v1087
  %v1135 = vadd.f32 %v1072, %v1087
  %v1136 = vadd.f32 %v1073, %v1087
  %v1137 = vadd.f32 %v1074, %v1087
  %v1138 = vadd.f32 %v1075, %v1087
  %v1139 = vadd.f32 %v1076, %v1087
  %v1140 = vadd.f32 %v1077, %v1087
  %v1141 = vadd.f32 %v1078, %v1087
  %v1142 = vadd.f32 %v1079, %v1087
  %v1143 = vadd.f32 %v1080, %v1087
  %v1144 = vadd.f32 %v1081, %v1087
  %v1145 = vadd.f32 %v1082, %v1087
  %v1146 = vmax.f32 %v1089, 0.0
  %v1147 = vmax.f32 %v1090, 0.0
  %v1148 = vmax.f32 %v1091, 0.0
  %v1149 = vmax.f32 %v1092, 0.0
  %v1150 = vmax.f32 %v1093, 0.0
  %v1151 = vmax.f32 %v1094, 0.0
  %v1152 = vmax.f32 %v1095, 0.0
  %v1153 = vmax.f32 %v1096, 0.0
  %v1154 = vmax.f32 %v1097, 0.0
  %v1155 = vmax.f32 %v1098, 0.0
  %v1156 = vmax.f32 %v1099, 0.0
  %v1157 = vmax.f32 %v1100, 0.0
  %v1158 = vmax.f32 %v1101, 0.0
  %v1159 = vmax.f32 %v1102, 0.0
  %v1160 = vmax.f32 %v1103, 0.0
  %v1161 = vmax.f32 %v1104, 0.0
  %v1162 = vmax.f32 %v1105, 0.0
  %v1163 = vmax.f32 %v1106, 0.0
  %v1164 = vmax.f32 %v1107, 0.0
  %v1165 = vmax.f32 %v1108, 0.0
  %v1166 = vmax.f32 %v1109, 0.0
  %v1167 = vmax.f32 %v1110, 0.0
  %v1168 = vmax.f32 %v1111, 0.0
  %v1169 = vmax.f32 %v1112, 0.0
  %v1170 = vmax.f32 %v1113, 0.0
  %v1171 = vmax.f32 %v1114, 0.0
  %v1172 = vmax.f32 %v1115, 0.0
  %v1173 = vmax.f32 %v1116, 0.0
  %v1174 = vmax.f32 %v1117, 0.0
  %v1175 = vmax.f32 %v1118, 0.0
  %v1176 = vmax.f32 %v1119, 0.0
  %v1177 = vmax.f32 %v1120, 0.0
  %v1178 = vmax.f32 %v1121, 0.0
  %v1179 = vmax.f32 %v1122, 0.0
  %v1180 = vmax.f32 %v1123, 0.0
  %v1181 = vmax.f32 %v1124, 0.0
  %v1182 = vmax.f32 %v1125, 0.0
  %v1183 = vmax.f32 %v1126, 0.0
  %v1184 = vmax.f32 %v1127, 0.0
  %v1185 = vmax.f32 %v1128, 0.0
  %v1186 = vmax.f32 %v1129, 0.0
  %v1187 = vmax.f32 %v1130, 0.0
  %v1188 = vmax.f32 %v1131, 0.0
  %v1189 = vmax.f32 %v1132, 0.0
  %v1190 = vmax.f32 %v1133, 0.0
  %v1191 = vmax.f32 %v1134, 0.0
  %v1192 = vmax.f32 %v1135, 0.0
  %v1193 = vmax.f32 %v1136, 0.0
  %v1194 = vmax.f32 %v1137, 0.0
  %v1195 = vmax.f32 %v1138, 0.0
  %v1196 = vmax.f32 %v1139, 0.0
  %v1197 = vmax.f32 %v1140, 0.0
  %v1198 = vmax.f32 %v1141, 0.0
  %v1199 = vmax.f32 %v1142, 0.0
  %v1200 = vmax.f32 %v1143, 0.0
  %v1201 = vmax.f32 %v1144, 0.0
  %v1202 = vmax.f32 %v1145, 0.0
  %1203 = vst.msk [vmem:[%s4] sm:$0xff] %vm604, %v1146
  %1204 = vst.msk [vmem:[%s4 + $0x8] sm:$0xff] %vm604, %v1147
  %1205 = vst.msk [vmem:[%s4 + $0x10] sm:$0xff] %vm604, %v1148
  %1206 = vst.msk [vmem:[%s4 + $0x18] sm:$0xff] %vm604, %v1149
  %1207 = vst.msk [vmem:[%s4 + $0x20] sm:$0xff] %vm604, %v1150
  %1208 = vst.msk [vmem:[%s4 + $0x28] sm:$0xff] %vm604, %v1151
  %1209 = vst.msk [vmem:[%s4 + $0x30] sm:$0xff] %vm604, %v1152
  %1210 = vst.msk [vmem:[%s4 + $0x38] sm:$0xff] %vm604, %v1153
  %1211 = vst.msk [vmem:[%s4 + $0x40] sm:$0xff] %vm604, %v1154
  %1212 = vst.msk [vmem:[%s4 + $0x48] sm:$0xff] %vm604, %v1155
  %1213 = vst.msk [vmem:[%s4 + $0x50] sm:$0xff] %vm604, %v1156
  %1214 = vst.msk [vmem:[%s4 + $0x58] sm:$0xff] %vm604, %v1157
  %1215 = vst.msk [vmem:[%s4 + $0x60] sm:$0xff] %vm604, %v1158
  %1216 = vst.msk [vmem:[%s4 + $0x68] sm:$0xff] %vm604, %v1159
  %1217 = vst.msk [vmem:[%s4 + $0x70] sm:$0xff] %vm604, %v1160
  %1218 = vst.msk [vmem:[%s4 + $0x78] sm:$0xff] %vm604, %v1161
  %1219 = vst.msk [vmem:[%s4 + $0x80] sm:$0xff] %vm604, %v1162
  %1220 = vst.msk [vmem:[%s4 + $0x88] sm:$0xff] %vm604, %v1163
  %1221 = vst.msk [vmem:[%s4 + $0x90] sm:$0xff] %vm604, %v1164
  %1222 = vst.msk [vmem:[%s4 + $0x98] sm:$0xff] %vm604, %v1165
  %1223 = vst.msk [vmem:[%s4 + $0xa0] sm:$0xff] %vm604, %v1166
  %1224 = vst.msk [vmem:[%s4 + $0xa8] sm:$0xff] %vm604, %v1167
  %1225 = vst.msk [vmem:[%s4 + $0xb0] sm:$0xff] %vm604, %v1168
  %1226 = vst.msk [vmem:[%s4 + $0xb8] sm:$0xff] %vm604, %v1169
  %1227 = vst.msk [vmem:[%s4 + $0xc0] sm:$0xff] %vm604, %v1170
  %1228 = vst.msk [vmem:[%s4 + $0xc8] sm:$0xff] %vm604, %v1171
  %1229 = vst.msk [vmem:[%s4 + $0xd0] sm:$0xff] %vm604, %v1172
  %1230 = vst.msk [vmem:[%s4 + $0xd8] sm:$0xff] %vm604, %v1173
  %1231 = vst.msk [vmem:[%s4 + $0xe0] sm:$0xff] %vm604, %v1174
  %1232 = vst.msk [vmem:[%s4 + $0xe8] sm:$0xff] %vm604, %v1175
  %1233 = vst.msk [vmem:[%s4 + $0xf0] sm:$0xff] %vm604, %v1176
  %1234 = vst.msk [vmem:[%s4 + $0xf8] sm:$0xff] %vm604, %v1177
  %1235 = vst.msk [vmem:[%s4 + $0x100] sm:$0xff] %vm604, %v1178
  %1236 = vst.msk [vmem:[%s4 + $0x108] sm:$0xff] %vm604, %v1179
  %1237 = vst.msk [vmem:[%s4 + $0x110] sm:$0xff] %vm604, %v1180
  %1238 = vst.msk [vmem:[%s4 + $0x118] sm:$0xff] %vm604, %v1181
  %1239 = vst.msk [vmem:[%s4 + $0x120] sm:$0xff] %vm604, %v1182
  %1240 = vst.msk [vmem:[%s4 + $0x128] sm:$0xff] %vm604, %v1183
  %1241 = vst.msk [vmem:[%s4 + $0x130] sm:$0xff] %vm604, %v1184
  %1242 = vst.msk [vmem:[%s4 + $0x138] sm:$0xff] %vm604, %v1185
  %1243 = vst.msk [vmem:[%s4 + $0x140] sm:$0xff] %vm604, %v1186
  %1244 = vst.msk [vmem:[%s4 + $0x148] sm:$0xff] %vm604, %v1187
  %1245 = vst.msk [vmem:[%s4 + $0x150] sm:$0xff] %vm604, %v1188
  %1246 = vst.msk [vmem:[%s4 + $0x158] sm:$0xff] %vm604, %v1189
  %1247 = vst.msk [vmem:[%s4 + $0x160] sm:$0xff] %vm604, %v1190
  %1248 = vst.msk [vmem:[%s4 + $0x168] sm:$0xff] %vm604, %v1191
  %1249 = vst.msk [vmem:[%s4 + $0x170] sm:$0xff] %vm604, %v1192
  %1250 = vst.msk [vmem:[%s4 + $0x178] sm:$0xff] %vm604, %v1193
  %1251 = vst.msk [vmem:[%s4 + $0x180] sm:$0xff] %vm604, %v1194
  %1252 = vst.msk [vmem:[%s4 + $0x188] sm:$0xff] %vm604, %v1195
  %1253 = vst.msk [vmem:[%s4 + $0x190] sm:$0xff] %vm604, %v1196
  %1254 = vst.msk [vmem:[%s4 + $0x198] sm:$0xff] %vm604, %v1197
  %1255 = vst.msk [vmem:[%s4 + $0x1a0] sm:$0xff] %vm604, %v1198
  %1256 = vst.msk [vmem:[%s4 + $0x1a8] sm:$0xff] %vm604, %v1199
  %1257 = vst.msk [vmem:[%s4 + $0x1b0] sm:$0xff] %vm604, %v1200
  %1258 = vst.msk [vmem:[%s4 + $0x1b8] sm:$0xff] %vm604, %v1201
  %1259 = vst.msk [vmem:[%s4 + $0x1c0] sm:$0x3] %vm716, %v1202
  // Predicated region
  $region18: #{my_resnet_forward.11} parent=0 // pred_check
    _
  $region19: #{my_resnet_forward.11} parent=0 // pred_check_branch
    %1261 = sbr.rel (0) target = $region21
  $region20: #{my_resnet_forward.11} parent=0 // pred_region
    _
  $region21: #{my_resnet_forward.11} parent=0 // pred_fallthru
    _
  // Predicated region
  $region22: #{my_resnet_forward.11} parent=0 // pred_check
    _
  $region23: #{my_resnet_forward.11} parent=0 // pred_check_branch
    %1263 = sbr.rel (0) target = $region25
  $region24: #{my_resnet_forward.11} parent=0 // pred_region
    _
  $region25: #{my_resnet_forward.11} parent=0 // pred_fallthru
    _

// kernel: my_resnet_forward.13
$region0: #{my_resnet_forward.13}
  #allocation0 [shape = 'u32[]', space=smem, size = 0x4, offset = 0x4, fixed_abs, tag = 'smem constant byte address 0x4 - core index']
  #allocation1 [shape = 'u32[144,128]{1,0:T(1,128)}', space=vmem, size = 0x12000, scoped, tag = 'internal scratch']
  %s0 = inlined_call_operand.vmem [shape: f32[128,288], index: 0, kind: input, shape index: {}]
  %s1 = inlined_call_operand.vmem [shape: f32[288,32], index: 1, kind: input, shape index: {}]
  %s2 = inlined_call_operand.vmem [shape: f32[1,32], index: 2, kind: input, shape index: {}]
  %s3 = inlined_call_operand.vmem [shape: f32[1,32], index: 3, kind: input, shape index: {}]
  %s4 = inlined_call_operand.vmem [shape: f32[128,32], index: 4, kind: output, shape index: {}]
  %s5 = sld [smem:[#allocation0]]
  $region26: #{my_resnet_forward.13} parent=0
    _
  %s7 = ssub.s32 1, %s5
  %s8 = scalar_select 0, %s7, %s5
  // Predicated region
  $region2: #{my_resnet_forward.13} parent=0 // pred_check
    _
  $region3: #{my_resnet_forward.13} parent=0 // pred_check_branch
    %10 = sbr.rel (0) target = $region5
  $region4: #{my_resnet_forward.13} parent=0 // pred_region
    _
  $region5: #{my_resnet_forward.13} parent=0 // pred_fallthru
    _
  // Predicated region
  $region6: #{my_resnet_forward.13} parent=0 // pred_check
    _
  $region7: #{my_resnet_forward.13} parent=0 // pred_check_branch
    %12 = sbr.rel (0) target = $region9
  $region8: #{my_resnet_forward.13} parent=0 // pred_region
    _
  $region9: #{my_resnet_forward.13} parent=0 // pred_fallthru
    _
  // Predicated region
  $region10: #{my_resnet_forward.13} parent=0 // pred_check
    _
  $region11: #{my_resnet_forward.13} parent=0 // pred_check_branch
    %14 = sbr.rel (0) target = $region13
  $region12: #{my_resnet_forward.13} parent=0 // pred_region
    _
  $region13: #{my_resnet_forward.13} parent=0 // pred_fallthru
    _
  // Predicated region
  $region14: #{my_resnet_forward.13} parent=0 // pred_check
    _
  $region15: #{my_resnet_forward.13} parent=0 // pred_check_branch
    %16 = sbr.rel (0) target = $region17
  $region16: #{my_resnet_forward.13} parent=0 // pred_region
    _
  $region17: #{my_resnet_forward.13} parent=0 // pred_fallthru
    _
  %v17 = vld [vmem:[%s0] sm:$0xff]
  %v18 = vld [vmem:[%s0 + $0x8] sm:$0xff]
  %v19 = vld [vmem:[%s0 + $0x10] sm:$0xff]
  %v20 = vld [vmem:[%s0 + $0x18] sm:$0xff]
  %v21 = vld [vmem:[%s0 + $0x20] sm:$0xff]
  %v22 = vld [vmem:[%s0 + $0x28] sm:$0xff]
  %v23 = vld [vmem:[%s0 + $0x30] sm:$0xff]
  %v24 = vld [vmem:[%s0 + $0x38] sm:$0xff]
  %v25 = vld [vmem:[%s0 + $0x40] sm:$0xff]
  %v26 = vld [vmem:[%s0 + $0x48] sm:$0xff]
  %v27 = vld [vmem:[%s0 + $0x50] sm:$0xff]
  %v28 = vld [vmem:[%s0 + $0x58] sm:$0xff]
  %v29 = vld [vmem:[%s0 + $0x60] sm:$0xff]
  %v30 = vld [vmem:[%s0 + $0x68] sm:$0xff]
  %v31 = vld [vmem:[%s0 + $0x70] sm:$0xff]
  %v32 = vld [vmem:[%s0 + $0x78] sm:$0xff]
  %v33 = vld [vmem:[%s0 + $0x80] sm:$0xff]
  %v34 = vld [vmem:[%s0 + $0x88] sm:$0xff]
  %v35 = vld [vmem:[%s0 + $0x90] sm:$0xff]
  %v36 = vld [vmem:[%s0 + $0x98] sm:$0xff]
  %v37 = vld [vmem:[%s0 + $0xa0] sm:$0xff]
  %v38 = vld [vmem:[%s0 + $0xa8] sm:$0xff]
  %v39 = vld [vmem:[%s0 + $0xb0] sm:$0xff]
  %v40 = vld [vmem:[%s0 + $0xb8] sm:$0xff]
  %v41 = vld [vmem:[%s0 + $0xc0] sm:$0xff]
  %v42 = vld [vmem:[%s0 + $0xc8] sm:$0xff]
  %v43 = vld [vmem:[%s0 + $0xd0] sm:$0xff]
  %v44 = vld [vmem:[%s0 + $0xd8] sm:$0xff]
  %v45 = vld [vmem:[%s0 + $0xe0] sm:$0xff]
  %v46 = vld [vmem:[%s0 + $0xe8] sm:$0xff]
  %v47 = vld [vmem:[%s0 + $0xf0] sm:$0xff]
  %v48 = vld [vmem:[%s0 + $0xf8] sm:$0xff]
  %v49 = vld [vmem:[%s0 + $0x100] sm:$0xff]
  %v50 = vld [vmem:[%s0 + $0x108] sm:$0xff]
  %v51 = vld [vmem:[%s0 + $0x110] sm:$0xff]
  %v52 = vld [vmem:[%s0 + $0x118] sm:$0xff]
  %v53 = vld [vmem:[%s0 + $0x120] sm:$0xff]
  %v54 = vld [vmem:[%s0 + $0x128] sm:$0xff]
  %v55 = vld [vmem:[%s0 + $0x130] sm:$0xff]
  %v56 = vld [vmem:[%s0 + $0x138] sm:$0xff]
  %v57 = vld [vmem:[%s0 + $0x140] sm:$0xff]
  %v58 = vld [vmem:[%s0 + $0x148] sm:$0xff]
  %v59 = vld [vmem:[%s0 + $0x150] sm:$0xff]
  %v60 = vld [vmem:[%s0 + $0x158] sm:$0xff]
  %v61 = vld [vmem:[%s0 + $0x160] sm:$0xff]
  %v62 = vld [vmem:[%s0 + $0x168] sm:$0xff]
  %v63 = vld [vmem:[%s0 + $0x170] sm:$0xff]
  %v64 = vld [vmem:[%s0 + $0x178] sm:$0xff]
  %v65 = vld [vmem:[%s1] sm:$0xff]
  %v66 = vld [vmem:[%s1 + $0x8] sm:$0xff]
  %v67 = vld [vmem:[%s1 + $0x10] sm:$0xff]
  %v68 = vld [vmem:[%s1 + $0x18] sm:$0xff]
  %v69 = vld [vmem:[%s1 + $0x20] sm:$0xff]
  %v70 = vld [vmem:[%s1 + $0x28] sm:$0xff]
  %v71 = vld [vmem:[%s1 + $0x30] sm:$0xff]
  %v72 = vld [vmem:[%s1 + $0x38] sm:$0xff]
  %v73 = vld [vmem:[%s1 + $0x40] sm:$0xff]
  %v74 = vld [vmem:[%s1 + $0x48] sm:$0xff]
  %v75 = vld [vmem:[%s1 + $0x50] sm:$0xff]
  %v76 = vld [vmem:[%s1 + $0x58] sm:$0xff]
  %v77 = vld [vmem:[%s1 + $0x60] sm:$0xff]
  %v78 = vld [vmem:[%s1 + $0x68] sm:$0xff]
  %v79 = vld [vmem:[%s1 + $0x70] sm:$0xff]
  %v80 = vld [vmem:[%s1 + $0x78] sm:$0xff]
  %v81 = vld [vmem:[%s1 + $0x80] sm:$0xff]
  %v82 = vld [vmem:[%s1 + $0x88] sm:$0xff]
  %v83 = vld [vmem:[%s1 + $0x90] sm:$0xff]
  %v84 = vld [vmem:[%s1 + $0x98] sm:$0xff]
  %v85 = vld [vmem:[%s1 + $0xa0] sm:$0xff]
  %v86 = vld [vmem:[%s1 + $0xa8] sm:$0xff]
  %v87 = vld [vmem:[%s1 + $0xb0] sm:$0xff]
  %v88 = vld [vmem:[%s1 + $0xb8] sm:$0xff]
  %v89 = vld [vmem:[%s1 + $0xc0] sm:$0xff]
  %v90 = vld [vmem:[%s1 + $0xc8] sm:$0xff]
  %v91 = vld [vmem:[%s1 + $0xd0] sm:$0xff]
  %v92 = vld [vmem:[%s1 + $0xd8] sm:$0xff]
  %v93 = vld [vmem:[%s1 + $0xe0] sm:$0xff]
  %v94 = vld [vmem:[%s1 + $0xe8] sm:$0xff]
  %v95 = vld [vmem:[%s1 + $0xf0] sm:$0xff]
  %v96 = vld [vmem:[%s1 + $0xf8] sm:$0xff]
  %v97 = vld [vmem:[%s1 + $0x100] sm:$0xff]
  %v98 = vld [vmem:[%s1 + $0x108] sm:$0xff]
  %v99 = vld [vmem:[%s1 + $0x110] sm:$0xff]
  %v100 = vld [vmem:[%s1 + $0x118] sm:$0xff]
  %vm101 = vcmask 261120
  %v103 = vsel %vm101, %v19, 0
  %v106 = vsel %vm101, %v22, 0
  %v109 = vsel %vm101, %v25, 0
  %v112 = vsel %vm101, %v28, 0
  %v115 = vsel %vm101, %v31, 0
  %v118 = vsel %vm101, %v34, 0
  %v121 = vsel %vm101, %v37, 0
  %v124 = vsel %vm101, %v40, 0
  %v127 = vsel %vm101, %v43, 0
  %v130 = vsel %vm101, %v46, 0
  %v133 = vsel %vm101, %v49, 0
  %v136 = vsel %vm101, %v52, 0
  %v139 = vsel %vm101, %v55, 0
  %v142 = vsel %vm101, %v58, 0
  %v145 = vsel %vm101, %v61, 0
  %v148 = vsel %vm101, %v64, 0
  %150 = vmatprep.subr.mxu0 0.0
  %151 = vmatpush1.msra.mxu0 %v80
  %152 = vmatprep.subr.mxu0 0.0
  %153 = vmatpush1.msra.mxu0 %v79
  %154 = vmatprep.subr.mxu0 0.0
  %155 = vmatpush1.msra.mxu0 %v78
  %156 = vmatprep.subr.mxu0 0.0
  %157 = vmatpush1.msra.mxu0 %v77
  %158 = vmatprep.subr.mxu0 0.0
  %159 = vmatpush1.msra.mxu0 %v76
  %160 = vmatprep.subr.mxu0 0.0
  %161 = vmatpush1.msra.mxu0 %v75
  %162 = vmatprep.subr.mxu0 0.0
  %163 = vmatpush1.msra.mxu0 %v74
  %164 = vmatprep.subr.mxu0 0.0
  %165 = vmatpush1.msra.mxu0 %v73
  %166 = vmatprep.subr.mxu0 0.0
  %167 = vmatpush1.msra.mxu0 %v72
  %168 = vmatprep.subr.mxu0 0.0
  %169 = vmatpush1.msra.mxu0 %v71
  %170 = vmatprep.subr.mxu0 0.0
  %171 = vmatpush1.msra.mxu0 %v70
  %172 = vmatprep.subr.mxu0 0.0
  %173 = vmatpush1.msra.mxu0 %v69
  %174 = vmatprep.subr.mxu0 0.0
  %175 = vmatpush1.msra.mxu0 %v68
  %176 = vmatprep.subr.mxu0 0.0
  %177 = vmatpush1.msra.mxu0 %v67
  %178 = vmatprep.subr.mxu0 0.0
  %179 = vmatpush1.msra.mxu0 %v66
  %180 = vmatprep.subr.mxu0 0.0
  %181 = vmatpush1.msra.mxu0 %v65
  %182 = vmatprep.subr.mxu0 0.0
  %183 = vmatpush2.msra.mxu0 %v96
  %184 = vmatprep.subr.mxu0 0.0
  %185 = vmatpush2.msra.mxu0 %v95
  %186 = vmatprep.subr.mxu0 0.0
  %187 = vmatpush2.msra.mxu0 %v94
  %188 = vmatprep.subr.mxu0 0.0
  %189 = vmatpush2.msra.mxu0 %v93
  %190 = vmatprep.subr.mxu0 0.0
  %191 = vmatpush2.msra.mxu0 %v92
  %192 = vmatprep.subr.mxu0 0.0
  %193 = vmatpush2.msra.mxu0 %v91
  %194 = vmatprep.subr.mxu0 0.0
  %195 = vmatpush2.msra.mxu0 %v90
  %196 = vmatprep.subr.mxu0 0.0
  %197 = vmatpush2.msra.mxu0 %v89
  %198 = vmatprep.subr.mxu0 0.0
  %199 = vmatpush2.msra.mxu0 %v88
  %200 = vmatprep.subr.mxu0 0.0
  %201 = vmatpush2.msra.mxu0 %v87
  %202 = vmatprep.subr.mxu0 0.0
  %203 = vmatpush2.msra.mxu0 %v86
  %204 = vmatprep.subr.mxu0 0.0
  %205 = vmatpush2.msra.mxu0 %v85
  %206 = vmatprep.subr.mxu0 0.0
  %207 = vmatpush2.msra.mxu0 %v84
  %208 = vmatprep.subr.mxu0 0.0
  %209 = vmatpush2.msra.mxu0 %v83
  %210 = vmatprep.subr.mxu0 0.0
  %211 = vmatpush2.msra.mxu0 %v82
  %212 = vmatprep.subr.mxu0 0.0
  %213 = vmatpush2.msra.mxu0 %v81
  %214 = vmatprep.mubr.f32.mxu0 %v18
  %215 = vmatmul.mubr.f32.gmra.mxu0 %v17
  %v216 = vpop.f32.mrf.mxu0
  %v217 = vadd.f32 0.0, %v216
  %v218 = vpop.f32.mrf.mxu0
  %219 = vmatprep.mubr.f32.mxu0 %v21
  %220 = vmatmul.mubr.f32.gmra.mxu0 %v20
  %v221 = vpop.f32.mrf.mxu0
  %v222 = vadd.f32 0.0, %v221
  %v223 = vpop.f32.mrf.mxu0
  %224 = vmatprep.mubr.f32.mxu0 %v24
  %225 = vmatmul.mubr.f32.gmra.mxu0 %v23
  %v226 = vpop.f32.mrf.mxu0
  %v227 = vadd.f32 0.0, %v226
  %v228 = vpop.f32.mrf.mxu0
  %229 = vmatprep.mubr.f32.mxu0 %v27
  %230 = vmatmul.mubr.f32.gmra.mxu0 %v26
  %v231 = vpop.f32.mrf.mxu0
  %v232 = vadd.f32 0.0, %v231
  %v233 = vpop.f32.mrf.mxu0
  %234 = vmatprep.mubr.f32.mxu0 %v30
  %235 = vmatmul.mubr.f32.gmra.mxu0 %v29
  %v236 = vpop.f32.mrf.mxu0
  %v237 = vadd.f32 0.0, %v236
  %v238 = vpop.f32.mrf.mxu0
  %239 = vmatprep.mubr.f32.mxu0 %v33
  %240 = vmatmul.mubr.f32.gmra.mxu0 %v32
  %v241 = vpop.f32.mrf.mxu0
  %v242 = vadd.f32 0.0, %v241
  %v243 = vpop.f32.mrf.mxu0
  %244 = vmatprep.mubr.f32.mxu0 %v36
  %245 = vmatmul.mubr.f32.gmra.mxu0 %v35
  %v246 = vpop.f32.mrf.mxu0
  %v247 = vadd.f32 0.0, %v246
  %v248 = vpop.f32.mrf.mxu0
  %249 = vmatprep.mubr.f32.mxu0 %v39
  %250 = vmatmul.mubr.f32.gmra.mxu0 %v38
  %v251 = vpop.f32.mrf.mxu0
  %v252 = vadd.f32 0.0, %v251
  %v253 = vpop.f32.mrf.mxu0
  %254 = vmatprep.mubr.f32.mxu0 %v42
  %255 = vmatmul.mubr.f32.gmra.mxu0 %v41
  %v256 = vpop.f32.mrf.mxu0
  %v257 = vadd.f32 0.0, %v256
  %v258 = vpop.f32.mrf.mxu0
  %259 = vmatprep.mubr.f32.mxu0 %v45
  %260 = vmatmul.mubr.f32.gmra.mxu0 %v44
  %v261 = vpop.f32.mrf.mxu0
  %v262 = vadd.f32 0.0, %v261
  %v263 = vpop.f32.mrf.mxu0
  %264 = vmatprep.mubr.f32.mxu0 %v48
  %265 = vmatmul.mubr.f32.gmra.mxu0 %v47
  %v266 = vpop.f32.mrf.mxu0
  %v267 = vadd.f32 0.0, %v266
  %v268 = vpop.f32.mrf.mxu0
  %269 = vmatprep.mubr.f32.mxu0 %v51
  %270 = vmatmul.mubr.f32.gmra.mxu0 %v50
  %v271 = vpop.f32.mrf.mxu0
  %v272 = vadd.f32 0.0, %v271
  %v273 = vpop.f32.mrf.mxu0
  %274 = vmatprep.mubr.f32.mxu0 %v54
  %275 = vmatmul.mubr.f32.gmra.mxu0 %v53
  %v276 = vpop.f32.mrf.mxu0
  %v277 = vadd.f32 0.0, %v276
  %v278 = vpop.f32.mrf.mxu0
  %279 = vmatprep.mubr.f32.mxu0 %v57
  %280 = vmatmul.mubr.f32.gmra.mxu0 %v56
  %v281 = vpop.f32.mrf.mxu0
  %v282 = vadd.f32 0.0, %v281
  %v283 = vpop.f32.mrf.mxu0
  %284 = vmatprep.mubr.f32.mxu0 %v60
  %285 = vmatmul.mubr.f32.gmra.mxu0 %v59
  %v286 = vpop.f32.mrf.mxu0
  %v287 = vadd.f32 0.0, %v286
  %v288 = vpop.f32.mrf.mxu0
  %289 = vmatprep.mubr.f32.mxu0 %v63
  %290 = vmatmul.mubr.f32.gmra.mxu0 %v62
  %v291 = vpop.f32.mrf.mxu0
  %v292 = vadd.f32 0.0, %v291
  %v293 = vpop.f32.mrf.mxu0
  %294 = vdwg.mxu0
  %295 = vmatprep.subr.mxu0 0.0
  %296 = vmatpush1.msra.mxu0 0.0
  %297 = vmatprep.subr.mxu0 0.0
  %298 = vmatpush1.msra.mxu0 0.0
  %299 = vmatprep.subr.mxu0 0.0
  %300 = vmatpush1.msra.mxu0 0.0
  %301 = vmatprep.subr.mxu0 0.0
  %302 = vmatpush1.msra.mxu0 0.0
  %303 = vmatprep.subr.mxu0 0.0
  %304 = vmatpush1.msra.mxu0 0.0
  %305 = vmatprep.subr.mxu0 0.0
  %306 = vmatpush1.msra.mxu0 0.0
  %307 = vmatprep.subr.mxu0 0.0
  %308 = vmatpush1.msra.mxu0 0.0
  %309 = vmatprep.subr.mxu0 0.0
  %310 = vmatpush1.msra.mxu0 0.0
  %311 = vmatprep.subr.mxu0 0.0
  %312 = vmatpush1.msra.mxu0 0.0
  %313 = vmatprep.subr.mxu0 0.0
  %314 = vmatpush1.msra.mxu0 0.0
  %315 = vmatprep.subr.mxu0 0.0
  %316 = vmatpush1.msra.mxu0 0.0
  %317 = vmatprep.subr.mxu0 0.0
  %318 = vmatpush1.msra.mxu0 0.0
  %319 = vmatprep.subr.mxu0 0.0
  %320 = vmatpush1.msra.mxu0 %v100
  %321 = vmatprep.subr.mxu0 0.0
  %322 = vmatpush1.msra.mxu0 %v99
  %323 = vmatprep.subr.mxu0 0.0
  %324 = vmatpush1.msra.mxu0 %v98
  %325 = vmatprep.subr.mxu0 0.0
  %326 = vmatpush1.msra.mxu0 %v97
  %327 = vmatprep.subr.mxu0 0.0
  %328 = vmatpush2.msra.mxu0 0.0
  %329 = vmatprep.subr.mxu0 0.0
  %330 = vmatpush2.msra.mxu0 0.0
  %331 = vmatprep.subr.mxu0 0.0
  %332 = vmatpush2.msra.mxu0 0.0
  %333 = vmatprep.subr.mxu0 0.0
  %334 = vmatpush2.msra.mxu0 0.0
  %335 = vmatprep.subr.mxu0 0.0
  %336 = vmatpush2.msra.mxu0 0.0
  %337 = vmatprep.subr.mxu0 0.0
  %338 = vmatpush2.msra.mxu0 0.0
  %339 = vmatprep.subr.mxu0 0.0
  %340 = vmatpush2.msra.mxu0 0.0
  %341 = vmatprep.subr.mxu0 0.0
  %342 = vmatpush2.msra.mxu0 0.0
  %343 = vmatprep.subr.mxu0 0.0
  %344 = vmatpush2.msra.mxu0 0.0
  %345 = vmatprep.subr.mxu0 0.0
  %346 = vmatpush2.msra.mxu0 0.0
  %347 = vmatprep.subr.mxu0 0.0
  %348 = vmatpush2.msra.mxu0 0.0
  %349 = vmatprep.subr.mxu0 0.0
  %350 = vmatpush2.msra.mxu0 0.0
  %351 = vmatprep.subr.mxu0 0.0
  %352 = vmatpush2.msra.mxu0 0.0
  %353 = vmatprep.subr.mxu0 0.0
  %354 = vmatpush2.msra.mxu0 0.0
  %355 = vmatprep.subr.mxu0 0.0
  %356 = vmatpush2.msra.mxu0 0.0
  %357 = vmatprep.subr.mxu0 0.0
  %358 = vmatpush2.msra.mxu0 0.0
  %359 = vmatprep.mubr.f32.mxu0 0.0
  %360 = vmatmul.mubr.f32.gmra.mxu0 %v103
  %v361 = vpop.f32.mrf.mxu0
  %v362 = vadd.f32 %v217, %v361
  %v363 = vpop.f32.mrf.mxu0
  %364 = vmatprep.mubr.f32.mxu0 0.0
  %365 = vmatmul.mubr.f32.gmra.mxu0 %v106
  %v366 = vpop.f32.mrf.mxu0
  %v367 = vadd.f32 %v222, %v366
  %v368 = vpop.f32.mrf.mxu0
  %369 = vmatprep.mubr.f32.mxu0 0.0
  %370 = vmatmul.mubr.f32.gmra.mxu0 %v109
  %v371 = vpop.f32.mrf.mxu0
  %v372 = vadd.f32 %v227, %v371
  %v373 = vpop.f32.mrf.mxu0
  %374 = vmatprep.mubr.f32.mxu0 0.0
  %375 = vmatmul.mubr.f32.gmra.mxu0 %v112
  %v376 = vpop.f32.mrf.mxu0
  %v377 = vadd.f32 %v232, %v376
  %v378 = vpop.f32.mrf.mxu0
  %379 = vmatprep.mubr.f32.mxu0 0.0
  %380 = vmatmul.mubr.f32.gmra.mxu0 %v115
  %v381 = vpop.f32.mrf.mxu0
  %v382 = vadd.f32 %v237, %v381
  %v383 = vpop.f32.mrf.mxu0
  %384 = vmatprep.mubr.f32.mxu0 0.0
  %385 = vmatmul.mubr.f32.gmra.mxu0 %v118
  %v386 = vpop.f32.mrf.mxu0
  %v387 = vadd.f32 %v242, %v386
  %v388 = vpop.f32.mrf.mxu0
  %389 = vmatprep.mubr.f32.mxu0 0.0
  %390 = vmatmul.mubr.f32.gmra.mxu0 %v121
  %v391 = vpop.f32.mrf.mxu0
  %v392 = vadd.f32 %v247, %v391
  %v393 = vpop.f32.mrf.mxu0
  %394 = vmatprep.mubr.f32.mxu0 0.0
  %395 = vmatmul.mubr.f32.gmra.mxu0 %v124
  %v396 = vpop.f32.mrf.mxu0
  %v397 = vadd.f32 %v252, %v396
  %v398 = vpop.f32.mrf.mxu0
  %399 = vmatprep.mubr.f32.mxu0 0.0
  %400 = vmatmul.mubr.f32.gmra.mxu0 %v127
  %v401 = vpop.f32.mrf.mxu0
  %v402 = vadd.f32 %v257, %v401
  %v403 = vpop.f32.mrf.mxu0
  %404 = vmatprep.mubr.f32.mxu0 0.0
  %405 = vmatmul.mubr.f32.gmra.mxu0 %v130
  %v406 = vpop.f32.mrf.mxu0
  %v407 = vadd.f32 %v262, %v406
  %v408 = vpop.f32.mrf.mxu0
  %409 = vmatprep.mubr.f32.mxu0 0.0
  %410 = vmatmul.mubr.f32.gmra.mxu0 %v133
  %v411 = vpop.f32.mrf.mxu0
  %v412 = vadd.f32 %v267, %v411
  %v413 = vpop.f32.mrf.mxu0
  %414 = vmatprep.mubr.f32.mxu0 0.0
  %415 = vmatmul.mubr.f32.gmra.mxu0 %v136
  %v416 = vpop.f32.mrf.mxu0
  %v417 = vadd.f32 %v272, %v416
  %v418 = vpop.f32.mrf.mxu0
  %419 = vmatprep.mubr.f32.mxu0 0.0
  %420 = vmatmul.mubr.f32.gmra.mxu0 %v139
  %v421 = vpop.f32.mrf.mxu0
  %v422 = vadd.f32 %v277, %v421
  %v423 = vpop.f32.mrf.mxu0
  %424 = vmatprep.mubr.f32.mxu0 0.0
  %425 = vmatmul.mubr.f32.gmra.mxu0 %v142
  %v426 = vpop.f32.mrf.mxu0
  %v427 = vadd.f32 %v282, %v426
  %v428 = vpop.f32.mrf.mxu0
  %429 = vmatprep.mubr.f32.mxu0 0.0
  %430 = vmatmul.mubr.f32.gmra.mxu0 %v145
  %v431 = vpop.f32.mrf.mxu0
  %v432 = vadd.f32 %v287, %v431
  %v433 = vpop.f32.mrf.mxu0
  %434 = vmatprep.mubr.f32.mxu0 0.0
  %435 = vmatmul.mubr.f32.gmra.mxu0 %v148
  %v436 = vpop.f32.mrf.mxu0
  %v437 = vadd.f32 %v292, %v436
  %v438 = vpop.f32.mrf.mxu0
  %439 = vdwg.mxu0
  %v440 = vld [vmem:[%s2] sm:$0x1]
  %v441 = vld [vmem:[%s3] sm:$0x1]
  %v442 = vsel %vm101, %v362, 0.0
  %v443 = vsel %vm101, %v367, 0.0
  %v444 = vadd.f32 %v442, %v443
  %v445 = vsel %vm101, %v372, 0.0
  %v446 = vadd.f32 %v444, %v445
  %v447 = vsel %vm101, %v377, 0.0
  %v448 = vadd.f32 %v446, %v447
  %v449 = vsel %vm101, %v382, 0.0
  %v450 = vadd.f32 %v448, %v449
  %v451 = vsel %vm101, %v387, 0.0
  %v452 = vadd.f32 %v450, %v451
  %v453 = vsel %vm101, %v392, 0.0
  %v454 = vadd.f32 %v452, %v453
  %v455 = vsel %vm101, %v397, 0.0
  %v456 = vadd.f32 %v454, %v455
  %v457 = vsel %vm101, %v402, 0.0
  %v458 = vadd.f32 %v456, %v457
  %v459 = vsel %vm101, %v407, 0.0
  %v460 = vadd.f32 %v458, %v459
  %v461 = vsel %vm101, %v412, 0.0
  %v462 = vadd.f32 %v460, %v461
  %v463 = vsel %vm101, %v417, 0.0
  %v464 = vadd.f32 %v462, %v463
  %v465 = vsel %vm101, %v422, 0.0
  %v466 = vadd.f32 %v464, %v465
  %v467 = vsel %vm101, %v427, 0.0
  %v468 = vadd.f32 %v466, %v467
  %v469 = vsel %vm101, %v432, 0.0
  %v470 = vadd.f32 %v468, %v469
  %v471 = vsel %vm101, %v437, 0.0
  %v472 = vadd.f32 %v470, %v471
  %v473 = vrot.slane %v472, 4
  %v474 = vadd.f32 %v472, %v473
  %v475 = vrot.slane %v474, 2
  %v476 = vadd.f32 %v474, %v475
  %v477 = vrot.slane %v476, 1
  %v478 = vadd.f32 %v476, %v477
  %v479 = vrcp.pop 128.0
  %v480 = vmul.f32 %v478, %v479
  %v481 = vsub.f32 %v362, %v480
  %v482 = vsub.f32 %v367, %v480
  %v483 = vsub.f32 %v372, %v480
  %v484 = vsub.f32 %v377, %v480
  %v485 = vsub.f32 %v382, %v480
  %v486 = vsub.f32 %v387, %v480
  %v487 = vsub.f32 %v392, %v480
  %v488 = vsub.f32 %v397, %v480
  %v489 = vsub.f32 %v402, %v480
  %v490 = vsub.f32 %v407, %v480
  %v491 = vsub.f32 %v412, %v480
  %v492 = vsub.f32 %v417, %v480
  %v493 = vsub.f32 %v422, %v480
  %v494 = vsub.f32 %v427, %v480
  %v495 = vsub.f32 %v432, %v480
  %v496 = vsub.f32 %v437, %v480
  %v497 = vmul.f32 %v481, %v481
  %v498 = vmul.f32 %v482, %v482
  %v499 = vmul.f32 %v483, %v483
  %v500 = vmul.f32 %v484, %v484
  %v501 = vmul.f32 %v485, %v485
  %v502 = vmul.f32 %v486, %v486
  %v503 = vmul.f32 %v487, %v487
  %v504 = vmul.f32 %v488, %v488
  %v505 = vmul.f32 %v489, %v489
  %v506 = vmul.f32 %v490, %v490
  %v507 = vmul.f32 %v491, %v491
  %v508 = vmul.f32 %v492, %v492
  %v509 = vmul.f32 %v493, %v493
  %v510 = vmul.f32 %v494, %v494
  %v511 = vmul.f32 %v495, %v495
  %v512 = vmul.f32 %v496, %v496
  %v513 = vsel %vm101, %v497, 0.0
  %v514 = vsel %vm101, %v498, 0.0
  %v515 = vadd.f32 %v513, %v514
  %v516 = vsel %vm101, %v499, 0.0
  %v517 = vadd.f32 %v515, %v516
  %v518 = vsel %vm101, %v500, 0.0
  %v519 = vadd.f32 %v517, %v518
  %v520 = vsel %vm101, %v501, 0.0
  %v521 = vadd.f32 %v519, %v520
  %v522 = vsel %vm101, %v502, 0.0
  %v523 = vadd.f32 %v521, %v522
  %v524 = vsel %vm101, %v503, 0.0
  %v525 = vadd.f32 %v523, %v524
  %v526 = vsel %vm101, %v504, 0.0
  %v527 = vadd.f32 %v525, %v526
  %v528 = vsel %vm101, %v505, 0.0
  %v529 = vadd.f32 %v527, %v528
  %v530 = vsel %vm101, %v506, 0.0
  %v531 = vadd.f32 %v529, %v530
  %v532 = vsel %vm101, %v507, 0.0
  %v533 = vadd.f32 %v531, %v532
  %v534 = vsel %vm101, %v508, 0.0
  %v535 = vadd.f32 %v533, %v534
  %v536 = vsel %vm101, %v509, 0.0
  %v537 = vadd.f32 %v535, %v536
  %v538 = vsel %vm101, %v510, 0.0
  %v539 = vadd.f32 %v537, %v538
  %v540 = vsel %vm101, %v511, 0.0
  %v541 = vadd.f32 %v539, %v540
  %v542 = vsel %vm101, %v512, 0.0
  %v543 = vadd.f32 %v541, %v542
  %v544 = vrot.slane %v543, 4
  %v545 = vadd.f32 %v543, %v544
  %v546 = vrot.slane %v545, 2
  %v547 = vadd.f32 %v545, %v546
  %v548 = vrot.slane %v547, 1
  %v549 = vadd.f32 %v547, %v548
  %v550 = vmul.f32 %v549, %v479
  %v551 = vadd.f32 %v550, 1e-05
  %v552 = vrsqrt.pop %v551
  %v553 = vmul.f32 %v481, %v552
  %v554 = vmul.f32 %v482, %v552
  %v555 = vmul.f32 %v483, %v552
  %v556 = vmul.f32 %v484, %v552
  %v557 = vmul.f32 %v485, %v552
  %v558 = vmul.f32 %v486, %v552
  %v559 = vmul.f32 %v487, %v552
  %v560 = vmul.f32 %v488, %v552
  %v561 = vmul.f32 %v489, %v552
  %v562 = vmul.f32 %v490, %v552
  %v563 = vmul.f32 %v491, %v552
  %v564 = vmul.f32 %v492, %v552
  %v565 = vmul.f32 %v493, %v552
  %v566 = vmul.f32 %v494, %v552
  %v567 = vmul.f32 %v495, %v552
  %v568 = vmul.f32 %v496, %v552
  %v570 = vlaneseq
  %v571 = vshrl.u32 %v570, 7
  %v572 = vsub.s32 0, %v571
  %v573 = vrot.slane %v440, %v572
  %v575 = vmul.f32 %v553, %v573
  %v576 = vmul.f32 %v554, %v573
  %v577 = vmul.f32 %v555, %v573
  %v578 = vmul.f32 %v556, %v573
  %v579 = vmul.f32 %v557, %v573
  %v580 = vmul.f32 %v558, %v573
  %v581 = vmul.f32 %v559, %v573
  %v582 = vmul.f32 %v560, %v573
  %v583 = vmul.f32 %v561, %v573
  %v584 = vmul.f32 %v562, %v573
  %v585 = vmul.f32 %v563, %v573
  %v586 = vmul.f32 %v564, %v573
  %v587 = vmul.f32 %v565, %v573
  %v588 = vmul.f32 %v566, %v573
  %v589 = vmul.f32 %v567, %v573
  %v590 = vmul.f32 %v568, %v573
  %v592 = vlaneseq
  %v593 = vshrl.u32 %v592, 7
  %v594 = vsub.s32 0, %v593
  %v595 = vrot.slane %v441, %v594
  %v597 = vadd.f32 %v575, %v595
  %v598 = vadd.f32 %v576, %v595
  %v599 = vadd.f32 %v577, %v595
  %v600 = vadd.f32 %v578, %v595
  %v601 = vadd.f32 %v579, %v595
  %v602 = vadd.f32 %v580, %v595
  %v603 = vadd.f32 %v581, %v595
  %v604 = vadd.f32 %v582, %v595
  %v605 = vadd.f32 %v583, %v595
  %v606 = vadd.f32 %v584, %v595
  %v607 = vadd.f32 %v585, %v595
  %v608 = vadd.f32 %v586, %v595
  %v609 = vadd.f32 %v587, %v595
  %v610 = vadd.f32 %v588, %v595
  %v611 = vadd.f32 %v589, %v595
  %v612 = vadd.f32 %v590, %v595
  %v613 = vmax.f32 %v597, 0.0
  %v614 = vmax.f32 %v598, 0.0
  %v615 = vmax.f32 %v599, 0.0
  %v616 = vmax.f32 %v600, 0.0
  %v617 = vmax.f32 %v601, 0.0
  %v618 = vmax.f32 %v602, 0.0
  %v619 = vmax.f32 %v603, 0.0
  %v620 = vmax.f32 %v604, 0.0
  %v621 = vmax.f32 %v605, 0.0
  %v622 = vmax.f32 %v606, 0.0
  %v623 = vmax.f32 %v607, 0.0
  %v624 = vmax.f32 %v608, 0.0
  %v625 = vmax.f32 %v609, 0.0
  %v626 = vmax.f32 %v610, 0.0
  %v627 = vmax.f32 %v611, 0.0
  %v628 = vmax.f32 %v612, 0.0
  %629 = vst.msk [vmem:[%s4] sm:$0xff] %vm101, %v613
  %630 = vst.msk [vmem:[%s4 + $0x8] sm:$0xff] %vm101, %v614
  %631 = vst.msk [vmem:[%s4 + $0x10] sm:$0xff] %vm101, %v615
  %632 = vst.msk [vmem:[%s4 + $0x18] sm:$0xff] %vm101, %v616
  %633 = vst.msk [vmem:[%s4 + $0x20] sm:$0xff] %vm101, %v617
  %634 = vst.msk [vmem:[%s4 + $0x28] sm:$0xff] %vm101, %v618
  %635 = vst.msk [vmem:[%s4 + $0x30] sm:$0xff] %vm101, %v619
  %636 = vst.msk [vmem:[%s4 + $0x38] sm:$0xff] %vm101, %v620
  %637 = vst.msk [vmem:[%s4 + $0x40] sm:$0xff] %vm101, %v621
  %638 = vst.msk [vmem:[%s4 + $0x48] sm:$0xff] %vm101, %v622
  %639 = vst.msk [vmem:[%s4 + $0x50] sm:$0xff] %vm101, %v623
  %640 = vst.msk [vmem:[%s4 + $0x58] sm:$0xff] %vm101, %v624
  %641 = vst.msk [vmem:[%s4 + $0x60] sm:$0xff] %vm101, %v625
  %642 = vst.msk [vmem:[%s4 + $0x68] sm:$0xff] %vm101, %v626
  %643 = vst.msk [vmem:[%s4 + $0x70] sm:$0xff] %vm101, %v627
  %644 = vst.msk [vmem:[%s4 + $0x78] sm:$0xff] %vm101, %v628
  // Predicated region
  $region18: #{my_resnet_forward.13} parent=0 // pred_check
    _
  $region19: #{my_resnet_forward.13} parent=0 // pred_check_branch
    %646 = sbr.rel (0) target = $region21
  $region20: #{my_resnet_forward.13} parent=0 // pred_region
    _
  $region21: #{my_resnet_forward.13} parent=0 // pred_fallthru
    _
  // Predicated region
  $region22: #{my_resnet_forward.13} parent=0 // pred_check
    _
  $region23: #{my_resnet_forward.13} parent=0 // pred_check_branch
    %648 = sbr.rel (0) target = $region25
  $region24: #{my_resnet_forward.13} parent=0 // pred_region
    _
  $region25: #{my_resnet_forward.13} parent=0 // pred_fallthru
    _

// kernel: my_resnet_forward.14
$region0: #{my_resnet_forward.14}
  #allocation0 [shape = 'u32[]', space=smem, size = 0x4, offset = 0x4, fixed_abs, tag = 'smem constant byte address 0x4 - core index']
  #allocation1 [shape = 'u32[144,128]{1,0:T(1,128)}', space=vmem, size = 0x12000, scoped, tag = 'internal scratch']
  %s0 = inlined_call_operand.vmem [shape: f32[128,288], index: 0, kind: input, shape index: {}]
  %s1 = inlined_call_operand.vmem [shape: f32[288,32], index: 1, kind: input, shape index: {}]
  %s2 = inlined_call_operand.vmem [shape: f32[1,32], index: 2, kind: input, shape index: {}]
  %s3 = inlined_call_operand.vmem [shape: f32[1,32], index: 3, kind: input, shape index: {}]
  %s4 = inlined_call_operand.vmem [shape: f32[128,32], index: 4, kind: input, shape index: {}]
  %s5 = inlined_call_operand.vmem [shape: f32[128,32], index: 5, kind: output, shape index: {}]
  %s6 = sld [smem:[#allocation0]]
  $region30: #{my_resnet_forward.14} parent=0
    _
  %s8 = ssub.s32 1, %s6
  %s9 = scalar_select 0, %s8, %s6
  // Predicated region
  $region2: #{my_resnet_forward.14} parent=0 // pred_check
    _
  $region3: #{my_resnet_forward.14} parent=0 // pred_check_branch
    %11 = sbr.rel (0) target = $region5
  $region4: #{my_resnet_forward.14} parent=0 // pred_region
    _
  $region5: #{my_resnet_forward.14} parent=0 // pred_fallthru
    _
  // Predicated region
  $region6: #{my_resnet_forward.14} parent=0 // pred_check
    _
  $region7: #{my_resnet_forward.14} parent=0 // pred_check_branch
    %13 = sbr.rel (0) target = $region9
  $region8: #{my_resnet_forward.14} parent=0 // pred_region
    _
  $region9: #{my_resnet_forward.14} parent=0 // pred_fallthru
    _
  // Predicated region
  $region10: #{my_resnet_forward.14} parent=0 // pred_check
    _
  $region11: #{my_resnet_forward.14} parent=0 // pred_check_branch
    %15 = sbr.rel (0) target = $region13
  $region12: #{my_resnet_forward.14} parent=0 // pred_region
    _
  $region13: #{my_resnet_forward.14} parent=0 // pred_fallthru
    _
  // Predicated region
  $region14: #{my_resnet_forward.14} parent=0 // pred_check
    _
  $region15: #{my_resnet_forward.14} parent=0 // pred_check_branch
    %17 = sbr.rel (0) target = $region17
  $region16: #{my_resnet_forward.14} parent=0 // pred_region
    _
  $region17: #{my_resnet_forward.14} parent=0 // pred_fallthru
    _
  // Predicated region
  $region18: #{my_resnet_forward.14} parent=0 // pred_check
    _
  $region19: #{my_resnet_forward.14} parent=0 // pred_check_branch
    %19 = sbr.rel (0) target = $region21
  $region20: #{my_resnet_forward.14} parent=0 // pred_region
    _
  $region21: #{my_resnet_forward.14} parent=0 // pred_fallthru
    _
  %v20 = vld [vmem:[%s0] sm:$0xff]
  %v21 = vld [vmem:[%s0 + $0x8] sm:$0xff]
  %v22 = vld [vmem:[%s0 + $0x10] sm:$0xff]
  %v23 = vld [vmem:[%s0 + $0x18] sm:$0xff]
  %v24 = vld [vmem:[%s0 + $0x20] sm:$0xff]
  %v25 = vld [vmem:[%s0 + $0x28] sm:$0xff]
  %v26 = vld [vmem:[%s0 + $0x30] sm:$0xff]
  %v27 = vld [vmem:[%s0 + $0x38] sm:$0xff]
  %v28 = vld [vmem:[%s0 + $0x40] sm:$0xff]
  %v29 = vld [vmem:[%s0 + $0x48] sm:$0xff]
  %v30 = vld [vmem:[%s0 + $0x50] sm:$0xff]
  %v31 = vld [vmem:[%s0 + $0x58] sm:$0xff]
  %v32 = vld [vmem:[%s0 + $0x60] sm:$0xff]
  %v33 = vld [vmem:[%s0 + $0x68] sm:$0xff]
  %v34 = vld [vmem:[%s0 + $0x70] sm:$0xff]
  %v35 = vld [vmem:[%s0 + $0x78] sm:$0xff]
  %v36 = vld [vmem:[%s0 + $0x80] sm:$0xff]
  %v37 = vld [vmem:[%s0 + $0x88] sm:$0xff]
  %v38 = vld [vmem:[%s0 + $0x90] sm:$0xff]
  %v39 = vld [vmem:[%s0 + $0x98] sm:$0xff]
  %v40 = vld [vmem:[%s0 + $0xa0] sm:$0xff]
  %v41 = vld [vmem:[%s0 + $0xa8] sm:$0xff]
  %v42 = vld [vmem:[%s0 + $0xb0] sm:$0xff]
  %v43 = vld [vmem:[%s0 + $0xb8] sm:$0xff]
  %v44 = vld [vmem:[%s0 + $0xc0] sm:$0xff]
  %v45 = vld [vmem:[%s0 + $0xc8] sm:$0xff]
  %v46 = vld [vmem:[%s0 + $0xd0] sm:$0xff]
  %v47 = vld [vmem:[%s0 + $0xd8] sm:$0xff]
  %v48 = vld [vmem:[%s0 + $0xe0] sm:$0xff]
  %v49 = vld [vmem:[%s0 + $0xe8] sm:$0xff]
  %v50 = vld [vmem:[%s0 + $0xf0] sm:$0xff]
  %v51 = vld [vmem:[%s0 + $0xf8] sm:$0xff]
  %v52 = vld [vmem:[%s0 + $0x100] sm:$0xff]
  %v53 = vld [vmem:[%s0 + $0x108] sm:$0xff]
  %v54 = vld [vmem:[%s0 + $0x110] sm:$0xff]
  %v55 = vld [vmem:[%s0 + $0x118] sm:$0xff]
  %v56 = vld [vmem:[%s0 + $0x120] sm:$0xff]
  %v57 = vld [vmem:[%s0 + $0x128] sm:$0xff]
  %v58 = vld [vmem:[%s0 + $0x130] sm:$0xff]
  %v59 = vld [vmem:[%s0 + $0x138] sm:$0xff]
  %v60 = vld [vmem:[%s0 + $0x140] sm:$0xff]
  %v61 = vld [vmem:[%s0 + $0x148] sm:$0xff]
  %v62 = vld [vmem:[%s0 + $0x150] sm:$0xff]
  %v63 = vld [vmem:[%s0 + $0x158] sm:$0xff]
  %v64 = vld [vmem:[%s0 + $0x160] sm:$0xff]
  %v65 = vld [vmem:[%s0 + $0x168] sm:$0xff]
  %v66 = vld [vmem:[%s0 + $0x170] sm:$0xff]
  %v67 = vld [vmem:[%s0 + $0x178] sm:$0xff]
  %v68 = vld [vmem:[%s1] sm:$0xff]
  %v69 = vld [vmem:[%s1 + $0x8] sm:$0xff]
  %v70 = vld [vmem:[%s1 + $0x10] sm:$0xff]
  %v71 = vld [vmem:[%s1 + $0x18] sm:$0xff]
  %v72 = vld [vmem:[%s1 + $0x20] sm:$0xff]
  %v73 = vld [vmem:[%s1 + $0x28] sm:$0xff]
  %v74 = vld [vmem:[%s1 + $0x30] sm:$0xff]
  %v75 = vld [vmem:[%s1 + $0x38] sm:$0xff]
  %v76 = vld [vmem:[%s1 + $0x40] sm:$0xff]
  %v77 = vld [vmem:[%s1 + $0x48] sm:$0xff]
  %v78 = vld [vmem:[%s1 + $0x50] sm:$0xff]
  %v79 = vld [vmem:[%s1 + $0x58] sm:$0xff]
  %v80 = vld [vmem:[%s1 + $0x60] sm:$0xff]
  %v81 = vld [vmem:[%s1 + $0x68] sm:$0xff]
  %v82 = vld [vmem:[%s1 + $0x70] sm:$0xff]
  %v83 = vld [vmem:[%s1 + $0x78] sm:$0xff]
  %v84 = vld [vmem:[%s1 + $0x80] sm:$0xff]
  %v85 = vld [vmem:[%s1 + $0x88] sm:$0xff]
  %v86 = vld [vmem:[%s1 + $0x90] sm:$0xff]
  %v87 = vld [vmem:[%s1 + $0x98] sm:$0xff]
  %v88 = vld [vmem:[%s1 + $0xa0] sm:$0xff]
  %v89 = vld [vmem:[%s1 + $0xa8] sm:$0xff]
  %v90 = vld [vmem:[%s1 + $0xb0] sm:$0xff]
  %v91 = vld [vmem:[%s1 + $0xb8] sm:$0xff]
  %v92 = vld [vmem:[%s1 + $0xc0] sm:$0xff]
  %v93 = vld [vmem:[%s1 + $0xc8] sm:$0xff]
  %v94 = vld [vmem:[%s1 + $0xd0] sm:$0xff]
  %v95 = vld [vmem:[%s1 + $0xd8] sm:$0xff]
  %v96 = vld [vmem:[%s1 + $0xe0] sm:$0xff]
  %v97 = vld [vmem:[%s1 + $0xe8] sm:$0xff]
  %v98 = vld [vmem:[%s1 + $0xf0] sm:$0xff]
  %v99 = vld [vmem:[%s1 + $0xf8] sm:$0xff]
  %v100 = vld [vmem:[%s1 + $0x100] sm:$0xff]
  %v101 = vld [vmem:[%s1 + $0x108] sm:$0xff]
  %v102 = vld [vmem:[%s1 + $0x110] sm:$0xff]
  %v103 = vld [vmem:[%s1 + $0x118] sm:$0xff]
  %vm104 = vcmask 261120
  %v106 = vsel %vm104, %v22, 0
  %v109 = vsel %vm104, %v25, 0
  %v112 = vsel %vm104, %v28, 0
  %v115 = vsel %vm104, %v31, 0
  %v118 = vsel %vm104, %v34, 0
  %v121 = vsel %vm104, %v37, 0
  %v124 = vsel %vm104, %v40, 0
  %v127 = vsel %vm104, %v43, 0
  %v130 = vsel %vm104, %v46, 0
  %v133 = vsel %vm104, %v49, 0
  %v136 = vsel %vm104, %v52, 0
  %v139 = vsel %vm104, %v55, 0
  %v142 = vsel %vm104, %v58, 0
  %v145 = vsel %vm104, %v61, 0
  %v148 = vsel %vm104, %v64, 0
  %v151 = vsel %vm104, %v67, 0
  %153 = vmatprep.subr.mxu0 0.0
  %154 = vmatpush1.msra.mxu0 %v83
  %155 = vmatprep.subr.mxu0 0.0
  %156 = vmatpush1.msra.mxu0 %v82
  %157 = vmatprep.subr.mxu0 0.0
  %158 = vmatpush1.msra.mxu0 %v81
  %159 = vmatprep.subr.mxu0 0.0
  %160 = vmatpush1.msra.mxu0 %v80
  %161 = vmatprep.subr.mxu0 0.0
  %162 = vmatpush1.msra.mxu0 %v79
  %163 = vmatprep.subr.mxu0 0.0
  %164 = vmatpush1.msra.mxu0 %v78
  %165 = vmatprep.subr.mxu0 0.0
  %166 = vmatpush1.msra.mxu0 %v77
  %167 = vmatprep.subr.mxu0 0.0
  %168 = vmatpush1.msra.mxu0 %v76
  %169 = vmatprep.subr.mxu0 0.0
  %170 = vmatpush1.msra.mxu0 %v75
  %171 = vmatprep.subr.mxu0 0.0
  %172 = vmatpush1.msra.mxu0 %v74
  %173 = vmatprep.subr.mxu0 0.0
  %174 = vmatpush1.msra.mxu0 %v73
  %175 = vmatprep.subr.mxu0 0.0
  %176 = vmatpush1.msra.mxu0 %v72
  %177 = vmatprep.subr.mxu0 0.0
  %178 = vmatpush1.msra.mxu0 %v71
  %179 = vmatprep.subr.mxu0 0.0
  %180 = vmatpush1.msra.mxu0 %v70
  %181 = vmatprep.subr.mxu0 0.0
  %182 = vmatpush1.msra.mxu0 %v69
  %183 = vmatprep.subr.mxu0 0.0
  %184 = vmatpush1.msra.mxu0 %v68
  %185 = vmatprep.subr.mxu0 0.0
  %186 = vmatpush2.msra.mxu0 %v99
  %187 = vmatprep.subr.mxu0 0.0
  %188 = vmatpush2.msra.mxu0 %v98
  %189 = vmatprep.subr.mxu0 0.0
  %190 = vmatpush2.msra.mxu0 %v97
  %191 = vmatprep.subr.mxu0 0.0
  %192 = vmatpush2.msra.mxu0 %v96
  %193 = vmatprep.subr.mxu0 0.0
  %194 = vmatpush2.msra.mxu0 %v95
  %195 = vmatprep.subr.mxu0 0.0
  %196 = vmatpush2.msra.mxu0 %v94
  %197 = vmatprep.subr.mxu0 0.0
  %198 = vmatpush2.msra.mxu0 %v93
  %199 = vmatprep.subr.mxu0 0.0
  %200 = vmatpush2.msra.mxu0 %v92
  %201 = vmatprep.subr.mxu0 0.0
  %202 = vmatpush2.msra.mxu0 %v91
  %203 = vmatprep.subr.mxu0 0.0
  %204 = vmatpush2.msra.mxu0 %v90
  %205 = vmatprep.subr.mxu0 0.0
  %206 = vmatpush2.msra.mxu0 %v89
  %207 = vmatprep.subr.mxu0 0.0
  %208 = vmatpush2.msra.mxu0 %v88
  %209 = vmatprep.subr.mxu0 0.0
  %210 = vmatpush2.msra.mxu0 %v87
  %211 = vmatprep.subr.mxu0 0.0
  %212 = vmatpush2.msra.mxu0 %v86
  %213 = vmatprep.subr.mxu0 0.0
  %214 = vmatpush2.msra.mxu0 %v85
  %215 = vmatprep.subr.mxu0 0.0
  %216 = vmatpush2.msra.mxu0 %v84
  %217 = vmatprep.mubr.f32.mxu0 %v21
  %218 = vmatmul.mubr.f32.gmra.mxu0 %v20
  %v219 = vpop.f32.mrf.mxu0
  %v220 = vadd.f32 0.0, %v219
  %v221 = vpop.f32.mrf.mxu0
  %222 = vmatprep.mubr.f32.mxu0 %v24
  %223 = vmatmul.mubr.f32.gmra.mxu0 %v23
  %v224 = vpop.f32.mrf.mxu0
  %v225 = vadd.f32 0.0, %v224
  %v226 = vpop.f32.mrf.mxu0
  %227 = vmatprep.mubr.f32.mxu0 %v27
  %228 = vmatmul.mubr.f32.gmra.mxu0 %v26
  %v229 = vpop.f32.mrf.mxu0
  %v230 = vadd.f32 0.0, %v229
  %v231 = vpop.f32.mrf.mxu0
  %232 = vmatprep.mubr.f32.mxu0 %v30
  %233 = vmatmul.mubr.f32.gmra.mxu0 %v29
  %v234 = vpop.f32.mrf.mxu0
  %v235 = vadd.f32 0.0, %v234
  %v236 = vpop.f32.mrf.mxu0
  %237 = vmatprep.mubr.f32.mxu0 %v33
  %238 = vmatmul.mubr.f32.gmra.mxu0 %v32
  %v239 = vpop.f32.mrf.mxu0
  %v240 = vadd.f32 0.0, %v239
  %v241 = vpop.f32.mrf.mxu0
  %242 = vmatprep.mubr.f32.mxu0 %v36
  %243 = vmatmul.mubr.f32.gmra.mxu0 %v35
  %v244 = vpop.f32.mrf.mxu0
  %v245 = vadd.f32 0.0, %v244
  %v246 = vpop.f32.mrf.mxu0
  %247 = vmatprep.mubr.f32.mxu0 %v39
  %248 = vmatmul.mubr.f32.gmra.mxu0 %v38
  %v249 = vpop.f32.mrf.mxu0
  %v250 = vadd.f32 0.0, %v249
  %v251 = vpop.f32.mrf.mxu0
  %252 = vmatprep.mubr.f32.mxu0 %v42
  %253 = vmatmul.mubr.f32.gmra.mxu0 %v41
  %v254 = vpop.f32.mrf.mxu0
  %v255 = vadd.f32 0.0, %v254
  %v256 = vpop.f32.mrf.mxu0
  %257 = vmatprep.mubr.f32.mxu0 %v45
  %258 = vmatmul.mubr.f32.gmra.mxu0 %v44
  %v259 = vpop.f32.mrf.mxu0
  %v260 = vadd.f32 0.0, %v259
  %v261 = vpop.f32.mrf.mxu0
  %262 = vmatprep.mubr.f32.mxu0 %v48
  %263 = vmatmul.mubr.f32.gmra.mxu0 %v47
  %v264 = vpop.f32.mrf.mxu0
  %v265 = vadd.f32 0.0, %v264
  %v266 = vpop.f32.mrf.mxu0
  %267 = vmatprep.mubr.f32.mxu0 %v51
  %268 = vmatmul.mubr.f32.gmra.mxu0 %v50
  %v269 = vpop.f32.mrf.mxu0
  %v270 = vadd.f32 0.0, %v269
  %v271 = vpop.f32.mrf.mxu0
  %272 = vmatprep.mubr.f32.mxu0 %v54
  %273 = vmatmul.mubr.f32.gmra.mxu0 %v53
  %v274 = vpop.f32.mrf.mxu0
  %v275 = vadd.f32 0.0, %v274
  %v276 = vpop.f32.mrf.mxu0
  %277 = vmatprep.mubr.f32.mxu0 %v57
  %278 = vmatmul.mubr.f32.gmra.mxu0 %v56
  %v279 = vpop.f32.mrf.mxu0
  %v280 = vadd.f32 0.0, %v279
  %v281 = vpop.f32.mrf.mxu0
  %282 = vmatprep.mubr.f32.mxu0 %v60
  %283 = vmatmul.mubr.f32.gmra.mxu0 %v59
  %v284 = vpop.f32.mrf.mxu0
  %v285 = vadd.f32 0.0, %v284
  %v286 = vpop.f32.mrf.mxu0
  %287 = vmatprep.mubr.f32.mxu0 %v63
  %288 = vmatmul.mubr.f32.gmra.mxu0 %v62
  %v289 = vpop.f32.mrf.mxu0
  %v290 = vadd.f32 0.0, %v289
  %v291 = vpop.f32.mrf.mxu0
  %292 = vmatprep.mubr.f32.mxu0 %v66
  %293 = vmatmul.mubr.f32.gmra.mxu0 %v65
  %v294 = vpop.f32.mrf.mxu0
  %v295 = vadd.f32 0.0, %v294
  %v296 = vpop.f32.mrf.mxu0
  %297 = vdwg.mxu0
  %298 = vmatprep.subr.mxu0 0.0
  %299 = vmatpush1.msra.mxu0 0.0
  %300 = vmatprep.subr.mxu0 0.0
  %301 = vmatpush1.msra.mxu0 0.0
  %302 = vmatprep.subr.mxu0 0.0
  %303 = vmatpush1.msra.mxu0 0.0
  %304 = vmatprep.subr.mxu0 0.0
  %305 = vmatpush1.msra.mxu0 0.0
  %306 = vmatprep.subr.mxu0 0.0
  %307 = vmatpush1.msra.mxu0 0.0
  %308 = vmatprep.subr.mxu0 0.0
  %309 = vmatpush1.msra.mxu0 0.0
  %310 = vmatprep.subr.mxu0 0.0
  %311 = vmatpush1.msra.mxu0 0.0
  %312 = vmatprep.subr.mxu0 0.0
  %313 = vmatpush1.msra.mxu0 0.0
  %314 = vmatprep.subr.mxu0 0.0
  %315 = vmatpush1.msra.mxu0 0.0
  %316 = vmatprep.subr.mxu0 0.0
  %317 = vmatpush1.msra.mxu0 0.0
  %318 = vmatprep.subr.mxu0 0.0
  %319 = vmatpush1.msra.mxu0 0.0
  %320 = vmatprep.subr.mxu0 0.0
  %321 = vmatpush1.msra.mxu0 0.0
  %322 = vmatprep.subr.mxu0 0.0
  %323 = vmatpush1.msra.mxu0 %v103
  %324 = vmatprep.subr.mxu0 0.0
  %325 = vmatpush1.msra.mxu0 %v102
  %326 = vmatprep.subr.mxu0 0.0
  %327 = vmatpush1.msra.mxu0 %v101
  %328 = vmatprep.subr.mxu0 0.0
  %329 = vmatpush1.msra.mxu0 %v100
  %330 = vmatprep.subr.mxu0 0.0
  %331 = vmatpush2.msra.mxu0 0.0
  %332 = vmatprep.subr.mxu0 0.0
  %333 = vmatpush2.msra.mxu0 0.0
  %334 = vmatprep.subr.mxu0 0.0
  %335 = vmatpush2.msra.mxu0 0.0
  %336 = vmatprep.subr.mxu0 0.0
  %337 = vmatpush2.msra.mxu0 0.0
  %338 = vmatprep.subr.mxu0 0.0
  %339 = vmatpush2.msra.mxu0 0.0
  %340 = vmatprep.subr.mxu0 0.0
  %341 = vmatpush2.msra.mxu0 0.0
  %342 = vmatprep.subr.mxu0 0.0
  %343 = vmatpush2.msra.mxu0 0.0
  %344 = vmatprep.subr.mxu0 0.0
  %345 = vmatpush2.msra.mxu0 0.0
  %346 = vmatprep.subr.mxu0 0.0
  %347 = vmatpush2.msra.mxu0 0.0
  %348 = vmatprep.subr.mxu0 0.0
  %349 = vmatpush2.msra.mxu0 0.0
  %350 = vmatprep.subr.mxu0 0.0
  %351 = vmatpush2.msra.mxu0 0.0
  %352 = vmatprep.subr.mxu0 0.0
  %353 = vmatpush2.msra.mxu0 0.0
  %354 = vmatprep.subr.mxu0 0.0
  %355 = vmatpush2.msra.mxu0 0.0
  %356 = vmatprep.subr.mxu0 0.0
  %357 = vmatpush2.msra.mxu0 0.0
  %358 = vmatprep.subr.mxu0 0.0
  %359 = vmatpush2.msra.mxu0 0.0
  %360 = vmatprep.subr.mxu0 0.0
  %361 = vmatpush2.msra.mxu0 0.0
  %362 = vmatprep.mubr.f32.mxu0 0.0
  %363 = vmatmul.mubr.f32.gmra.mxu0 %v106
  %v364 = vpop.f32.mrf.mxu0
  %v365 = vadd.f32 %v220, %v364
  %v366 = vpop.f32.mrf.mxu0
  %367 = vmatprep.mubr.f32.mxu0 0.0
  %368 = vmatmul.mubr.f32.gmra.mxu0 %v109
  %v369 = vpop.f32.mrf.mxu0
  %v370 = vadd.f32 %v225, %v369
  %v371 = vpop.f32.mrf.mxu0
  %372 = vmatprep.mubr.f32.mxu0 0.0
  %373 = vmatmul.mubr.f32.gmra.mxu0 %v112
  %v374 = vpop.f32.mrf.mxu0
  %v375 = vadd.f32 %v230, %v374
  %v376 = vpop.f32.mrf.mxu0
  %377 = vmatprep.mubr.f32.mxu0 0.0
  %378 = vmatmul.mubr.f32.gmra.mxu0 %v115
  %v379 = vpop.f32.mrf.mxu0
  %v380 = vadd.f32 %v235, %v379
  %v381 = vpop.f32.mrf.mxu0
  %382 = vmatprep.mubr.f32.mxu0 0.0
  %383 = vmatmul.mubr.f32.gmra.mxu0 %v118
  %v384 = vpop.f32.mrf.mxu0
  %v385 = vadd.f32 %v240, %v384
  %v386 = vpop.f32.mrf.mxu0
  %387 = vmatprep.mubr.f32.mxu0 0.0
  %388 = vmatmul.mubr.f32.gmra.mxu0 %v121
  %v389 = vpop.f32.mrf.mxu0
  %v390 = vadd.f32 %v245, %v389
  %v391 = vpop.f32.mrf.mxu0
  %392 = vmatprep.mubr.f32.mxu0 0.0
  %393 = vmatmul.mubr.f32.gmra.mxu0 %v124
  %v394 = vpop.f32.mrf.mxu0
  %v395 = vadd.f32 %v250, %v394
  %v396 = vpop.f32.mrf.mxu0
  %397 = vmatprep.mubr.f32.mxu0 0.0
  %398 = vmatmul.mubr.f32.gmra.mxu0 %v127
  %v399 = vpop.f32.mrf.mxu0
  %v400 = vadd.f32 %v255, %v399
  %v401 = vpop.f32.mrf.mxu0
  %402 = vmatprep.mubr.f32.mxu0 0.0
  %403 = vmatmul.mubr.f32.gmra.mxu0 %v130
  %v404 = vpop.f32.mrf.mxu0
  %v405 = vadd.f32 %v260, %v404
  %v406 = vpop.f32.mrf.mxu0
  %407 = vmatprep.mubr.f32.mxu0 0.0
  %408 = vmatmul.mubr.f32.gmra.mxu0 %v133
  %v409 = vpop.f32.mrf.mxu0
  %v410 = vadd.f32 %v265, %v409
  %v411 = vpop.f32.mrf.mxu0
  %412 = vmatprep.mubr.f32.mxu0 0.0
  %413 = vmatmul.mubr.f32.gmra.mxu0 %v136
  %v414 = vpop.f32.mrf.mxu0
  %v415 = vadd.f32 %v270, %v414
  %v416 = vpop.f32.mrf.mxu0
  %417 = vmatprep.mubr.f32.mxu0 0.0
  %418 = vmatmul.mubr.f32.gmra.mxu0 %v139
  %v419 = vpop.f32.mrf.mxu0
  %v420 = vadd.f32 %v275, %v419
  %v421 = vpop.f32.mrf.mxu0
  %422 = vmatprep.mubr.f32.mxu0 0.0
  %423 = vmatmul.mubr.f32.gmra.mxu0 %v142
  %v424 = vpop.f32.mrf.mxu0
  %v425 = vadd.f32 %v280, %v424
  %v426 = vpop.f32.mrf.mxu0
  %427 = vmatprep.mubr.f32.mxu0 0.0
  %428 = vmatmul.mubr.f32.gmra.mxu0 %v145
  %v429 = vpop.f32.mrf.mxu0
  %v430 = vadd.f32 %v285, %v429
  %v431 = vpop.f32.mrf.mxu0
  %432 = vmatprep.mubr.f32.mxu0 0.0
  %433 = vmatmul.mubr.f32.gmra.mxu0 %v148
  %v434 = vpop.f32.mrf.mxu0
  %v435 = vadd.f32 %v290, %v434
  %v436 = vpop.f32.mrf.mxu0
  %437 = vmatprep.mubr.f32.mxu0 0.0
  %438 = vmatmul.mubr.f32.gmra.mxu0 %v151
  %v439 = vpop.f32.mrf.mxu0
  %v440 = vadd.f32 %v295, %v439
  %v441 = vpop.f32.mrf.mxu0
  %442 = vdwg.mxu0
  %v443 = vld [vmem:[%s2] sm:$0x1]
  %v444 = vld [vmem:[%s3] sm:$0x1]
  %v445 = vld [vmem:[%s4] sm:$0xff]
  %v446 = vld [vmem:[%s4 + $0x8] sm:$0xff]
  %v447 = vld [vmem:[%s4 + $0x10] sm:$0xff]
  %v448 = vld [vmem:[%s4 + $0x18] sm:$0xff]
  %v449 = vld [vmem:[%s4 + $0x20] sm:$0xff]
  %v450 = vld [vmem:[%s4 + $0x28] sm:$0xff]
  %v451 = vld [vmem:[%s4 + $0x30] sm:$0xff]
  %v452 = vld [vmem:[%s4 + $0x38] sm:$0xff]
  %v453 = vld [vmem:[%s4 + $0x40] sm:$0xff]
  %v454 = vld [vmem:[%s4 + $0x48] sm:$0xff]
  %v455 = vld [vmem:[%s4 + $0x50] sm:$0xff]
  %v456 = vld [vmem:[%s4 + $0x58] sm:$0xff]
  %v457 = vld [vmem:[%s4 + $0x60] sm:$0xff]
  %v458 = vld [vmem:[%s4 + $0x68] sm:$0xff]
  %v459 = vld [vmem:[%s4 + $0x70] sm:$0xff]
  %v460 = vld [vmem:[%s4 + $0x78] sm:$0xff]
  %v461 = vsel %vm104, %v365, 0.0
  %v462 = vsel %vm104, %v370, 0.0
  %v463 = vadd.f32 %v461, %v462
  %v464 = vsel %vm104, %v375, 0.0
  %v465 = vadd.f32 %v463, %v464
  %v466 = vsel %vm104, %v380, 0.0
  %v467 = vadd.f32 %v465, %v466
  %v468 = vsel %vm104, %v385, 0.0
  %v469 = vadd.f32 %v467, %v468
  %v470 = vsel %vm104, %v390, 0.0
  %v471 = vadd.f32 %v469, %v470
  %v472 = vsel %vm104, %v395, 0.0
  %v473 = vadd.f32 %v471, %v472
  %v474 = vsel %vm104, %v400, 0.0
  %v475 = vadd.f32 %v473, %v474
  %v476 = vsel %vm104, %v405, 0.0
  %v477 = vadd.f32 %v475, %v476
  %v478 = vsel %vm104, %v410, 0.0
  %v479 = vadd.f32 %v477, %v478
  %v480 = vsel %vm104, %v415, 0.0
  %v481 = vadd.f32 %v479, %v480
  %v482 = vsel %vm104, %v420, 0.0
  %v483 = vadd.f32 %v481, %v482
  %v484 = vsel %vm104, %v425, 0.0
  %v485 = vadd.f32 %v483, %v484
  %v486 = vsel %vm104, %v430, 0.0
  %v487 = vadd.f32 %v485, %v486
  %v488 = vsel %vm104, %v435, 0.0
  %v489 = vadd.f32 %v487, %v488
  %v490 = vsel %vm104, %v440, 0.0
  %v491 = vadd.f32 %v489, %v490
  %v492 = vrot.slane %v491, 4
  %v493 = vadd.f32 %v491, %v492
  %v494 = vrot.slane %v493, 2
  %v495 = vadd.f32 %v493, %v494
  %v496 = vrot.slane %v495, 1
  %v497 = vadd.f32 %v495, %v496
  %v498 = vrcp.pop 128.0
  %v499 = vmul.f32 %v497, %v498
  %v500 = vsub.f32 %v365, %v499
  %v501 = vsub.f32 %v370, %v499
  %v502 = vsub.f32 %v375, %v499
  %v503 = vsub.f32 %v380, %v499
  %v504 = vsub.f32 %v385, %v499
  %v505 = vsub.f32 %v390, %v499
  %v506 = vsub.f32 %v395, %v499
  %v507 = vsub.f32 %v400, %v499
  %v508 = vsub.f32 %v405, %v499
  %v509 = vsub.f32 %v410, %v499
  %v510 = vsub.f32 %v415, %v499
  %v511 = vsub.f32 %v420, %v499
  %v512 = vsub.f32 %v425, %v499
  %v513 = vsub.f32 %v430, %v499
  %v514 = vsub.f32 %v435, %v499
  %v515 = vsub.f32 %v440, %v499
  %v516 = vmul.f32 %v500, %v500
  %v517 = vmul.f32 %v501, %v501
  %v518 = vmul.f32 %v502, %v502
  %v519 = vmul.f32 %v503, %v503
  %v520 = vmul.f32 %v504, %v504
  %v521 = vmul.f32 %v505, %v505
  %v522 = vmul.f32 %v506, %v506
  %v523 = vmul.f32 %v507, %v507
  %v524 = vmul.f32 %v508, %v508
  %v525 = vmul.f32 %v509, %v509
  %v526 = vmul.f32 %v510, %v510
  %v527 = vmul.f32 %v511, %v511
  %v528 = vmul.f32 %v512, %v512
  %v529 = vmul.f32 %v513, %v513
  %v530 = vmul.f32 %v514, %v514
  %v531 = vmul.f32 %v515, %v515
  %v532 = vsel %vm104, %v516, 0.0
  %v533 = vsel %vm104, %v517, 0.0
  %v534 = vadd.f32 %v532, %v533
  %v535 = vsel %vm104, %v518, 0.0
  %v536 = vadd.f32 %v534, %v535
  %v537 = vsel %vm104, %v519, 0.0
  %v538 = vadd.f32 %v536, %v537
  %v539 = vsel %vm104, %v520, 0.0
  %v540 = vadd.f32 %v538, %v539
  %v541 = vsel %vm104, %v521, 0.0
  %v542 = vadd.f32 %v540, %v541
  %v543 = vsel %vm104, %v522, 0.0
  %v544 = vadd.f32 %v542, %v543
  %v545 = vsel %vm104, %v523, 0.0
  %v546 = vadd.f32 %v544, %v545
  %v547 = vsel %vm104, %v524, 0.0
  %v548 = vadd.f32 %v546, %v547
  %v549 = vsel %vm104, %v525, 0.0
  %v550 = vadd.f32 %v548, %v549
  %v551 = vsel %vm104, %v526, 0.0
  %v552 = vadd.f32 %v550, %v551
  %v553 = vsel %vm104, %v527, 0.0
  %v554 = vadd.f32 %v552, %v553
  %v555 = vsel %vm104, %v528, 0.0
  %v556 = vadd.f32 %v554, %v555
  %v557 = vsel %vm104, %v529, 0.0
  %v558 = vadd.f32 %v556, %v557
  %v559 = vsel %vm104, %v530, 0.0
  %v560 = vadd.f32 %v558, %v559
  %v561 = vsel %vm104, %v531, 0.0
  %v562 = vadd.f32 %v560, %v561
  %v563 = vrot.slane %v562, 4
  %v564 = vadd.f32 %v562, %v563
  %v565 = vrot.slane %v564, 2
  %v566 = vadd.f32 %v564, %v565
  %v567 = vrot.slane %v566, 1
  %v568 = vadd.f32 %v566, %v567
  %v569 = vmul.f32 %v568, %v498
  %v570 = vadd.f32 %v569, 1e-05
  %v571 = vrsqrt.pop %v570
  %v572 = vmul.f32 %v500, %v571
  %v573 = vmul.f32 %v501, %v571
  %v574 = vmul.f32 %v502, %v571
  %v575 = vmul.f32 %v503, %v571
  %v576 = vmul.f32 %v504, %v571
  %v577 = vmul.f32 %v505, %v571
  %v578 = vmul.f32 %v506, %v571
  %v579 = vmul.f32 %v507, %v571
  %v580 = vmul.f32 %v508, %v571
  %v581 = vmul.f32 %v509, %v571
  %v582 = vmul.f32 %v510, %v571
  %v583 = vmul.f32 %v511, %v571
  %v584 = vmul.f32 %v512, %v571
  %v585 = vmul.f32 %v513, %v571
  %v586 = vmul.f32 %v514, %v571
  %v587 = vmul.f32 %v515, %v571
  %v589 = vlaneseq
  %v590 = vshrl.u32 %v589, 7
  %v591 = vsub.s32 0, %v590
  %v592 = vrot.slane %v443, %v591
  %v594 = vmul.f32 %v572, %v592
  %v595 = vmul.f32 %v573, %v592
  %v596 = vmul.f32 %v574, %v592
  %v597 = vmul.f32 %v575, %v592
  %v598 = vmul.f32 %v576, %v592
  %v599 = vmul.f32 %v577, %v592
  %v600 = vmul.f32 %v578, %v592
  %v601 = vmul.f32 %v579, %v592
  %v602 = vmul.f32 %v580, %v592
  %v603 = vmul.f32 %v581, %v592
  %v604 = vmul.f32 %v582, %v592
  %v605 = vmul.f32 %v583, %v592
  %v606 = vmul.f32 %v584, %v592
  %v607 = vmul.f32 %v585, %v592
  %v608 = vmul.f32 %v586, %v592
  %v609 = vmul.f32 %v587, %v592
  %v611 = vlaneseq
  %v612 = vshrl.u32 %v611, 7
  %v613 = vsub.s32 0, %v612
  %v614 = vrot.slane %v444, %v613
  %v616 = vadd.f32 %v594, %v614
  %v617 = vadd.f32 %v595, %v614
  %v618 = vadd.f32 %v596, %v614
  %v619 = vadd.f32 %v597, %v614
  %v620 = vadd.f32 %v598, %v614
  %v621 = vadd.f32 %v599, %v614
  %v622 = vadd.f32 %v600, %v614
  %v623 = vadd.f32 %v601, %v614
  %v624 = vadd.f32 %v602, %v614
  %v625 = vadd.f32 %v603, %v614
  %v626 = vadd.f32 %v604, %v614
  %v627 = vadd.f32 %v605, %v614
  %v628 = vadd.f32 %v606, %v614
  %v629 = vadd.f32 %v607, %v614
  %v630 = vadd.f32 %v608, %v614
  %v631 = vadd.f32 %v609, %v614
  %v632 = vadd.f32 %v616, %v445
  %v633 = vadd.f32 %v617, %v446
  %v634 = vadd.f32 %v618, %v447
  %v635 = vadd.f32 %v619, %v448
  %v636 = vadd.f32 %v620, %v449
  %v637 = vadd.f32 %v621, %v450
  %v638 = vadd.f32 %v622, %v451
  %v639 = vadd.f32 %v623, %v452
  %v640 = vadd.f32 %v624, %v453
  %v641 = vadd.f32 %v625, %v454
  %v642 = vadd.f32 %v626, %v455
  %v643 = vadd.f32 %v627, %v456
  %v644 = vadd.f32 %v628, %v457
  %v645 = vadd.f32 %v629, %v458
  %v646 = vadd.f32 %v630, %v459
  %v647 = vadd.f32 %v631, %v460
  %v648 = vmax.f32 %v632, 0.0
  %v649 = vmax.f32 %v633, 0.0
  %v650 = vmax.f32 %v634, 0.0
  %v651 = vmax.f32 %v635, 0.0
  %v652 = vmax.f32 %v636, 0.0
  %v653 = vmax.f32 %v637, 0.0
  %v654 = vmax.f32 %v638, 0.0
  %v655 = vmax.f32 %v639, 0.0
  %v656 = vmax.f32 %v640, 0.0
  %v657 = vmax.f32 %v641, 0.0
  %v658 = vmax.f32 %v642, 0.0
  %v659 = vmax.f32 %v643, 0.0
  %v660 = vmax.f32 %v644, 0.0
  %v661 = vmax.f32 %v645, 0.0
  %v662 = vmax.f32 %v646, 0.0
  %v663 = vmax.f32 %v647, 0.0
  %664 = vst.msk [vmem:[%s5] sm:$0xff] %vm104, %v648
  %665 = vst.msk [vmem:[%s5 + $0x8] sm:$0xff] %vm104, %v649
  %666 = vst.msk [vmem:[%s5 + $0x10] sm:$0xff] %vm104, %v650
  %667 = vst.msk [vmem:[%s5 + $0x18] sm:$0xff] %vm104, %v651
  %668 = vst.msk [vmem:[%s5 + $0x20] sm:$0xff] %vm104, %v652
  %669 = vst.msk [vmem:[%s5 + $0x28] sm:$0xff] %vm104, %v653
  %670 = vst.msk [vmem:[%s5 + $0x30] sm:$0xff] %vm104, %v654
  %671 = vst.msk [vmem:[%s5 + $0x38] sm:$0xff] %vm104, %v655
  %672 = vst.msk [vmem:[%s5 + $0x40] sm:$0xff] %vm104, %v656
  %673 = vst.msk [vmem:[%s5 + $0x48] sm:$0xff] %vm104, %v657
  %674 = vst.msk [vmem:[%s5 + $0x50] sm:$0xff] %vm104, %v658
  %675 = vst.msk [vmem:[%s5 + $0x58] sm:$0xff] %vm104, %v659
  %676 = vst.msk [vmem:[%s5 + $0x60] sm:$0xff] %vm104, %v660
  %677 = vst.msk [vmem:[%s5 + $0x68] sm:$0xff] %vm104, %v661
  %678 = vst.msk [vmem:[%s5 + $0x70] sm:$0xff] %vm104, %v662
  %679 = vst.msk [vmem:[%s5 + $0x78] sm:$0xff] %vm104, %v663
  // Predicated region
  $region22: #{my_resnet_forward.14} parent=0 // pred_check
    _
  $region23: #{my_resnet_forward.14} parent=0 // pred_check_branch
    %681 = sbr.rel (0) target = $region25
  $region24: #{my_resnet_forward.14} parent=0 // pred_region
    _
  $region25: #{my_resnet_forward.14} parent=0 // pred_fallthru
    _
  // Predicated region
  $region26: #{my_resnet_forward.14} parent=0 // pred_check
    _
  $region27: #{my_resnet_forward.14} parent=0 // pred_check_branch
    %683 = sbr.rel (0) target = $region29
  $region28: #{my_resnet_forward.14} parent=0 // pred_region
    _
  $region29: #{my_resnet_forward.14} parent=0 // pred_fallthru
    _

// kernel: my_resnet_forward.17
$region0: #{my_resnet_forward.17}
  #allocation0 [shape = 'u32[]', space=smem, size = 0x4, offset = 0x4, fixed_abs, tag = 'smem constant byte address 0x4 - core index']
  #allocation1 [shape = 'u32[144,128]{1,0:T(1,128)}', space=vmem, size = 0x12000, scoped, tag = 'internal scratch']
  %s0 = inlined_call_operand.vmem [shape: f32[32,288], index: 0, kind: input, shape index: {}]
  %s1 = inlined_call_operand.vmem [shape: f32[288,64], index: 1, kind: input, shape index: {}]
  %s2 = inlined_call_operand.vmem [shape: f32[1,64], index: 2, kind: input, shape index: {}]
  %s3 = inlined_call_operand.vmem [shape: f32[1,64], index: 3, kind: input, shape index: {}]
  %s4 = inlined_call_operand.vmem [shape: f32[32,64], index: 4, kind: output, shape index: {}]
  %s5 = sld [smem:[#allocation0]]
  $region26: #{my_resnet_forward.17} parent=0
    _
  %s7 = ssub.s32 1, %s5
  %s8 = scalar_select 0, %s7, %s5
  // Predicated region
  $region2: #{my_resnet_forward.17} parent=0 // pred_check
    _
  $region3: #{my_resnet_forward.17} parent=0 // pred_check_branch
    %10 = sbr.rel (0) target = $region5
  $region4: #{my_resnet_forward.17} parent=0 // pred_region
    _
  $region5: #{my_resnet_forward.17} parent=0 // pred_fallthru
    _
  // Predicated region
  $region6: #{my_resnet_forward.17} parent=0 // pred_check
    _
  $region7: #{my_resnet_forward.17} parent=0 // pred_check_branch
    %12 = sbr.rel (0) target = $region9
  $region8: #{my_resnet_forward.17} parent=0 // pred_region
    _
  $region9: #{my_resnet_forward.17} parent=0 // pred_fallthru
    _
  // Predicated region
  $region10: #{my_resnet_forward.17} parent=0 // pred_check
    _
  $region11: #{my_resnet_forward.17} parent=0 // pred_check_branch
    %14 = sbr.rel (0) target = $region13
  $region12: #{my_resnet_forward.17} parent=0 // pred_region
    _
  $region13: #{my_resnet_forward.17} parent=0 // pred_fallthru
    _
  // Predicated region
  $region14: #{my_resnet_forward.17} parent=0 // pred_check
    _
  $region15: #{my_resnet_forward.17} parent=0 // pred_check_branch
    %16 = sbr.rel (0) target = $region17
  $region16: #{my_resnet_forward.17} parent=0 // pred_region
    _
  $region17: #{my_resnet_forward.17} parent=0 // pred_fallthru
    _
  %v17 = vld [vmem:[%s0] sm:$0xff]
  %v18 = vld [vmem:[%s0 + $0x8] sm:$0xff]
  %v19 = vld [vmem:[%s0 + $0x10] sm:$0xff]
  %v20 = vld [vmem:[%s0 + $0x18] sm:$0xff]
  %v21 = vld [vmem:[%s0 + $0x20] sm:$0xff]
  %v22 = vld [vmem:[%s0 + $0x28] sm:$0xff]
  %v23 = vld [vmem:[%s0 + $0x30] sm:$0xff]
  %v24 = vld [vmem:[%s0 + $0x38] sm:$0xff]
  %v25 = vld [vmem:[%s0 + $0x40] sm:$0xff]
  %v26 = vld [vmem:[%s0 + $0x48] sm:$0xff]
  %v27 = vld [vmem:[%s0 + $0x50] sm:$0xff]
  %v28 = vld [vmem:[%s0 + $0x58] sm:$0xff]
  %v29 = vld [vmem:[%s1] sm:$0xff]
  %v30 = vld [vmem:[%s1 + $0x8] sm:$0xff]
  %v31 = vld [vmem:[%s1 + $0x10] sm:$0xff]
  %v32 = vld [vmem:[%s1 + $0x18] sm:$0xff]
  %v33 = vld [vmem:[%s1 + $0x20] sm:$0xff]
  %v34 = vld [vmem:[%s1 + $0x28] sm:$0xff]
  %v35 = vld [vmem:[%s1 + $0x30] sm:$0xff]
  %v36 = vld [vmem:[%s1 + $0x38] sm:$0xff]
  %v37 = vld [vmem:[%s1 + $0x40] sm:$0xff]
  %v38 = vld [vmem:[%s1 + $0x48] sm:$0xff]
  %v39 = vld [vmem:[%s1 + $0x50] sm:$0xff]
  %v40 = vld [vmem:[%s1 + $0x58] sm:$0xff]
  %v41 = vld [vmem:[%s1 + $0x60] sm:$0xff]
  %v42 = vld [vmem:[%s1 + $0x68] sm:$0xff]
  %v43 = vld [vmem:[%s1 + $0x70] sm:$0xff]
  %v44 = vld [vmem:[%s1 + $0x78] sm:$0xff]
  %v45 = vld [vmem:[%s1 + $0x80] sm:$0xff]
  %v46 = vld [vmem:[%s1 + $0x88] sm:$0xff]
  %v47 = vld [vmem:[%s1 + $0x90] sm:$0xff]
  %v48 = vld [vmem:[%s1 + $0x98] sm:$0xff]
  %v49 = vld [vmem:[%s1 + $0xa0] sm:$0xff]
  %v50 = vld [vmem:[%s1 + $0xa8] sm:$0xff]
  %v51 = vld [vmem:[%s1 + $0xb0] sm:$0xff]
  %v52 = vld [vmem:[%s1 + $0xb8] sm:$0xff]
  %v53 = vld [vmem:[%s1 + $0xc0] sm:$0xff]
  %v54 = vld [vmem:[%s1 + $0xc8] sm:$0xff]
  %v55 = vld [vmem:[%s1 + $0xd0] sm:$0xff]
  %v56 = vld [vmem:[%s1 + $0xd8] sm:$0xff]
  %v57 = vld [vmem:[%s1 + $0xe0] sm:$0xff]
  %v58 = vld [vmem:[%s1 + $0xe8] sm:$0xff]
  %v59 = vld [vmem:[%s1 + $0xf0] sm:$0xff]
  %v60 = vld [vmem:[%s1 + $0xf8] sm:$0xff]
  %v61 = vld [vmem:[%s1 + $0x100] sm:$0xff]
  %v62 = vld [vmem:[%s1 + $0x108] sm:$0xff]
  %v63 = vld [vmem:[%s1 + $0x110] sm:$0xff]
  %v64 = vld [vmem:[%s1 + $0x118] sm:$0xff]
  %vm65 = vcmask 261120
  %v67 = vsel %vm65, %v19, 0
  %v70 = vsel %vm65, %v22, 0
  %v73 = vsel %vm65, %v25, 0
  %v76 = vsel %vm65, %v28, 0
  %78 = vmatprep.subr.mxu0 0.0
  %79 = vmatpush1.msra.mxu0 %v44
  %80 = vmatprep.subr.mxu0 0.0
  %81 = vmatpush1.msra.mxu0 %v43
  %82 = vmatprep.subr.mxu0 0.0
  %83 = vmatpush1.msra.mxu0 %v42
  %84 = vmatprep.subr.mxu0 0.0
  %85 = vmatpush1.msra.mxu0 %v41
  %86 = vmatprep.subr.mxu0 0.0
  %87 = vmatpush1.msra.mxu0 %v40
  %88 = vmatprep.subr.mxu0 0.0
  %89 = vmatpush1.msra.mxu0 %v39
  %90 = vmatprep.subr.mxu0 0.0
  %91 = vmatpush1.msra.mxu0 %v38
  %92 = vmatprep.subr.mxu0 0.0
  %93 = vmatpush1.msra.mxu0 %v37
  %94 = vmatprep.subr.mxu0 0.0
  %95 = vmatpush1.msra.mxu0 %v36
  %96 = vmatprep.subr.mxu0 0.0
  %97 = vmatpush1.msra.mxu0 %v35
  %98 = vmatprep.subr.mxu0 0.0
  %99 = vmatpush1.msra.mxu0 %v34
  %100 = vmatprep.subr.mxu0 0.0
  %101 = vmatpush1.msra.mxu0 %v33
  %102 = vmatprep.subr.mxu0 0.0
  %103 = vmatpush1.msra.mxu0 %v32
  %104 = vmatprep.subr.mxu0 0.0
  %105 = vmatpush1.msra.mxu0 %v31
  %106 = vmatprep.subr.mxu0 0.0
  %107 = vmatpush1.msra.mxu0 %v30
  %108 = vmatprep.subr.mxu0 0.0
  %109 = vmatpush1.msra.mxu0 %v29
  %110 = vmatprep.subr.mxu0 0.0
  %111 = vmatpush2.msra.mxu0 %v60
  %112 = vmatprep.subr.mxu0 0.0
  %113 = vmatpush2.msra.mxu0 %v59
  %114 = vmatprep.subr.mxu0 0.0
  %115 = vmatpush2.msra.mxu0 %v58
  %116 = vmatprep.subr.mxu0 0.0
  %117 = vmatpush2.msra.mxu0 %v57
  %118 = vmatprep.subr.mxu0 0.0
  %119 = vmatpush2.msra.mxu0 %v56
  %120 = vmatprep.subr.mxu0 0.0
  %121 = vmatpush2.msra.mxu0 %v55
  %122 = vmatprep.subr.mxu0 0.0
  %123 = vmatpush2.msra.mxu0 %v54
  %124 = vmatprep.subr.mxu0 0.0
  %125 = vmatpush2.msra.mxu0 %v53
  %126 = vmatprep.subr.mxu0 0.0
  %127 = vmatpush2.msra.mxu0 %v52
  %128 = vmatprep.subr.mxu0 0.0
  %129 = vmatpush2.msra.mxu0 %v51
  %130 = vmatprep.subr.mxu0 0.0
  %131 = vmatpush2.msra.mxu0 %v50
  %132 = vmatprep.subr.mxu0 0.0
  %133 = vmatpush2.msra.mxu0 %v49
  %134 = vmatprep.subr.mxu0 0.0
  %135 = vmatpush2.msra.mxu0 %v48
  %136 = vmatprep.subr.mxu0 0.0
  %137 = vmatpush2.msra.mxu0 %v47
  %138 = vmatprep.subr.mxu0 0.0
  %139 = vmatpush2.msra.mxu0 %v46
  %140 = vmatprep.subr.mxu0 0.0
  %141 = vmatpush2.msra.mxu0 %v45
  %142 = vmatprep.mubr.f32.mxu0 %v18
  %143 = vmatmul.mubr.f32.gmra.mxu0 %v17
  %v144 = vpop.f32.mrf.mxu0
  %v145 = vadd.f32 0.0, %v144
  %v146 = vpop.f32.mrf.mxu0
  %147 = vmatprep.mubr.f32.mxu0 %v21
  %148 = vmatmul.mubr.f32.gmra.mxu0 %v20
  %v149 = vpop.f32.mrf.mxu0
  %v150 = vadd.f32 0.0, %v149
  %v151 = vpop.f32.mrf.mxu0
  %152 = vmatprep.mubr.f32.mxu0 %v24
  %153 = vmatmul.mubr.f32.gmra.mxu0 %v23
  %v154 = vpop.f32.mrf.mxu0
  %v155 = vadd.f32 0.0, %v154
  %v156 = vpop.f32.mrf.mxu0
  %157 = vmatprep.mubr.f32.mxu0 %v27
  %158 = vmatmul.mubr.f32.gmra.mxu0 %v26
  %v159 = vpop.f32.mrf.mxu0
  %v160 = vadd.f32 0.0, %v159
  %v161 = vpop.f32.mrf.mxu0
  %162 = vdwg.mxu0
  %163 = vmatprep.subr.mxu0 0.0
  %164 = vmatpush1.msra.mxu0 0.0
  %165 = vmatprep.subr.mxu0 0.0
  %166 = vmatpush1.msra.mxu0 0.0
  %167 = vmatprep.subr.mxu0 0.0
  %168 = vmatpush1.msra.mxu0 0.0
  %169 = vmatprep.subr.mxu0 0.0
  %170 = vmatpush1.msra.mxu0 0.0
  %171 = vmatprep.subr.mxu0 0.0
  %172 = vmatpush1.msra.mxu0 0.0
  %173 = vmatprep.subr.mxu0 0.0
  %174 = vmatpush1.msra.mxu0 0.0
  %175 = vmatprep.subr.mxu0 0.0
  %176 = vmatpush1.msra.mxu0 0.0
  %177 = vmatprep.subr.mxu0 0.0
  %178 = vmatpush1.msra.mxu0 0.0
  %179 = vmatprep.subr.mxu0 0.0
  %180 = vmatpush1.msra.mxu0 0.0
  %181 = vmatprep.subr.mxu0 0.0
  %182 = vmatpush1.msra.mxu0 0.0
  %183 = vmatprep.subr.mxu0 0.0
  %184 = vmatpush1.msra.mxu0 0.0
  %185 = vmatprep.subr.mxu0 0.0
  %186 = vmatpush1.msra.mxu0 0.0
  %187 = vmatprep.subr.mxu0 0.0
  %188 = vmatpush1.msra.mxu0 %v64
  %189 = vmatprep.subr.mxu0 0.0
  %190 = vmatpush1.msra.mxu0 %v63
  %191 = vmatprep.subr.mxu0 0.0
  %192 = vmatpush1.msra.mxu0 %v62
  %193 = vmatprep.subr.mxu0 0.0
  %194 = vmatpush1.msra.mxu0 %v61
  %195 = vmatprep.subr.mxu0 0.0
  %196 = vmatpush2.msra.mxu0 0.0
  %197 = vmatprep.subr.mxu0 0.0
  %198 = vmatpush2.msra.mxu0 0.0
  %199 = vmatprep.subr.mxu0 0.0
  %200 = vmatpush2.msra.mxu0 0.0
  %201 = vmatprep.subr.mxu0 0.0
  %202 = vmatpush2.msra.mxu0 0.0
  %203 = vmatprep.subr.mxu0 0.0
  %204 = vmatpush2.msra.mxu0 0.0
  %205 = vmatprep.subr.mxu0 0.0
  %206 = vmatpush2.msra.mxu0 0.0
  %207 = vmatprep.subr.mxu0 0.0
  %208 = vmatpush2.msra.mxu0 0.0
  %209 = vmatprep.subr.mxu0 0.0
  %210 = vmatpush2.msra.mxu0 0.0
  %211 = vmatprep.subr.mxu0 0.0
  %212 = vmatpush2.msra.mxu0 0.0
  %213 = vmatprep.subr.mxu0 0.0
  %214 = vmatpush2.msra.mxu0 0.0
  %215 = vmatprep.subr.mxu0 0.0
  %216 = vmatpush2.msra.mxu0 0.0
  %217 = vmatprep.subr.mxu0 0.0
  %218 = vmatpush2.msra.mxu0 0.0
  %219 = vmatprep.subr.mxu0 0.0
  %220 = vmatpush2.msra.mxu0 0.0
  %221 = vmatprep.subr.mxu0 0.0
  %222 = vmatpush2.msra.mxu0 0.0
  %223 = vmatprep.subr.mxu0 0.0
  %224 = vmatpush2.msra.mxu0 0.0
  %225 = vmatprep.subr.mxu0 0.0
  %226 = vmatpush2.msra.mxu0 0.0
  %227 = vmatprep.mubr.f32.mxu0 0.0
  %228 = vmatmul.mubr.f32.gmra.mxu0 %v67
  %v229 = vpop.f32.mrf.mxu0
  %v230 = vadd.f32 %v145, %v229
  %v231 = vpop.f32.mrf.mxu0
  %232 = vmatprep.mubr.f32.mxu0 0.0
  %233 = vmatmul.mubr.f32.gmra.mxu0 %v70
  %v234 = vpop.f32.mrf.mxu0
  %v235 = vadd.f32 %v150, %v234
  %v236 = vpop.f32.mrf.mxu0
  %237 = vmatprep.mubr.f32.mxu0 0.0
  %238 = vmatmul.mubr.f32.gmra.mxu0 %v73
  %v239 = vpop.f32.mrf.mxu0
  %v240 = vadd.f32 %v155, %v239
  %v241 = vpop.f32.mrf.mxu0
  %242 = vmatprep.mubr.f32.mxu0 0.0
  %243 = vmatmul.mubr.f32.gmra.mxu0 %v76
  %v244 = vpop.f32.mrf.mxu0
  %v245 = vadd.f32 %v160, %v244
  %v246 = vpop.f32.mrf.mxu0
  %247 = vdwg.mxu0
  %v248 = vld [vmem:[%s2] sm:$0x1]
  %v249 = vld [vmem:[%s3] sm:$0x1]
  %vm250 = vcmask 523264
  %v251 = vsel %vm250, %v230, 0.0
  %v252 = vsel %vm250, %v235, 0.0
  %v253 = vadd.f32 %v251, %v252
  %v254 = vsel %vm250, %v240, 0.0
  %v255 = vadd.f32 %v253, %v254
  %v256 = vsel %vm250, %v245, 0.0
  %v257 = vadd.f32 %v255, %v256
  %v258 = vrot.slane %v257, 4
  %v259 = vadd.f32 %v257, %v258
  %v260 = vrot.slane %v259, 2
  %v261 = vadd.f32 %v259, %v260
  %v262 = vrot.slane %v261, 1
  %v263 = vadd.f32 %v261, %v262
  %v264 = vrcp.pop 32.0
  %v265 = vmul.f32 %v263, %v264
  %v266 = vsub.f32 %v230, %v265
  %v267 = vsub.f32 %v235, %v265
  %v268 = vsub.f32 %v240, %v265
  %v269 = vsub.f32 %v245, %v265
  %v270 = vmul.f32 %v266, %v266
  %v271 = vmul.f32 %v267, %v267
  %v272 = vmul.f32 %v268, %v268
  %v273 = vmul.f32 %v269, %v269
  %v274 = vsel %vm250, %v270, 0.0
  %v275 = vsel %vm250, %v271, 0.0
  %v276 = vadd.f32 %v274, %v275
  %v277 = vsel %vm250, %v272, 0.0
  %v278 = vadd.f32 %v276, %v277
  %v279 = vsel %vm250, %v273, 0.0
  %v280 = vadd.f32 %v278, %v279
  %v281 = vrot.slane %v280, 4
  %v282 = vadd.f32 %v280, %v281
  %v283 = vrot.slane %v282, 2
  %v284 = vadd.f32 %v282, %v283
  %v285 = vrot.slane %v284, 1
  %v286 = vadd.f32 %v284, %v285
  %v287 = vmul.f32 %v286, %v264
  %v288 = vadd.f32 %v287, 1e-05
  %v289 = vrsqrt.pop %v288
  %v290 = vmul.f32 %v266, %v289
  %v291 = vmul.f32 %v267, %v289
  %v292 = vmul.f32 %v268, %v289
  %v293 = vmul.f32 %v269, %v289
  %v295 = vlaneseq
  %v296 = vshrl.u32 %v295, 7
  %v297 = vsub.s32 0, %v296
  %v298 = vrot.slane %v248, %v297
  %v300 = vmul.f32 %v290, %v298
  %v301 = vmul.f32 %v291, %v298
  %v302 = vmul.f32 %v292, %v298
  %v303 = vmul.f32 %v293, %v298
  %v305 = vlaneseq
  %v306 = vshrl.u32 %v305, 7
  %v307 = vsub.s32 0, %v306
  %v308 = vrot.slane %v249, %v307
  %v310 = vadd.f32 %v300, %v308
  %v311 = vadd.f32 %v301, %v308
  %v312 = vadd.f32 %v302, %v308
  %v313 = vadd.f32 %v303, %v308
  %v314 = vmax.f32 %v310, 0.0
  %v315 = vmax.f32 %v311, 0.0
  %v316 = vmax.f32 %v312, 0.0
  %v317 = vmax.f32 %v313, 0.0
  %318 = vst.msk [vmem:[%s4] sm:$0xff] %vm250, %v314
  %319 = vst.msk [vmem:[%s4 + $0x8] sm:$0xff] %vm250, %v315
  %320 = vst.msk [vmem:[%s4 + $0x10] sm:$0xff] %vm250, %v316
  %321 = vst.msk [vmem:[%s4 + $0x18] sm:$0xff] %vm250, %v317
  // Predicated region
  $region18: #{my_resnet_forward.17} parent=0 // pred_check
    _
  $region19: #{my_resnet_forward.17} parent=0 // pred_check_branch
    %323 = sbr.rel (0) target = $region21
  $region20: #{my_resnet_forward.17} parent=0 // pred_region
    _
  $region21: #{my_resnet_forward.17} parent=0 // pred_fallthru
    _
  // Predicated region
  $region22: #{my_resnet_forward.17} parent=0 // pred_check
    _
  $region23: #{my_resnet_forward.17} parent=0 // pred_check_branch
    %325 = sbr.rel (0) target = $region25
  $region24: #{my_resnet_forward.17} parent=0 // pred_region
    _
  $region25: #{my_resnet_forward.17} parent=0 // pred_fallthru
    _

// kernel: my_resnet_forward.19
$region0: #{my_resnet_forward.19}
  #allocation0 [shape = 'u32[]', space=smem, size = 0x4, offset = 0x4, fixed_abs, tag = 'smem constant byte address 0x4 - core index']
  #allocation1 [shape = 'u32[144,128]{1,0:T(1,128)}', space=vmem, size = 0x12000, scoped, tag = 'internal scratch']
  %s0 = inlined_call_operand.vmem [shape: f32[32,576], index: 0, kind: input, shape index: {}]
  %s1 = inlined_call_operand.vmem [shape: f32[576,64], index: 1, kind: input, shape index: {}]
  %s2 = inlined_call_operand.vmem [shape: f32[1,64], index: 2, kind: input, shape index: {}]
  %s3 = inlined_call_operand.vmem [shape: f32[1,64], index: 3, kind: input, shape index: {}]
  %s4 = inlined_call_operand.vmem [shape: f32[32,64], index: 4, kind: output, shape index: {}]
  %s5 = sld [smem:[#allocation0]]
  $region26: #{my_resnet_forward.19} parent=0
    _
  %s7 = ssub.s32 1, %s5
  %s8 = scalar_select 0, %s7, %s5
  // Predicated region
  $region2: #{my_resnet_forward.19} parent=0 // pred_check
    _
  $region3: #{my_resnet_forward.19} parent=0 // pred_check_branch
    %10 = sbr.rel (0) target = $region5
  $region4: #{my_resnet_forward.19} parent=0 // pred_region
    _
  $region5: #{my_resnet_forward.19} parent=0 // pred_fallthru
    _
  // Predicated region
  $region6: #{my_resnet_forward.19} parent=0 // pred_check
    _
  $region7: #{my_resnet_forward.19} parent=0 // pred_check_branch
    %12 = sbr.rel (0) target = $region9
  $region8: #{my_resnet_forward.19} parent=0 // pred_region
    _
  $region9: #{my_resnet_forward.19} parent=0 // pred_fallthru
    _
  // Predicated region
  $region10: #{my_resnet_forward.19} parent=0 // pred_check
    _
  $region11: #{my_resnet_forward.19} parent=0 // pred_check_branch
    %14 = sbr.rel (0) target = $region13
  $region12: #{my_resnet_forward.19} parent=0 // pred_region
    _
  $region13: #{my_resnet_forward.19} parent=0 // pred_fallthru
    _
  // Predicated region
  $region14: #{my_resnet_forward.19} parent=0 // pred_check
    _
  $region15: #{my_resnet_forward.19} parent=0 // pred_check_branch
    %16 = sbr.rel (0) target = $region17
  $region16: #{my_resnet_forward.19} parent=0 // pred_region
    _
  $region17: #{my_resnet_forward.19} parent=0 // pred_fallthru
    _
  %v17 = vld [vmem:[%s0] sm:$0xff]
  %v18 = vld [vmem:[%s0 + $0x8] sm:$0xff]
  %v19 = vld [vmem:[%s0 + $0x10] sm:$0xff]
  %v20 = vld [vmem:[%s0 + $0x18] sm:$0xff]
  %v21 = vld [vmem:[%s0 + $0x20] sm:$0xff]
  %v22 = vld [vmem:[%s0 + $0x28] sm:$0xff]
  %v23 = vld [vmem:[%s0 + $0x30] sm:$0xff]
  %v24 = vld [vmem:[%s0 + $0x38] sm:$0xff]
  %v25 = vld [vmem:[%s0 + $0x40] sm:$0xff]
  %v26 = vld [vmem:[%s0 + $0x48] sm:$0xff]
  %v27 = vld [vmem:[%s0 + $0x50] sm:$0xff]
  %v28 = vld [vmem:[%s0 + $0x58] sm:$0xff]
  %v29 = vld [vmem:[%s0 + $0x60] sm:$0xff]
  %v30 = vld [vmem:[%s0 + $0x68] sm:$0xff]
  %v31 = vld [vmem:[%s0 + $0x70] sm:$0xff]
  %v32 = vld [vmem:[%s0 + $0x78] sm:$0xff]
  %v33 = vld [vmem:[%s0 + $0x80] sm:$0xff]
  %v34 = vld [vmem:[%s0 + $0x88] sm:$0xff]
  %v35 = vld [vmem:[%s0 + $0x90] sm:$0xff]
  %v36 = vld [vmem:[%s0 + $0x98] sm:$0xff]
  %v37 = vld [vmem:[%s1] sm:$0xff]
  %v38 = vld [vmem:[%s1 + $0x8] sm:$0xff]
  %v39 = vld [vmem:[%s1 + $0x10] sm:$0xff]
  %v40 = vld [vmem:[%s1 + $0x18] sm:$0xff]
  %v41 = vld [vmem:[%s1 + $0x20] sm:$0xff]
  %v42 = vld [vmem:[%s1 + $0x28] sm:$0xff]
  %v43 = vld [vmem:[%s1 + $0x30] sm:$0xff]
  %v44 = vld [vmem:[%s1 + $0x38] sm:$0xff]
  %v45 = vld [vmem:[%s1 + $0x40] sm:$0xff]
  %v46 = vld [vmem:[%s1 + $0x48] sm:$0xff]
  %v47 = vld [vmem:[%s1 + $0x50] sm:$0xff]
  %v48 = vld [vmem:[%s1 + $0x58] sm:$0xff]
  %v49 = vld [vmem:[%s1 + $0x60] sm:$0xff]
  %v50 = vld [vmem:[%s1 + $0x68] sm:$0xff]
  %v51 = vld [vmem:[%s1 + $0x70] sm:$0xff]
  %v52 = vld [vmem:[%s1 + $0x78] sm:$0xff]
  %v53 = vld [vmem:[%s1 + $0x80] sm:$0xff]
  %v54 = vld [vmem:[%s1 + $0x88] sm:$0xff]
  %v55 = vld [vmem:[%s1 + $0x90] sm:$0xff]
  %v56 = vld [vmem:[%s1 + $0x98] sm:$0xff]
  %v57 = vld [vmem:[%s1 + $0xa0] sm:$0xff]
  %v58 = vld [vmem:[%s1 + $0xa8] sm:$0xff]
  %v59 = vld [vmem:[%s1 + $0xb0] sm:$0xff]
  %v60 = vld [vmem:[%s1 + $0xb8] sm:$0xff]
  %v61 = vld [vmem:[%s1 + $0xc0] sm:$0xff]
  %v62 = vld [vmem:[%s1 + $0xc8] sm:$0xff]
  %v63 = vld [vmem:[%s1 + $0xd0] sm:$0xff]
  %v64 = vld [vmem:[%s1 + $0xd8] sm:$0xff]
  %v65 = vld [vmem:[%s1 + $0xe0] sm:$0xff]
  %v66 = vld [vmem:[%s1 + $0xe8] sm:$0xff]
  %v67 = vld [vmem:[%s1 + $0xf0] sm:$0xff]
  %v68 = vld [vmem:[%s1 + $0xf8] sm:$0xff]
  %v69 = vld [vmem:[%s1 + $0x100] sm:$0xff]
  %v70 = vld [vmem:[%s1 + $0x108] sm:$0xff]
  %v71 = vld [vmem:[%s1 + $0x110] sm:$0xff]
  %v72 = vld [vmem:[%s1 + $0x118] sm:$0xff]
  %v73 = vld [vmem:[%s1 + $0x120] sm:$0xff]
  %v74 = vld [vmem:[%s1 + $0x128] sm:$0xff]
  %v75 = vld [vmem:[%s1 + $0x130] sm:$0xff]
  %v76 = vld [vmem:[%s1 + $0x138] sm:$0xff]
  %v77 = vld [vmem:[%s1 + $0x140] sm:$0xff]
  %v78 = vld [vmem:[%s1 + $0x148] sm:$0xff]
  %v79 = vld [vmem:[%s1 + $0x150] sm:$0xff]
  %v80 = vld [vmem:[%s1 + $0x158] sm:$0xff]
  %v81 = vld [vmem:[%s1 + $0x160] sm:$0xff]
  %v82 = vld [vmem:[%s1 + $0x168] sm:$0xff]
  %v83 = vld [vmem:[%s1 + $0x170] sm:$0xff]
  %v84 = vld [vmem:[%s1 + $0x178] sm:$0xff]
  %v85 = vld [vmem:[%s1 + $0x180] sm:$0xff]
  %v86 = vld [vmem:[%s1 + $0x188] sm:$0xff]
  %v87 = vld [vmem:[%s1 + $0x190] sm:$0xff]
  %v88 = vld [vmem:[%s1 + $0x198] sm:$0xff]
  %v89 = vld [vmem:[%s1 + $0x1a0] sm:$0xff]
  %v90 = vld [vmem:[%s1 + $0x1a8] sm:$0xff]
  %v91 = vld [vmem:[%s1 + $0x1b0] sm:$0xff]
  %v92 = vld [vmem:[%s1 + $0x1b8] sm:$0xff]
  %v93 = vld [vmem:[%s1 + $0x1c0] sm:$0xff]
  %v94 = vld [vmem:[%s1 + $0x1c8] sm:$0xff]
  %v95 = vld [vmem:[%s1 + $0x1d0] sm:$0xff]
  %v96 = vld [vmem:[%s1 + $0x1d8] sm:$0xff]
  %v97 = vld [vmem:[%s1 + $0x1e0] sm:$0xff]
  %v98 = vld [vmem:[%s1 + $0x1e8] sm:$0xff]
  %v99 = vld [vmem:[%s1 + $0x1f0] sm:$0xff]
  %v100 = vld [vmem:[%s1 + $0x1f8] sm:$0xff]
  %v101 = vld [vmem:[%s1 + $0x200] sm:$0xff]
  %v102 = vld [vmem:[%s1 + $0x208] sm:$0xff]
  %v103 = vld [vmem:[%s1 + $0x210] sm:$0xff]
  %v104 = vld [vmem:[%s1 + $0x218] sm:$0xff]
  %v105 = vld [vmem:[%s1 + $0x220] sm:$0xff]
  %v106 = vld [vmem:[%s1 + $0x228] sm:$0xff]
  %v107 = vld [vmem:[%s1 + $0x230] sm:$0xff]
  %v108 = vld [vmem:[%s1 + $0x238] sm:$0xff]
  %vm109 = vcmask 523264
  %v111 = vsel %vm109, %v21, 0
  %v114 = vsel %vm109, %v26, 0
  %v117 = vsel %vm109, %v31, 0
  %v120 = vsel %vm109, %v36, 0
  %122 = vmatprep.subr.mxu0 0.0
  %123 = vmatpush1.msra.mxu0 %v52
  %124 = vmatprep.subr.mxu0 0.0
  %125 = vmatpush1.msra.mxu0 %v51
  %126 = vmatprep.subr.mxu0 0.0
  %127 = vmatpush1.msra.mxu0 %v50
  %128 = vmatprep.subr.mxu0 0.0
  %129 = vmatpush1.msra.mxu0 %v49
  %130 = vmatprep.subr.mxu0 0.0
  %131 = vmatpush1.msra.mxu0 %v48
  %132 = vmatprep.subr.mxu0 0.0
  %133 = vmatpush1.msra.mxu0 %v47
  %134 = vmatprep.subr.mxu0 0.0
  %135 = vmatpush1.msra.mxu0 %v46
  %136 = vmatprep.subr.mxu0 0.0
  %137 = vmatpush1.msra.mxu0 %v45
  %138 = vmatprep.subr.mxu0 0.0
  %139 = vmatpush1.msra.mxu0 %v44
  %140 = vmatprep.subr.mxu0 0.0
  %141 = vmatpush1.msra.mxu0 %v43
  %142 = vmatprep.subr.mxu0 0.0
  %143 = vmatpush1.msra.mxu0 %v42
  %144 = vmatprep.subr.mxu0 0.0
  %145 = vmatpush1.msra.mxu0 %v41
  %146 = vmatprep.subr.mxu0 0.0
  %147 = vmatpush1.msra.mxu0 %v40
  %148 = vmatprep.subr.mxu0 0.0
  %149 = vmatpush1.msra.mxu0 %v39
  %150 = vmatprep.subr.mxu0 0.0
  %151 = vmatpush1.msra.mxu0 %v38
  %152 = vmatprep.subr.mxu0 0.0
  %153 = vmatpush1.msra.mxu0 %v37
  %154 = vmatprep.subr.mxu0 0.0
  %155 = vmatpush2.msra.mxu0 %v68
  %156 = vmatprep.subr.mxu0 0.0
  %157 = vmatpush2.msra.mxu0 %v67
  %158 = vmatprep.subr.mxu0 0.0
  %159 = vmatpush2.msra.mxu0 %v66
  %160 = vmatprep.subr.mxu0 0.0
  %161 = vmatpush2.msra.mxu0 %v65
  %162 = vmatprep.subr.mxu0 0.0
  %163 = vmatpush2.msra.mxu0 %v64
  %164 = vmatprep.subr.mxu0 0.0
  %165 = vmatpush2.msra.mxu0 %v63
  %166 = vmatprep.subr.mxu0 0.0
  %167 = vmatpush2.msra.mxu0 %v62
  %168 = vmatprep.subr.mxu0 0.0
  %169 = vmatpush2.msra.mxu0 %v61
  %170 = vmatprep.subr.mxu0 0.0
  %171 = vmatpush2.msra.mxu0 %v60
  %172 = vmatprep.subr.mxu0 0.0
  %173 = vmatpush2.msra.mxu0 %v59
  %174 = vmatprep.subr.mxu0 0.0
  %175 = vmatpush2.msra.mxu0 %v58
  %176 = vmatprep.subr.mxu0 0.0
  %177 = vmatpush2.msra.mxu0 %v57
  %178 = vmatprep.subr.mxu0 0.0
  %179 = vmatpush2.msra.mxu0 %v56
  %180 = vmatprep.subr.mxu0 0.0
  %181 = vmatpush2.msra.mxu0 %v55
  %182 = vmatprep.subr.mxu0 0.0
  %183 = vmatpush2.msra.mxu0 %v54
  %184 = vmatprep.subr.mxu0 0.0
  %185 = vmatpush2.msra.mxu0 %v53
  %186 = vmatprep.mubr.f32.mxu0 %v18
  %187 = vmatmul.mubr.f32.gmra.mxu0 %v17
  %v188 = vpop.f32.mrf.mxu0
  %v189 = vadd.f32 0.0, %v188
  %v190 = vpop.f32.mrf.mxu0
  %191 = vmatprep.mubr.f32.mxu0 %v23
  %192 = vmatmul.mubr.f32.gmra.mxu0 %v22
  %v193 = vpop.f32.mrf.mxu0
  %v194 = vadd.f32 0.0, %v193
  %v195 = vpop.f32.mrf.mxu0
  %196 = vmatprep.mubr.f32.mxu0 %v28
  %197 = vmatmul.mubr.f32.gmra.mxu0 %v27
  %v198 = vpop.f32.mrf.mxu0
  %v199 = vadd.f32 0.0, %v198
  %v200 = vpop.f32.mrf.mxu0
  %201 = vmatprep.mubr.f32.mxu0 %v33
  %202 = vmatmul.mubr.f32.gmra.mxu0 %v32
  %v203 = vpop.f32.mrf.mxu0
  %v204 = vadd.f32 0.0, %v203
  %v205 = vpop.f32.mrf.mxu0
  %206 = vdwg.mxu0
  %207 = vmatprep.subr.mxu0 0.0
  %208 = vmatpush1.msra.mxu0 %v84
  %209 = vmatprep.subr.mxu0 0.0
  %210 = vmatpush1.msra.mxu0 %v83
  %211 = vmatprep.subr.mxu0 0.0
  %212 = vmatpush1.msra.mxu0 %v82
  %213 = vmatprep.subr.mxu0 0.0
  %214 = vmatpush1.msra.mxu0 %v81
  %215 = vmatprep.subr.mxu0 0.0
  %216 = vmatpush1.msra.mxu0 %v80
  %217 = vmatprep.subr.mxu0 0.0
  %218 = vmatpush1.msra.mxu0 %v79
  %219 = vmatprep.subr.mxu0 0.0
  %220 = vmatpush1.msra.mxu0 %v78
  %221 = vmatprep.subr.mxu0 0.0
  %222 = vmatpush1.msra.mxu0 %v77
  %223 = vmatprep.subr.mxu0 0.0
  %224 = vmatpush1.msra.mxu0 %v76
  %225 = vmatprep.subr.mxu0 0.0
  %226 = vmatpush1.msra.mxu0 %v75
  %227 = vmatprep.subr.mxu0 0.0
  %228 = vmatpush1.msra.mxu0 %v74
  %229 = vmatprep.subr.mxu0 0.0
  %230 = vmatpush1.msra.mxu0 %v73
  %231 = vmatprep.subr.mxu0 0.0
  %232 = vmatpush1.msra.mxu0 %v72
  %233 = vmatprep.subr.mxu0 0.0
  %234 = vmatpush1.msra.mxu0 %v71
  %235 = vmatprep.subr.mxu0 0.0
  %236 = vmatpush1.msra.mxu0 %v70
  %237 = vmatprep.subr.mxu0 0.0
  %238 = vmatpush1.msra.mxu0 %v69
  %239 = vmatprep.subr.mxu0 0.0
  %240 = vmatpush2.msra.mxu0 %v100
  %241 = vmatprep.subr.mxu0 0.0
  %242 = vmatpush2.msra.mxu0 %v99
  %243 = vmatprep.subr.mxu0 0.0
  %244 = vmatpush2.msra.mxu0 %v98
  %245 = vmatprep.subr.mxu0 0.0
  %246 = vmatpush2.msra.mxu0 %v97
  %247 = vmatprep.subr.mxu0 0.0
  %248 = vmatpush2.msra.mxu0 %v96
  %249 = vmatprep.subr.mxu0 0.0
  %250 = vmatpush2.msra.mxu0 %v95
  %251 = vmatprep.subr.mxu0 0.0
  %252 = vmatpush2.msra.mxu0 %v94
  %253 = vmatprep.subr.mxu0 0.0
  %254 = vmatpush2.msra.mxu0 %v93
  %255 = vmatprep.subr.mxu0 0.0
  %256 = vmatpush2.msra.mxu0 %v92
  %257 = vmatprep.subr.mxu0 0.0
  %258 = vmatpush2.msra.mxu0 %v91
  %259 = vmatprep.subr.mxu0 0.0
  %260 = vmatpush2.msra.mxu0 %v90
  %261 = vmatprep.subr.mxu0 0.0
  %262 = vmatpush2.msra.mxu0 %v89
  %263 = vmatprep.subr.mxu0 0.0
  %264 = vmatpush2.msra.mxu0 %v88
  %265 = vmatprep.subr.mxu0 0.0
  %266 = vmatpush2.msra.mxu0 %v87
  %267 = vmatprep.subr.mxu0 0.0
  %268 = vmatpush2.msra.mxu0 %v86
  %269 = vmatprep.subr.mxu0 0.0
  %270 = vmatpush2.msra.mxu0 %v85
  %271 = vmatprep.mubr.f32.mxu0 %v20
  %272 = vmatmul.mubr.f32.gmra.mxu0 %v19
  %v273 = vpop.f32.mrf.mxu0
  %v274 = vadd.f32 %v189, %v273
  %v275 = vpop.f32.mrf.mxu0
  %276 = vmatprep.mubr.f32.mxu0 %v25
  %277 = vmatmul.mubr.f32.gmra.mxu0 %v24
  %v278 = vpop.f32.mrf.mxu0
  %v279 = vadd.f32 %v194, %v278
  %v280 = vpop.f32.mrf.mxu0
  %281 = vmatprep.mubr.f32.mxu0 %v30
  %282 = vmatmul.mubr.f32.gmra.mxu0 %v29
  %v283 = vpop.f32.mrf.mxu0
  %v284 = vadd.f32 %v199, %v283
  %v285 = vpop.f32.mrf.mxu0
  %286 = vmatprep.mubr.f32.mxu0 %v35
  %287 = vmatmul.mubr.f32.gmra.mxu0 %v34
  %v288 = vpop.f32.mrf.mxu0
  %v289 = vadd.f32 %v204, %v288
  %v290 = vpop.f32.mrf.mxu0
  %291 = vdwg.mxu0
  %292 = vmatprep.subr.mxu0 0.0
  %293 = vmatpush1.msra.mxu0 0.0
  %294 = vmatprep.subr.mxu0 0.0
  %295 = vmatpush1.msra.mxu0 0.0
  %296 = vmatprep.subr.mxu0 0.0
  %297 = vmatpush1.msra.mxu0 0.0
  %298 = vmatprep.subr.mxu0 0.0
  %299 = vmatpush1.msra.mxu0 0.0
  %300 = vmatprep.subr.mxu0 0.0
  %301 = vmatpush1.msra.mxu0 0.0
  %302 = vmatprep.subr.mxu0 0.0
  %303 = vmatpush1.msra.mxu0 0.0
  %304 = vmatprep.subr.mxu0 0.0
  %305 = vmatpush1.msra.mxu0 0.0
  %306 = vmatprep.subr.mxu0 0.0
  %307 = vmatpush1.msra.mxu0 0.0
  %308 = vmatprep.subr.mxu0 0.0
  %309 = vmatpush1.msra.mxu0 %v108
  %310 = vmatprep.subr.mxu0 0.0
  %311 = vmatpush1.msra.mxu0 %v107
  %312 = vmatprep.subr.mxu0 0.0
  %313 = vmatpush1.msra.mxu0 %v106
  %314 = vmatprep.subr.mxu0 0.0
  %315 = vmatpush1.msra.mxu0 %v105
  %316 = vmatprep.subr.mxu0 0.0
  %317 = vmatpush1.msra.mxu0 %v104
  %318 = vmatprep.subr.mxu0 0.0
  %319 = vmatpush1.msra.mxu0 %v103
  %320 = vmatprep.subr.mxu0 0.0
  %321 = vmatpush1.msra.mxu0 %v102
  %322 = vmatprep.subr.mxu0 0.0
  %323 = vmatpush1.msra.mxu0 %v101
  %324 = vmatprep.subr.mxu0 0.0
  %325 = vmatpush2.msra.mxu0 0.0
  %326 = vmatprep.subr.mxu0 0.0
  %327 = vmatpush2.msra.mxu0 0.0
  %328 = vmatprep.subr.mxu0 0.0
  %329 = vmatpush2.msra.mxu0 0.0
  %330 = vmatprep.subr.mxu0 0.0
  %331 = vmatpush2.msra.mxu0 0.0
  %332 = vmatprep.subr.mxu0 0.0
  %333 = vmatpush2.msra.mxu0 0.0
  %334 = vmatprep.subr.mxu0 0.0
  %335 = vmatpush2.msra.mxu0 0.0
  %336 = vmatprep.subr.mxu0 0.0
  %337 = vmatpush2.msra.mxu0 0.0
  %338 = vmatprep.subr.mxu0 0.0
  %339 = vmatpush2.msra.mxu0 0.0
  %340 = vmatprep.subr.mxu0 0.0
  %341 = vmatpush2.msra.mxu0 0.0
  %342 = vmatprep.subr.mxu0 0.0
  %343 = vmatpush2.msra.mxu0 0.0
  %344 = vmatprep.subr.mxu0 0.0
  %345 = vmatpush2.msra.mxu0 0.0
  %346 = vmatprep.subr.mxu0 0.0
  %347 = vmatpush2.msra.mxu0 0.0
  %348 = vmatprep.subr.mxu0 0.0
  %349 = vmatpush2.msra.mxu0 0.0
  %350 = vmatprep.subr.mxu0 0.0
  %351 = vmatpush2.msra.mxu0 0.0
  %352 = vmatprep.subr.mxu0 0.0
  %353 = vmatpush2.msra.mxu0 0.0
  %354 = vmatprep.subr.mxu0 0.0
  %355 = vmatpush2.msra.mxu0 0.0
  %356 = vmatprep.mubr.f32.mxu0 0.0
  %357 = vmatmul.mubr.f32.gmra.mxu0 %v111
  %v358 = vpop.f32.mrf.mxu0
  %v359 = vadd.f32 %v274, %v358
  %v360 = vpop.f32.mrf.mxu0
  %361 = vmatprep.mubr.f32.mxu0 0.0
  %362 = vmatmul.mubr.f32.gmra.mxu0 %v114
  %v363 = vpop.f32.mrf.mxu0
  %v364 = vadd.f32 %v279, %v363
  %v365 = vpop.f32.mrf.mxu0
  %366 = vmatprep.mubr.f32.mxu0 0.0
  %367 = vmatmul.mubr.f32.gmra.mxu0 %v117
  %v368 = vpop.f32.mrf.mxu0
  %v369 = vadd.f32 %v284, %v368
  %v370 = vpop.f32.mrf.mxu0
  %371 = vmatprep.mubr.f32.mxu0 0.0
  %372 = vmatmul.mubr.f32.gmra.mxu0 %v120
  %v373 = vpop.f32.mrf.mxu0
  %v374 = vadd.f32 %v289, %v373
  %v375 = vpop.f32.mrf.mxu0
  %376 = vdwg.mxu0
  %v377 = vld [vmem:[%s2] sm:$0x1]
  %v378 = vld [vmem:[%s3] sm:$0x1]
  %v379 = vsel %vm109, %v359, 0.0
  %v380 = vsel %vm109, %v364, 0.0
  %v381 = vadd.f32 %v379, %v380
  %v382 = vsel %vm109, %v369, 0.0
  %v383 = vadd.f32 %v381, %v382
  %v384 = vsel %vm109, %v374, 0.0
  %v385 = vadd.f32 %v383, %v384
  %v386 = vrot.slane %v385, 4
  %v387 = vadd.f32 %v385, %v386
  %v388 = vrot.slane %v387, 2
  %v389 = vadd.f32 %v387, %v388
  %v390 = vrot.slane %v389, 1
  %v391 = vadd.f32 %v389, %v390
  %v392 = vrcp.pop 32.0
  %v393 = vmul.f32 %v391, %v392
  %v394 = vsub.f32 %v359, %v393
  %v395 = vsub.f32 %v364, %v393
  %v396 = vsub.f32 %v369, %v393
  %v397 = vsub.f32 %v374, %v393
  %v398 = vmul.f32 %v394, %v394
  %v399 = vmul.f32 %v395, %v395
  %v400 = vmul.f32 %v396, %v396
  %v401 = vmul.f32 %v397, %v397
  %v402 = vsel %vm109, %v398, 0.0
  %v403 = vsel %vm109, %v399, 0.0
  %v404 = vadd.f32 %v402, %v403
  %v405 = vsel %vm109, %v400, 0.0
  %v406 = vadd.f32 %v404, %v405
  %v407 = vsel %vm109, %v401, 0.0
  %v408 = vadd.f32 %v406, %v407
  %v409 = vrot.slane %v408, 4
  %v410 = vadd.f32 %v408, %v409
  %v411 = vrot.slane %v410, 2
  %v412 = vadd.f32 %v410, %v411
  %v413 = vrot.slane %v412, 1
  %v414 = vadd.f32 %v412, %v413
  %v415 = vmul.f32 %v414, %v392
  %v416 = vadd.f32 %v415, 1e-05
  %v417 = vrsqrt.pop %v416
  %v418 = vmul.f32 %v394, %v417
  %v419 = vmul.f32 %v395, %v417
  %v420 = vmul.f32 %v396, %v417
  %v421 = vmul.f32 %v397, %v417
  %v423 = vlaneseq
  %v424 = vshrl.u32 %v423, 7
  %v425 = vsub.s32 0, %v424
  %v426 = vrot.slane %v377, %v425
  %v428 = vmul.f32 %v418, %v426
  %v429 = vmul.f32 %v419, %v426
  %v430 = vmul.f32 %v420, %v426
  %v431 = vmul.f32 %v421, %v426
  %v433 = vlaneseq
  %v434 = vshrl.u32 %v433, 7
  %v435 = vsub.s32 0, %v434
  %v436 = vrot.slane %v378, %v435
  %v438 = vadd.f32 %v428, %v436
  %v439 = vadd.f32 %v429, %v436
  %v440 = vadd.f32 %v430, %v436
  %v441 = vadd.f32 %v431, %v436
  %v442 = vmax.f32 %v438, 0.0
  %v443 = vmax.f32 %v439, 0.0
  %v444 = vmax.f32 %v440, 0.0
  %v445 = vmax.f32 %v441, 0.0
  %446 = vst.msk [vmem:[%s4] sm:$0xff] %vm109, %v442
  %447 = vst.msk [vmem:[%s4 + $0x8] sm:$0xff] %vm109, %v443
  %448 = vst.msk [vmem:[%s4 + $0x10] sm:$0xff] %vm109, %v444
  %449 = vst.msk [vmem:[%s4 + $0x18] sm:$0xff] %vm109, %v445
  // Predicated region
  $region18: #{my_resnet_forward.19} parent=0 // pred_check
    _
  $region19: #{my_resnet_forward.19} parent=0 // pred_check_branch
    %451 = sbr.rel (0) target = $region21
  $region20: #{my_resnet_forward.19} parent=0 // pred_region
    _
  $region21: #{my_resnet_forward.19} parent=0 // pred_fallthru
    _
  // Predicated region
  $region22: #{my_resnet_forward.19} parent=0 // pred_check
    _
  $region23: #{my_resnet_forward.19} parent=0 // pred_check_branch
    %453 = sbr.rel (0) target = $region25
  $region24: #{my_resnet_forward.19} parent=0 // pred_region
    _
  $region25: #{my_resnet_forward.19} parent=0 // pred_fallthru
    _

// kernel: my_resnet_forward.18
$region0: #{my_resnet_forward.18}
  #allocation0 [shape = 'u32[]', space=smem, size = 0x4, offset = 0x4, fixed_abs, tag = 'smem constant byte address 0x4 - core index']
  #allocation1 [shape = 'u32[144,128]{1,0:T(1,128)}', space=vmem, size = 0x12000, scoped, tag = 'internal scratch']
  %s0 = inlined_call_operand.vmem [shape: f32[32,576], index: 0, kind: input, shape index: {}]
  %s1 = inlined_call_operand.vmem [shape: f32[576,64], index: 1, kind: input, shape index: {}]
  %s2 = inlined_call_operand.vmem [shape: f32[1,64], index: 2, kind: input, shape index: {}]
  %s3 = inlined_call_operand.vmem [shape: f32[1,64], index: 3, kind: input, shape index: {}]
  %s4 = inlined_call_operand.vmem [shape: f32[32,32], index: 4, kind: input, shape index: {}]
  %s5 = inlined_call_operand.vmem [shape: f32[32,64], index: 5, kind: input, shape index: {}]
  %s6 = inlined_call_operand.vmem [shape: f32[1,64], index: 6, kind: input, shape index: {}]
  %s7 = inlined_call_operand.vmem [shape: f32[32,64], index: 7, kind: output, shape index: {}]
  %s8 = sld [smem:[#allocation0]]
  $region38: #{my_resnet_forward.18} parent=0
    _
  %s10 = ssub.s32 1, %s8
  %s11 = scalar_select 0, %s10, %s8
  // Predicated region
  $region2: #{my_resnet_forward.18} parent=0 // pred_check
    _
  $region3: #{my_resnet_forward.18} parent=0 // pred_check_branch
    %13 = sbr.rel (0) target = $region5
  $region4: #{my_resnet_forward.18} parent=0 // pred_region
    _
  $region5: #{my_resnet_forward.18} parent=0 // pred_fallthru
    _
  // Predicated region
  $region6: #{my_resnet_forward.18} parent=0 // pred_check
    _
  $region7: #{my_resnet_forward.18} parent=0 // pred_check_branch
    %15 = sbr.rel (0) target = $region9
  $region8: #{my_resnet_forward.18} parent=0 // pred_region
    _
  $region9: #{my_resnet_forward.18} parent=0 // pred_fallthru
    _
  // Predicated region
  $region10: #{my_resnet_forward.18} parent=0 // pred_check
    _
  $region11: #{my_resnet_forward.18} parent=0 // pred_check_branch
    %17 = sbr.rel (0) target = $region13
  $region12: #{my_resnet_forward.18} parent=0 // pred_region
    _
  $region13: #{my_resnet_forward.18} parent=0 // pred_fallthru
    _
  // Predicated region
  $region14: #{my_resnet_forward.18} parent=0 // pred_check
    _
  $region15: #{my_resnet_forward.18} parent=0 // pred_check_branch
    %19 = sbr.rel (0) target = $region17
  $region16: #{my_resnet_forward.18} parent=0 // pred_region
    _
  $region17: #{my_resnet_forward.18} parent=0 // pred_fallthru
    _
  // Predicated region
  $region18: #{my_resnet_forward.18} parent=0 // pred_check
    _
  $region19: #{my_resnet_forward.18} parent=0 // pred_check_branch
    %21 = sbr.rel (0) target = $region21
  $region20: #{my_resnet_forward.18} parent=0 // pred_region
    _
  $region21: #{my_resnet_forward.18} parent=0 // pred_fallthru
    _
  // Predicated region
  $region22: #{my_resnet_forward.18} parent=0 // pred_check
    _
  $region23: #{my_resnet_forward.18} parent=0 // pred_check_branch
    %23 = sbr.rel (0) target = $region25
  $region24: #{my_resnet_forward.18} parent=0 // pred_region
    _
  $region25: #{my_resnet_forward.18} parent=0 // pred_fallthru
    _
  // Predicated region
  $region26: #{my_resnet_forward.18} parent=0 // pred_check
    _
  $region27: #{my_resnet_forward.18} parent=0 // pred_check_branch
    %25 = sbr.rel (0) target = $region29
  $region28: #{my_resnet_forward.18} parent=0 // pred_region
    _
  $region29: #{my_resnet_forward.18} parent=0 // pred_fallthru
    _
  %v26 = vld [vmem:[%s0] sm:$0xff]
  %v27 = vld [vmem:[%s0 + $0x8] sm:$0xff]
  %v28 = vld [vmem:[%s0 + $0x10] sm:$0xff]
  %v29 = vld [vmem:[%s0 + $0x18] sm:$0xff]
  %v30 = vld [vmem:[%s0 + $0x20] sm:$0xff]
  %v31 = vld [vmem:[%s0 + $0x28] sm:$0xff]
  %v32 = vld [vmem:[%s0 + $0x30] sm:$0xff]
  %v33 = vld [vmem:[%s0 + $0x38] sm:$0xff]
  %v34 = vld [vmem:[%s0 + $0x40] sm:$0xff]
  %v35 = vld [vmem:[%s0 + $0x48] sm:$0xff]
  %v36 = vld [vmem:[%s0 + $0x50] sm:$0xff]
  %v37 = vld [vmem:[%s0 + $0x58] sm:$0xff]
  %v38 = vld [vmem:[%s0 + $0x60] sm:$0xff]
  %v39 = vld [vmem:[%s0 + $0x68] sm:$0xff]
  %v40 = vld [vmem:[%s0 + $0x70] sm:$0xff]
  %v41 = vld [vmem:[%s0 + $0x78] sm:$0xff]
  %v42 = vld [vmem:[%s0 + $0x80] sm:$0xff]
  %v43 = vld [vmem:[%s0 + $0x88] sm:$0xff]
  %v44 = vld [vmem:[%s0 + $0x90] sm:$0xff]
  %v45 = vld [vmem:[%s0 + $0x98] sm:$0xff]
  %v46 = vld [vmem:[%s1] sm:$0xff]
  %v47 = vld [vmem:[%s1 + $0x8] sm:$0xff]
  %v48 = vld [vmem:[%s1 + $0x10] sm:$0xff]
  %v49 = vld [vmem:[%s1 + $0x18] sm:$0xff]
  %v50 = vld [vmem:[%s1 + $0x20] sm:$0xff]
  %v51 = vld [vmem:[%s1 + $0x28] sm:$0xff]
  %v52 = vld [vmem:[%s1 + $0x30] sm:$0xff]
  %v53 = vld [vmem:[%s1 + $0x38] sm:$0xff]
  %v54 = vld [vmem:[%s1 + $0x40] sm:$0xff]
  %v55 = vld [vmem:[%s1 + $0x48] sm:$0xff]
  %v56 = vld [vmem:[%s1 + $0x50] sm:$0xff]
  %v57 = vld [vmem:[%s1 + $0x58] sm:$0xff]
  %v58 = vld [vmem:[%s1 + $0x60] sm:$0xff]
  %v59 = vld [vmem:[%s1 + $0x68] sm:$0xff]
  %v60 = vld [vmem:[%s1 + $0x70] sm:$0xff]
  %v61 = vld [vmem:[%s1 + $0x78] sm:$0xff]
  %v62 = vld [vmem:[%s1 + $0x80] sm:$0xff]
  %v63 = vld [vmem:[%s1 + $0x88] sm:$0xff]
  %v64 = vld [vmem:[%s1 + $0x90] sm:$0xff]
  %v65 = vld [vmem:[%s1 + $0x98] sm:$0xff]
  %v66 = vld [vmem:[%s1 + $0xa0] sm:$0xff]
  %v67 = vld [vmem:[%s1 + $0xa8] sm:$0xff]
  %v68 = vld [vmem:[%s1 + $0xb0] sm:$0xff]
  %v69 = vld [vmem:[%s1 + $0xb8] sm:$0xff]
  %v70 = vld [vmem:[%s1 + $0xc0] sm:$0xff]
  %v71 = vld [vmem:[%s1 + $0xc8] sm:$0xff]
  %v72 = vld [vmem:[%s1 + $0xd0] sm:$0xff]
  %v73 = vld [vmem:[%s1 + $0xd8] sm:$0xff]
  %v74 = vld [vmem:[%s1 + $0xe0] sm:$0xff]
  %v75 = vld [vmem:[%s1 + $0xe8] sm:$0xff]
  %v76 = vld [vmem:[%s1 + $0xf0] sm:$0xff]
  %v77 = vld [vmem:[%s1 + $0xf8] sm:$0xff]
  %v78 = vld [vmem:[%s1 + $0x100] sm:$0xff]
  %v79 = vld [vmem:[%s1 + $0x108] sm:$0xff]
  %v80 = vld [vmem:[%s1 + $0x110] sm:$0xff]
  %v81 = vld [vmem:[%s1 + $0x118] sm:$0xff]
  %v82 = vld [vmem:[%s1 + $0x120] sm:$0xff]
  %v83 = vld [vmem:[%s1 + $0x128] sm:$0xff]
  %v84 = vld [vmem:[%s1 + $0x130] sm:$0xff]
  %v85 = vld [vmem:[%s1 + $0x138] sm:$0xff]
  %v86 = vld [vmem:[%s1 + $0x140] sm:$0xff]
  %v87 = vld [vmem:[%s1 + $0x148] sm:$0xff]
  %v88 = vld [vmem:[%s1 + $0x150] sm:$0xff]
  %v89 = vld [vmem:[%s1 + $0x158] sm:$0xff]
  %v90 = vld [vmem:[%s1 + $0x160] sm:$0xff]
  %v91 = vld [vmem:[%s1 + $0x168] sm:$0xff]
  %v92 = vld [vmem:[%s1 + $0x170] sm:$0xff]
  %v93 = vld [vmem:[%s1 + $0x178] sm:$0xff]
  %v94 = vld [vmem:[%s1 + $0x180] sm:$0xff]
  %v95 = vld [vmem:[%s1 + $0x188] sm:$0xff]
  %v96 = vld [vmem:[%s1 + $0x190] sm:$0xff]
  %v97 = vld [vmem:[%s1 + $0x198] sm:$0xff]
  %v98 = vld [vmem:[%s1 + $0x1a0] sm:$0xff]
  %v99 = vld [vmem:[%s1 + $0x1a8] sm:$0xff]
  %v100 = vld [vmem:[%s1 + $0x1b0] sm:$0xff]
  %v101 = vld [vmem:[%s1 + $0x1b8] sm:$0xff]
  %v102 = vld [vmem:[%s1 + $0x1c0] sm:$0xff]
  %v103 = vld [vmem:[%s1 + $0x1c8] sm:$0xff]
  %v104 = vld [vmem:[%s1 + $0x1d0] sm:$0xff]
  %v105 = vld [vmem:[%s1 + $0x1d8] sm:$0xff]
  %v106 = vld [vmem:[%s1 + $0x1e0] sm:$0xff]
  %v107 = vld [vmem:[%s1 + $0x1e8] sm:$0xff]
  %v108 = vld [vmem:[%s1 + $0x1f0] sm:$0xff]
  %v109 = vld [vmem:[%s1 + $0x1f8] sm:$0xff]
  %v110 = vld [vmem:[%s1 + $0x200] sm:$0xff]
  %v111 = vld [vmem:[%s1 + $0x208] sm:$0xff]
  %v112 = vld [vmem:[%s1 + $0x210] sm:$0xff]
  %v113 = vld [vmem:[%s1 + $0x218] sm:$0xff]
  %v114 = vld [vmem:[%s1 + $0x220] sm:$0xff]
  %v115 = vld [vmem:[%s1 + $0x228] sm:$0xff]
  %v116 = vld [vmem:[%s1 + $0x230] sm:$0xff]
  %v117 = vld [vmem:[%s1 + $0x238] sm:$0xff]
  %vm118 = vcmask 523264
  %v120 = vsel %vm118, %v30, 0
  %v123 = vsel %vm118, %v35, 0
  %v126 = vsel %vm118, %v40, 0
  %v129 = vsel %vm118, %v45, 0
  %131 = vmatprep.subr.mxu0 0.0
  %132 = vmatpush1.msra.mxu0 %v61
  %133 = vmatprep.subr.mxu0 0.0
  %134 = vmatpush1.msra.mxu0 %v60
  %135 = vmatprep.subr.mxu0 0.0
  %136 = vmatpush1.msra.mxu0 %v59
  %137 = vmatprep.subr.mxu0 0.0
  %138 = vmatpush1.msra.mxu0 %v58
  %139 = vmatprep.subr.mxu0 0.0
  %140 = vmatpush1.msra.mxu0 %v57
  %141 = vmatprep.subr.mxu0 0.0
  %142 = vmatpush1.msra.mxu0 %v56
  %143 = vmatprep.subr.mxu0 0.0
  %144 = vmatpush1.msra.mxu0 %v55
  %145 = vmatprep.subr.mxu0 0.0
  %146 = vmatpush1.msra.mxu0 %v54
  %147 = vmatprep.subr.mxu0 0.0
  %148 = vmatpush1.msra.mxu0 %v53
  %149 = vmatprep.subr.mxu0 0.0
  %150 = vmatpush1.msra.mxu0 %v52
  %151 = vmatprep.subr.mxu0 0.0
  %152 = vmatpush1.msra.mxu0 %v51
  %153 = vmatprep.subr.mxu0 0.0
  %154 = vmatpush1.msra.mxu0 %v50
  %155 = vmatprep.subr.mxu0 0.0
  %156 = vmatpush1.msra.mxu0 %v49
  %157 = vmatprep.subr.mxu0 0.0
  %158 = vmatpush1.msra.mxu0 %v48
  %159 = vmatprep.subr.mxu0 0.0
  %160 = vmatpush1.msra.mxu0 %v47
  %161 = vmatprep.subr.mxu0 0.0
  %162 = vmatpush1.msra.mxu0 %v46
  %163 = vmatprep.subr.mxu0 0.0
  %164 = vmatpush2.msra.mxu0 %v77
  %165 = vmatprep.subr.mxu0 0.0
  %166 = vmatpush2.msra.mxu0 %v76
  %167 = vmatprep.subr.mxu0 0.0
  %168 = vmatpush2.msra.mxu0 %v75
  %169 = vmatprep.subr.mxu0 0.0
  %170 = vmatpush2.msra.mxu0 %v74
  %171 = vmatprep.subr.mxu0 0.0
  %172 = vmatpush2.msra.mxu0 %v73
  %173 = vmatprep.subr.mxu0 0.0
  %174 = vmatpush2.msra.mxu0 %v72
  %175 = vmatprep.subr.mxu0 0.0
  %176 = vmatpush2.msra.mxu0 %v71
  %177 = vmatprep.subr.mxu0 0.0
  %178 = vmatpush2.msra.mxu0 %v70
  %179 = vmatprep.subr.mxu0 0.0
  %180 = vmatpush2.msra.mxu0 %v69
  %181 = vmatprep.subr.mxu0 0.0
  %182 = vmatpush2.msra.mxu0 %v68
  %183 = vmatprep.subr.mxu0 0.0
  %184 = vmatpush2.msra.mxu0 %v67
  %185 = vmatprep.subr.mxu0 0.0
  %186 = vmatpush2.msra.mxu0 %v66
  %187 = vmatprep.subr.mxu0 0.0
  %188 = vmatpush2.msra.mxu0 %v65
  %189 = vmatprep.subr.mxu0 0.0
  %190 = vmatpush2.msra.mxu0 %v64
  %191 = vmatprep.subr.mxu0 0.0
  %192 = vmatpush2.msra.mxu0 %v63
  %193 = vmatprep.subr.mxu0 0.0
  %194 = vmatpush2.msra.mxu0 %v62
  %195 = vmatprep.mubr.f32.mxu0 %v27
  %196 = vmatmul.mubr.f32.gmra.mxu0 %v26
  %v197 = vpop.f32.mrf.mxu0
  %v198 = vadd.f32 0.0, %v197
  %v199 = vpop.f32.mrf.mxu0
  %200 = vmatprep.mubr.f32.mxu0 %v32
  %201 = vmatmul.mubr.f32.gmra.mxu0 %v31
  %v202 = vpop.f32.mrf.mxu0
  %v203 = vadd.f32 0.0, %v202
  %v204 = vpop.f32.mrf.mxu0
  %205 = vmatprep.mubr.f32.mxu0 %v37
  %206 = vmatmul.mubr.f32.gmra.mxu0 %v36
  %v207 = vpop.f32.mrf.mxu0
  %v208 = vadd.f32 0.0, %v207
  %v209 = vpop.f32.mrf.mxu0
  %210 = vmatprep.mubr.f32.mxu0 %v42
  %211 = vmatmul.mubr.f32.gmra.mxu0 %v41
  %v212 = vpop.f32.mrf.mxu0
  %v213 = vadd.f32 0.0, %v212
  %v214 = vpop.f32.mrf.mxu0
  %215 = vdwg.mxu0
  %216 = vmatprep.subr.mxu0 0.0
  %217 = vmatpush1.msra.mxu0 %v93
  %218 = vmatprep.subr.mxu0 0.0
  %219 = vmatpush1.msra.mxu0 %v92
  %220 = vmatprep.subr.mxu0 0.0
  %221 = vmatpush1.msra.mxu0 %v91
  %222 = vmatprep.subr.mxu0 0.0
  %223 = vmatpush1.msra.mxu0 %v90
  %224 = vmatprep.subr.mxu0 0.0
  %225 = vmatpush1.msra.mxu0 %v89
  %226 = vmatprep.subr.mxu0 0.0
  %227 = vmatpush1.msra.mxu0 %v88
  %228 = vmatprep.subr.mxu0 0.0
  %229 = vmatpush1.msra.mxu0 %v87
  %230 = vmatprep.subr.mxu0 0.0
  %231 = vmatpush1.msra.mxu0 %v86
  %232 = vmatprep.subr.mxu0 0.0
  %233 = vmatpush1.msra.mxu0 %v85
  %234 = vmatprep.subr.mxu0 0.0
  %235 = vmatpush1.msra.mxu0 %v84
  %236 = vmatprep.subr.mxu0 0.0
  %237 = vmatpush1.msra.mxu0 %v83
  %238 = vmatprep.subr.mxu0 0.0
  %239 = vmatpush1.msra.mxu0 %v82
  %240 = vmatprep.subr.mxu0 0.0
  %241 = vmatpush1.msra.mxu0 %v81
  %242 = vmatprep.subr.mxu0 0.0
  %243 = vmatpush1.msra.mxu0 %v80
  %244 = vmatprep.subr.mxu0 0.0
  %245 = vmatpush1.msra.mxu0 %v79
  %246 = vmatprep.subr.mxu0 0.0
  %247 = vmatpush1.msra.mxu0 %v78
  %248 = vmatprep.subr.mxu0 0.0
  %249 = vmatpush2.msra.mxu0 %v109
  %250 = vmatprep.subr.mxu0 0.0
  %251 = vmatpush2.msra.mxu0 %v108
  %252 = vmatprep.subr.mxu0 0.0
  %253 = vmatpush2.msra.mxu0 %v107
  %254 = vmatprep.subr.mxu0 0.0
  %255 = vmatpush2.msra.mxu0 %v106
  %256 = vmatprep.subr.mxu0 0.0
  %257 = vmatpush2.msra.mxu0 %v105
  %258 = vmatprep.subr.mxu0 0.0
  %259 = vmatpush2.msra.mxu0 %v104
  %260 = vmatprep.subr.mxu0 0.0
  %261 = vmatpush2.msra.mxu0 %v103
  %262 = vmatprep.subr.mxu0 0.0
  %263 = vmatpush2.msra.mxu0 %v102
  %264 = vmatprep.subr.mxu0 0.0
  %265 = vmatpush2.msra.mxu0 %v101
  %266 = vmatprep.subr.mxu0 0.0
  %267 = vmatpush2.msra.mxu0 %v100
  %268 = vmatprep.subr.mxu0 0.0
  %269 = vmatpush2.msra.mxu0 %v99
  %270 = vmatprep.subr.mxu0 0.0
  %271 = vmatpush2.msra.mxu0 %v98
  %272 = vmatprep.subr.mxu0 0.0
  %273 = vmatpush2.msra.mxu0 %v97
  %274 = vmatprep.subr.mxu0 0.0
  %275 = vmatpush2.msra.mxu0 %v96
  %276 = vmatprep.subr.mxu0 0.0
  %277 = vmatpush2.msra.mxu0 %v95
  %278 = vmatprep.subr.mxu0 0.0
  %279 = vmatpush2.msra.mxu0 %v94
  %280 = vmatprep.mubr.f32.mxu0 %v29
  %281 = vmatmul.mubr.f32.gmra.mxu0 %v28
  %v282 = vpop.f32.mrf.mxu0
  %v283 = vadd.f32 %v198, %v282
  %v284 = vpop.f32.mrf.mxu0
  %285 = vmatprep.mubr.f32.mxu0 %v34
  %286 = vmatmul.mubr.f32.gmra.mxu0 %v33
  %v287 = vpop.f32.mrf.mxu0
  %v288 = vadd.f32 %v203, %v287
  %v289 = vpop.f32.mrf.mxu0
  %290 = vmatprep.mubr.f32.mxu0 %v39
  %291 = vmatmul.mubr.f32.gmra.mxu0 %v38
  %v292 = vpop.f32.mrf.mxu0
  %v293 = vadd.f32 %v208, %v292
  %v294 = vpop.f32.mrf.mxu0
  %295 = vmatprep.mubr.f32.mxu0 %v44
  %296 = vmatmul.mubr.f32.gmra.mxu0 %v43
  %v297 = vpop.f32.mrf.mxu0
  %v298 = vadd.f32 %v213, %v297
  %v299 = vpop.f32.mrf.mxu0
  %300 = vdwg.mxu0
  %301 = vmatprep.subr.mxu0 0.0
  %302 = vmatpush1.msra.mxu0 0.0
  %303 = vmatprep.subr.mxu0 0.0
  %304 = vmatpush1.msra.mxu0 0.0
  %305 = vmatprep.subr.mxu0 0.0
  %306 = vmatpush1.msra.mxu0 0.0
  %307 = vmatprep.subr.mxu0 0.0
  %308 = vmatpush1.msra.mxu0 0.0
  %309 = vmatprep.subr.mxu0 0.0
  %310 = vmatpush1.msra.mxu0 0.0
  %311 = vmatprep.subr.mxu0 0.0
  %312 = vmatpush1.msra.mxu0 0.0
  %313 = vmatprep.subr.mxu0 0.0
  %314 = vmatpush1.msra.mxu0 0.0
  %315 = vmatprep.subr.mxu0 0.0
  %316 = vmatpush1.msra.mxu0 0.0
  %317 = vmatprep.subr.mxu0 0.0
  %318 = vmatpush1.msra.mxu0 %v117
  %319 = vmatprep.subr.mxu0 0.0
  %320 = vmatpush1.msra.mxu0 %v116
  %321 = vmatprep.subr.mxu0 0.0
  %322 = vmatpush1.msra.mxu0 %v115
  %323 = vmatprep.subr.mxu0 0.0
  %324 = vmatpush1.msra.mxu0 %v114
  %325 = vmatprep.subr.mxu0 0.0
  %326 = vmatpush1.msra.mxu0 %v113
  %327 = vmatprep.subr.mxu0 0.0
  %328 = vmatpush1.msra.mxu0 %v112
  %329 = vmatprep.subr.mxu0 0.0
  %330 = vmatpush1.msra.mxu0 %v111
  %331 = vmatprep.subr.mxu0 0.0
  %332 = vmatpush1.msra.mxu0 %v110
  %333 = vmatprep.subr.mxu0 0.0
  %334 = vmatpush2.msra.mxu0 0.0
  %335 = vmatprep.subr.mxu0 0.0
  %336 = vmatpush2.msra.mxu0 0.0
  %337 = vmatprep.subr.mxu0 0.0
  %338 = vmatpush2.msra.mxu0 0.0
  %339 = vmatprep.subr.mxu0 0.0
  %340 = vmatpush2.msra.mxu0 0.0
  %341 = vmatprep.subr.mxu0 0.0
  %342 = vmatpush2.msra.mxu0 0.0
  %343 = vmatprep.subr.mxu0 0.0
  %344 = vmatpush2.msra.mxu0 0.0
  %345 = vmatprep.subr.mxu0 0.0
  %346 = vmatpush2.msra.mxu0 0.0
  %347 = vmatprep.subr.mxu0 0.0
  %348 = vmatpush2.msra.mxu0 0.0
  %349 = vmatprep.subr.mxu0 0.0
  %350 = vmatpush2.msra.mxu0 0.0
  %351 = vmatprep.subr.mxu0 0.0
  %352 = vmatpush2.msra.mxu0 0.0
  %353 = vmatprep.subr.mxu0 0.0
  %354 = vmatpush2.msra.mxu0 0.0
  %355 = vmatprep.subr.mxu0 0.0
  %356 = vmatpush2.msra.mxu0 0.0
  %357 = vmatprep.subr.mxu0 0.0
  %358 = vmatpush2.msra.mxu0 0.0
  %359 = vmatprep.subr.mxu0 0.0
  %360 = vmatpush2.msra.mxu0 0.0
  %361 = vmatprep.subr.mxu0 0.0
  %362 = vmatpush2.msra.mxu0 0.0
  %363 = vmatprep.subr.mxu0 0.0
  %364 = vmatpush2.msra.mxu0 0.0
  %365 = vmatprep.mubr.f32.mxu0 0.0
  %366 = vmatmul.mubr.f32.gmra.mxu0 %v120
  %v367 = vpop.f32.mrf.mxu0
  %v368 = vadd.f32 %v283, %v367
  %v369 = vpop.f32.mrf.mxu0
  %370 = vmatprep.mubr.f32.mxu0 0.0
  %371 = vmatmul.mubr.f32.gmra.mxu0 %v123
  %v372 = vpop.f32.mrf.mxu0
  %v373 = vadd.f32 %v288, %v372
  %v374 = vpop.f32.mrf.mxu0
  %375 = vmatprep.mubr.f32.mxu0 0.0
  %376 = vmatmul.mubr.f32.gmra.mxu0 %v126
  %v377 = vpop.f32.mrf.mxu0
  %v378 = vadd.f32 %v293, %v377
  %v379 = vpop.f32.mrf.mxu0
  %380 = vmatprep.mubr.f32.mxu0 0.0
  %381 = vmatmul.mubr.f32.gmra.mxu0 %v129
  %v382 = vpop.f32.mrf.mxu0
  %v383 = vadd.f32 %v298, %v382
  %v384 = vpop.f32.mrf.mxu0
  %385 = vdwg.mxu0
  %v386 = vld [vmem:[%s4] sm:$0xff]
  %v387 = vld [vmem:[%s4 + $0x8] sm:$0xff]
  %v388 = vld [vmem:[%s4 + $0x10] sm:$0xff]
  %v389 = vld [vmem:[%s4 + $0x18] sm:$0xff]
  %v390 = vld [vmem:[%s5] sm:$0xff]
  %v391 = vld [vmem:[%s5 + $0x8] sm:$0xff]
  %v392 = vld [vmem:[%s5 + $0x10] sm:$0xff]
  %v393 = vld [vmem:[%s5 + $0x18] sm:$0xff]
  %v394 = vld [vmem:[%s6] sm:$0x1]
  %v396 = vlaneseq
  %v397 = vshrl.u32 %v396, 7
  %v398 = vsub.s32 0, %v397
  %v399 = vrot.slane %v394, %v398
  %vm401 = vcmask 261120
  %v403 = vsel %vm401, %v386, 0
  %v406 = vsel %vm401, %v387, 0
  %v409 = vsel %vm401, %v388, 0
  %v412 = vsel %vm401, %v389, 0
  %414 = vmatprep.subr.mxu0 0.0
  %415 = vmatpush1.msra.mxu0 0.0
  %416 = vmatprep.subr.mxu0 0.0
  %417 = vmatpush1.msra.mxu0 0.0
  %418 = vmatprep.subr.mxu0 0.0
  %419 = vmatpush1.msra.mxu0 0.0
  %420 = vmatprep.subr.mxu0 0.0
  %421 = vmatpush1.msra.mxu0 0.0
  %422 = vmatprep.subr.mxu0 0.0
  %423 = vmatpush1.msra.mxu0 0.0
  %424 = vmatprep.subr.mxu0 0.0
  %425 = vmatpush1.msra.mxu0 0.0
  %426 = vmatprep.subr.mxu0 0.0
  %427 = vmatpush1.msra.mxu0 0.0
  %428 = vmatprep.subr.mxu0 0.0
  %429 = vmatpush1.msra.mxu0 0.0
  %430 = vmatprep.subr.mxu0 0.0
  %431 = vmatpush1.msra.mxu0 0.0
  %432 = vmatprep.subr.mxu0 0.0
  %433 = vmatpush1.msra.mxu0 0.0
  %434 = vmatprep.subr.mxu0 0.0
  %435 = vmatpush1.msra.mxu0 0.0
  %436 = vmatprep.subr.mxu0 0.0
  %437 = vmatpush1.msra.mxu0 0.0
  %438 = vmatprep.subr.mxu0 0.0
  %439 = vmatpush1.msra.mxu0 %v393
  %440 = vmatprep.subr.mxu0 0.0
  %441 = vmatpush1.msra.mxu0 %v392
  %442 = vmatprep.subr.mxu0 0.0
  %443 = vmatpush1.msra.mxu0 %v391
  %444 = vmatprep.subr.mxu0 0.0
  %445 = vmatpush1.msra.mxu0 %v390
  %446 = vmatprep.subr.mxu0 0.0
  %447 = vmatpush2.msra.mxu0 0.0
  %448 = vmatprep.subr.mxu0 0.0
  %449 = vmatpush2.msra.mxu0 0.0
  %450 = vmatprep.subr.mxu0 0.0
  %451 = vmatpush2.msra.mxu0 0.0
  %452 = vmatprep.subr.mxu0 0.0
  %453 = vmatpush2.msra.mxu0 0.0
  %454 = vmatprep.subr.mxu0 0.0
  %455 = vmatpush2.msra.mxu0 0.0
  %456 = vmatprep.subr.mxu0 0.0
  %457 = vmatpush2.msra.mxu0 0.0
  %458 = vmatprep.subr.mxu0 0.0
  %459 = vmatpush2.msra.mxu0 0.0
  %460 = vmatprep.subr.mxu0 0.0
  %461 = vmatpush2.msra.mxu0 0.0
  %462 = vmatprep.subr.mxu0 0.0
  %463 = vmatpush2.msra.mxu0 0.0
  %464 = vmatprep.subr.mxu0 0.0
  %465 = vmatpush2.msra.mxu0 0.0
  %466 = vmatprep.subr.mxu0 0.0
  %467 = vmatpush2.msra.mxu0 0.0
  %468 = vmatprep.subr.mxu0 0.0
  %469 = vmatpush2.msra.mxu0 0.0
  %470 = vmatprep.subr.mxu0 0.0
  %471 = vmatpush2.msra.mxu0 0.0
  %472 = vmatprep.subr.mxu0 0.0
  %473 = vmatpush2.msra.mxu0 0.0
  %474 = vmatprep.subr.mxu0 0.0
  %475 = vmatpush2.msra.mxu0 0.0
  %476 = vmatprep.subr.mxu0 0.0
  %477 = vmatpush2.msra.mxu0 0.0
  %478 = vmatprep.mubr.f32.mxu0 0.0
  %479 = vmatmul.mubr.f32.gmra.mxu0 %v403
  %v480 = vpop.f32.mrf.mxu0
  %v481 = vadd.f32 %v399, %v480
  %v482 = vpop.f32.mrf.mxu0
  %483 = vmatprep.mubr.f32.mxu0 0.0
  %484 = vmatmul.mubr.f32.gmra.mxu0 %v406
  %v485 = vpop.f32.mrf.mxu0
  %v486 = vadd.f32 %v399, %v485
  %v487 = vpop.f32.mrf.mxu0
  %488 = vmatprep.mubr.f32.mxu0 0.0
  %489 = vmatmul.mubr.f32.gmra.mxu0 %v409
  %v490 = vpop.f32.mrf.mxu0
  %v491 = vadd.f32 %v399, %v490
  %v492 = vpop.f32.mrf.mxu0
  %493 = vmatprep.mubr.f32.mxu0 0.0
  %494 = vmatmul.mubr.f32.gmra.mxu0 %v412
  %v495 = vpop.f32.mrf.mxu0
  %v496 = vadd.f32 %v399, %v495
  %v497 = vpop.f32.mrf.mxu0
  %498 = vdwg.mxu0
  %v499 = vld [vmem:[%s2] sm:$0x1]
  %v500 = vld [vmem:[%s3] sm:$0x1]
  %v501 = vsel %vm118, %v368, 0.0
  %v502 = vsel %vm118, %v373, 0.0
  %v503 = vadd.f32 %v501, %v502
  %v504 = vsel %vm118, %v378, 0.0
  %v505 = vadd.f32 %v503, %v504
  %v506 = vsel %vm118, %v383, 0.0
  %v507 = vadd.f32 %v505, %v506
  %v508 = vrot.slane %v507, 4
  %v509 = vadd.f32 %v507, %v508
  %v510 = vrot.slane %v509, 2
  %v511 = vadd.f32 %v509, %v510
  %v512 = vrot.slane %v511, 1
  %v513 = vadd.f32 %v511, %v512
  %v514 = vrcp.pop 32.0
  %v515 = vmul.f32 %v513, %v514
  %v516 = vsub.f32 %v368, %v515
  %v517 = vsub.f32 %v373, %v515
  %v518 = vsub.f32 %v378, %v515
  %v519 = vsub.f32 %v383, %v515
  %v520 = vmul.f32 %v516, %v516
  %v521 = vmul.f32 %v517, %v517
  %v522 = vmul.f32 %v518, %v518
  %v523 = vmul.f32 %v519, %v519
  %v524 = vsel %vm118, %v520, 0.0
  %v525 = vsel %vm118, %v521, 0.0
  %v526 = vadd.f32 %v524, %v525
  %v527 = vsel %vm118, %v522, 0.0
  %v528 = vadd.f32 %v526, %v527
  %v529 = vsel %vm118, %v523, 0.0
  %v530 = vadd.f32 %v528, %v529
  %v531 = vrot.slane %v530, 4
  %v532 = vadd.f32 %v530, %v531
  %v533 = vrot.slane %v532, 2
  %v534 = vadd.f32 %v532, %v533
  %v535 = vrot.slane %v534, 1
  %v536 = vadd.f32 %v534, %v535
  %v537 = vmul.f32 %v536, %v514
  %v538 = vadd.f32 %v537, 1e-05
  %v539 = vrsqrt.pop %v538
  %v540 = vmul.f32 %v516, %v539
  %v541 = vmul.f32 %v517, %v539
  %v542 = vmul.f32 %v518, %v539
  %v543 = vmul.f32 %v519, %v539
  %v545 = vlaneseq
  %v546 = vshrl.u32 %v545, 7
  %v547 = vsub.s32 0, %v546
  %v548 = vrot.slane %v499, %v547
  %v550 = vmul.f32 %v540, %v548
  %v551 = vmul.f32 %v541, %v548
  %v552 = vmul.f32 %v542, %v548
  %v553 = vmul.f32 %v543, %v548
  %v555 = vlaneseq
  %v556 = vshrl.u32 %v555, 7
  %v557 = vsub.s32 0, %v556
  %v558 = vrot.slane %v500, %v557
  %v560 = vadd.f32 %v550, %v558
  %v561 = vadd.f32 %v551, %v558
  %v562 = vadd.f32 %v552, %v558
  %v563 = vadd.f32 %v553, %v558
  %v564 = vadd.f32 %v560, %v481
  %v565 = vadd.f32 %v561, %v486
  %v566 = vadd.f32 %v562, %v491
  %v567 = vadd.f32 %v563, %v496
  %v568 = vmax.f32 %v564, 0.0
  %v569 = vmax.f32 %v565, 0.0
  %v570 = vmax.f32 %v566, 0.0
  %v571 = vmax.f32 %v567, 0.0
  %572 = vst.msk [vmem:[%s7] sm:$0xff] %vm118, %v568
  %573 = vst.msk [vmem:[%s7 + $0x8] sm:$0xff] %vm118, %v569
  %574 = vst.msk [vmem:[%s7 + $0x10] sm:$0xff] %vm118, %v570
  %575 = vst.msk [vmem:[%s7 + $0x18] sm:$0xff] %vm118, %v571
  // Predicated region
  $region30: #{my_resnet_forward.18} parent=0 // pred_check
    _
  $region31: #{my_resnet_forward.18} parent=0 // pred_check_branch
    %577 = sbr.rel (0) target = $region33
  $region32: #{my_resnet_forward.18} parent=0 // pred_region
    _
  $region33: #{my_resnet_forward.18} parent=0 // pred_fallthru
    _
  // Predicated region
  $region34: #{my_resnet_forward.18} parent=0 // pred_check
    _
  $region35: #{my_resnet_forward.18} parent=0 // pred_check_branch
    %579 = sbr.rel (0) target = $region37
  $region36: #{my_resnet_forward.18} parent=0 // pred_region
    _
  $region37: #{my_resnet_forward.18} parent=0 // pred_fallthru
    _

// kernel: my_resnet_forward.20
$region0: #{my_resnet_forward.20}
  #allocation0 [shape = 'u32[]', space=smem, size = 0x4, offset = 0x4, fixed_abs, tag = 'smem constant byte address 0x4 - core index']
  #allocation1 [shape = 'u32[144,128]{1,0:T(1,128)}', space=vmem, size = 0x12000, scoped, tag = 'internal scratch']
  %s0 = inlined_call_operand.vmem [shape: f32[32,576], index: 0, kind: input, shape index: {}]
  %s1 = inlined_call_operand.vmem [shape: f32[576,64], index: 1, kind: input, shape index: {}]
  %s2 = inlined_call_operand.vmem [shape: f32[1,64], index: 2, kind: input, shape index: {}]
  %s3 = inlined_call_operand.vmem [shape: f32[1,64], index: 3, kind: input, shape index: {}]
  %s4 = inlined_call_operand.vmem [shape: f32[32,64], index: 4, kind: input, shape index: {}]
  %s5 = inlined_call_operand.vmem [shape: f32[32,64], index: 5, kind: output, shape index: {}]
  %s6 = sld [smem:[#allocation0]]
  $region30: #{my_resnet_forward.20} parent=0
    _
  %s8 = ssub.s32 1, %s6
  %s9 = scalar_select 0, %s8, %s6
  // Predicated region
  $region2: #{my_resnet_forward.20} parent=0 // pred_check
    _
  $region3: #{my_resnet_forward.20} parent=0 // pred_check_branch
    %11 = sbr.rel (0) target = $region5
  $region4: #{my_resnet_forward.20} parent=0 // pred_region
    _
  $region5: #{my_resnet_forward.20} parent=0 // pred_fallthru
    _
  // Predicated region
  $region6: #{my_resnet_forward.20} parent=0 // pred_check
    _
  $region7: #{my_resnet_forward.20} parent=0 // pred_check_branch
    %13 = sbr.rel (0) target = $region9
  $region8: #{my_resnet_forward.20} parent=0 // pred_region
    _
  $region9: #{my_resnet_forward.20} parent=0 // pred_fallthru
    _
  // Predicated region
  $region10: #{my_resnet_forward.20} parent=0 // pred_check
    _
  $region11: #{my_resnet_forward.20} parent=0 // pred_check_branch
    %15 = sbr.rel (0) target = $region13
  $region12: #{my_resnet_forward.20} parent=0 // pred_region
    _
  $region13: #{my_resnet_forward.20} parent=0 // pred_fallthru
    _
  // Predicated region
  $region14: #{my_resnet_forward.20} parent=0 // pred_check
    _
  $region15: #{my_resnet_forward.20} parent=0 // pred_check_branch
    %17 = sbr.rel (0) target = $region17
  $region16: #{my_resnet_forward.20} parent=0 // pred_region
    _
  $region17: #{my_resnet_forward.20} parent=0 // pred_fallthru
    _
  // Predicated region
  $region18: #{my_resnet_forward.20} parent=0 // pred_check
    _
  $region19: #{my_resnet_forward.20} parent=0 // pred_check_branch
    %19 = sbr.rel (0) target = $region21
  $region20: #{my_resnet_forward.20} parent=0 // pred_region
    _
  $region21: #{my_resnet_forward.20} parent=0 // pred_fallthru
    _
  %v20 = vld [vmem:[%s0] sm:$0xff]
  %v21 = vld [vmem:[%s0 + $0x8] sm:$0xff]
  %v22 = vld [vmem:[%s0 + $0x10] sm:$0xff]
  %v23 = vld [vmem:[%s0 + $0x18] sm:$0xff]
  %v24 = vld [vmem:[%s0 + $0x20] sm:$0xff]
  %v25 = vld [vmem:[%s0 + $0x28] sm:$0xff]
  %v26 = vld [vmem:[%s0 + $0x30] sm:$0xff]
  %v27 = vld [vmem:[%s0 + $0x38] sm:$0xff]
  %v28 = vld [vmem:[%s0 + $0x40] sm:$0xff]
  %v29 = vld [vmem:[%s0 + $0x48] sm:$0xff]
  %v30 = vld [vmem:[%s0 + $0x50] sm:$0xff]
  %v31 = vld [vmem:[%s0 + $0x58] sm:$0xff]
  %v32 = vld [vmem:[%s0 + $0x60] sm:$0xff]
  %v33 = vld [vmem:[%s0 + $0x68] sm:$0xff]
  %v34 = vld [vmem:[%s0 + $0x70] sm:$0xff]
  %v35 = vld [vmem:[%s0 + $0x78] sm:$0xff]
  %v36 = vld [vmem:[%s0 + $0x80] sm:$0xff]
  %v37 = vld [vmem:[%s0 + $0x88] sm:$0xff]
  %v38 = vld [vmem:[%s0 + $0x90] sm:$0xff]
  %v39 = vld [vmem:[%s0 + $0x98] sm:$0xff]
  %v40 = vld [vmem:[%s1] sm:$0xff]
  %v41 = vld [vmem:[%s1 + $0x8] sm:$0xff]
  %v42 = vld [vmem:[%s1 + $0x10] sm:$0xff]
  %v43 = vld [vmem:[%s1 + $0x18] sm:$0xff]
  %v44 = vld [vmem:[%s1 + $0x20] sm:$0xff]
  %v45 = vld [vmem:[%s1 + $0x28] sm:$0xff]
  %v46 = vld [vmem:[%s1 + $0x30] sm:$0xff]
  %v47 = vld [vmem:[%s1 + $0x38] sm:$0xff]
  %v48 = vld [vmem:[%s1 + $0x40] sm:$0xff]
  %v49 = vld [vmem:[%s1 + $0x48] sm:$0xff]
  %v50 = vld [vmem:[%s1 + $0x50] sm:$0xff]
  %v51 = vld [vmem:[%s1 + $0x58] sm:$0xff]
  %v52 = vld [vmem:[%s1 + $0x60] sm:$0xff]
  %v53 = vld [vmem:[%s1 + $0x68] sm:$0xff]
  %v54 = vld [vmem:[%s1 + $0x70] sm:$0xff]
  %v55 = vld [vmem:[%s1 + $0x78] sm:$0xff]
  %v56 = vld [vmem:[%s1 + $0x80] sm:$0xff]
  %v57 = vld [vmem:[%s1 + $0x88] sm:$0xff]
  %v58 = vld [vmem:[%s1 + $0x90] sm:$0xff]
  %v59 = vld [vmem:[%s1 + $0x98] sm:$0xff]
  %v60 = vld [vmem:[%s1 + $0xa0] sm:$0xff]
  %v61 = vld [vmem:[%s1 + $0xa8] sm:$0xff]
  %v62 = vld [vmem:[%s1 + $0xb0] sm:$0xff]
  %v63 = vld [vmem:[%s1 + $0xb8] sm:$0xff]
  %v64 = vld [vmem:[%s1 + $0xc0] sm:$0xff]
  %v65 = vld [vmem:[%s1 + $0xc8] sm:$0xff]
  %v66 = vld [vmem:[%s1 + $0xd0] sm:$0xff]
  %v67 = vld [vmem:[%s1 + $0xd8] sm:$0xff]
  %v68 = vld [vmem:[%s1 + $0xe0] sm:$0xff]
  %v69 = vld [vmem:[%s1 + $0xe8] sm:$0xff]
  %v70 = vld [vmem:[%s1 + $0xf0] sm:$0xff]
  %v71 = vld [vmem:[%s1 + $0xf8] sm:$0xff]
  %v72 = vld [vmem:[%s1 + $0x100] sm:$0xff]
  %v73 = vld [vmem:[%s1 + $0x108] sm:$0xff]
  %v74 = vld [vmem:[%s1 + $0x110] sm:$0xff]
  %v75 = vld [vmem:[%s1 + $0x118] sm:$0xff]
  %v76 = vld [vmem:[%s1 + $0x120] sm:$0xff]
  %v77 = vld [vmem:[%s1 + $0x128] sm:$0xff]
  %v78 = vld [vmem:[%s1 + $0x130] sm:$0xff]
  %v79 = vld [vmem:[%s1 + $0x138] sm:$0xff]
  %v80 = vld [vmem:[%s1 + $0x140] sm:$0xff]
  %v81 = vld [vmem:[%s1 + $0x148] sm:$0xff]
  %v82 = vld [vmem:[%s1 + $0x150] sm:$0xff]
  %v83 = vld [vmem:[%s1 + $0x158] sm:$0xff]
  %v84 = vld [vmem:[%s1 + $0x160] sm:$0xff]
  %v85 = vld [vmem:[%s1 + $0x168] sm:$0xff]
  %v86 = vld [vmem:[%s1 + $0x170] sm:$0xff]
  %v87 = vld [vmem:[%s1 + $0x178] sm:$0xff]
  %v88 = vld [vmem:[%s1 + $0x180] sm:$0xff]
  %v89 = vld [vmem:[%s1 + $0x188] sm:$0xff]
  %v90 = vld [vmem:[%s1 + $0x190] sm:$0xff]
  %v91 = vld [vmem:[%s1 + $0x198] sm:$0xff]
  %v92 = vld [vmem:[%s1 + $0x1a0] sm:$0xff]
  %v93 = vld [vmem:[%s1 + $0x1a8] sm:$0xff]
  %v94 = vld [vmem:[%s1 + $0x1b0] sm:$0xff]
  %v95 = vld [vmem:[%s1 + $0x1b8] sm:$0xff]
  %v96 = vld [vmem:[%s1 + $0x1c0] sm:$0xff]
  %v97 = vld [vmem:[%s1 + $0x1c8] sm:$0xff]
  %v98 = vld [vmem:[%s1 + $0x1d0] sm:$0xff]
  %v99 = vld [vmem:[%s1 + $0x1d8] sm:$0xff]
  %v100 = vld [vmem:[%s1 + $0x1e0] sm:$0xff]
  %v101 = vld [vmem:[%s1 + $0x1e8] sm:$0xff]
  %v102 = vld [vmem:[%s1 + $0x1f0] sm:$0xff]
  %v103 = vld [vmem:[%s1 + $0x1f8] sm:$0xff]
  %v104 = vld [vmem:[%s1 + $0x200] sm:$0xff]
  %v105 = vld [vmem:[%s1 + $0x208] sm:$0xff]
  %v106 = vld [vmem:[%s1 + $0x210] sm:$0xff]
  %v107 = vld [vmem:[%s1 + $0x218] sm:$0xff]
  %v108 = vld [vmem:[%s1 + $0x220] sm:$0xff]
  %v109 = vld [vmem:[%s1 + $0x228] sm:$0xff]
  %v110 = vld [vmem:[%s1 + $0x230] sm:$0xff]
  %v111 = vld [vmem:[%s1 + $0x238] sm:$0xff]
  %vm112 = vcmask 523264
  %v114 = vsel %vm112, %v24, 0
  %v117 = vsel %vm112, %v29, 0
  %v120 = vsel %vm112, %v34, 0
  %v123 = vsel %vm112, %v39, 0
  %125 = vmatprep.subr.mxu0 0.0
  %126 = vmatpush1.msra.mxu0 %v55
  %127 = vmatprep.subr.mxu0 0.0
  %128 = vmatpush1.msra.mxu0 %v54
  %129 = vmatprep.subr.mxu0 0.0
  %130 = vmatpush1.msra.mxu0 %v53
  %131 = vmatprep.subr.mxu0 0.0
  %132 = vmatpush1.msra.mxu0 %v52
  %133 = vmatprep.subr.mxu0 0.0
  %134 = vmatpush1.msra.mxu0 %v51
  %135 = vmatprep.subr.mxu0 0.0
  %136 = vmatpush1.msra.mxu0 %v50
  %137 = vmatprep.subr.mxu0 0.0
  %138 = vmatpush1.msra.mxu0 %v49
  %139 = vmatprep.subr.mxu0 0.0
  %140 = vmatpush1.msra.mxu0 %v48
  %141 = vmatprep.subr.mxu0 0.0
  %142 = vmatpush1.msra.mxu0 %v47
  %143 = vmatprep.subr.mxu0 0.0
  %144 = vmatpush1.msra.mxu0 %v46
  %145 = vmatprep.subr.mxu0 0.0
  %146 = vmatpush1.msra.mxu0 %v45
  %147 = vmatprep.subr.mxu0 0.0
  %148 = vmatpush1.msra.mxu0 %v44
  %149 = vmatprep.subr.mxu0 0.0
  %150 = vmatpush1.msra.mxu0 %v43
  %151 = vmatprep.subr.mxu0 0.0
  %152 = vmatpush1.msra.mxu0 %v42
  %153 = vmatprep.subr.mxu0 0.0
  %154 = vmatpush1.msra.mxu0 %v41
  %155 = vmatprep.subr.mxu0 0.0
  %156 = vmatpush1.msra.mxu0 %v40
  %157 = vmatprep.subr.mxu0 0.0
  %158 = vmatpush2.msra.mxu0 %v71
  %159 = vmatprep.subr.mxu0 0.0
  %160 = vmatpush2.msra.mxu0 %v70
  %161 = vmatprep.subr.mxu0 0.0
  %162 = vmatpush2.msra.mxu0 %v69
  %163 = vmatprep.subr.mxu0 0.0
  %164 = vmatpush2.msra.mxu0 %v68
  %165 = vmatprep.subr.mxu0 0.0
  %166 = vmatpush2.msra.mxu0 %v67
  %167 = vmatprep.subr.mxu0 0.0
  %168 = vmatpush2.msra.mxu0 %v66
  %169 = vmatprep.subr.mxu0 0.0
  %170 = vmatpush2.msra.mxu0 %v65
  %171 = vmatprep.subr.mxu0 0.0
  %172 = vmatpush2.msra.mxu0 %v64
  %173 = vmatprep.subr.mxu0 0.0
  %174 = vmatpush2.msra.mxu0 %v63
  %175 = vmatprep.subr.mxu0 0.0
  %176 = vmatpush2.msra.mxu0 %v62
  %177 = vmatprep.subr.mxu0 0.0
  %178 = vmatpush2.msra.mxu0 %v61
  %179 = vmatprep.subr.mxu0 0.0
  %180 = vmatpush2.msra.mxu0 %v60
  %181 = vmatprep.subr.mxu0 0.0
  %182 = vmatpush2.msra.mxu0 %v59
  %183 = vmatprep.subr.mxu0 0.0
  %184 = vmatpush2.msra.mxu0 %v58
  %185 = vmatprep.subr.mxu0 0.0
  %186 = vmatpush2.msra.mxu0 %v57
  %187 = vmatprep.subr.mxu0 0.0
  %188 = vmatpush2.msra.mxu0 %v56
  %189 = vmatprep.mubr.f32.mxu0 %v21
  %190 = vmatmul.mubr.f32.gmra.mxu0 %v20
  %v191 = vpop.f32.mrf.mxu0
  %v192 = vadd.f32 0.0, %v191
  %v193 = vpop.f32.mrf.mxu0
  %194 = vmatprep.mubr.f32.mxu0 %v26
  %195 = vmatmul.mubr.f32.gmra.mxu0 %v25
  %v196 = vpop.f32.mrf.mxu0
  %v197 = vadd.f32 0.0, %v196
  %v198 = vpop.f32.mrf.mxu0
  %199 = vmatprep.mubr.f32.mxu0 %v31
  %200 = vmatmul.mubr.f32.gmra.mxu0 %v30
  %v201 = vpop.f32.mrf.mxu0
  %v202 = vadd.f32 0.0, %v201
  %v203 = vpop.f32.mrf.mxu0
  %204 = vmatprep.mubr.f32.mxu0 %v36
  %205 = vmatmul.mubr.f32.gmra.mxu0 %v35
  %v206 = vpop.f32.mrf.mxu0
  %v207 = vadd.f32 0.0, %v206
  %v208 = vpop.f32.mrf.mxu0
  %209 = vdwg.mxu0
  %210 = vmatprep.subr.mxu0 0.0
  %211 = vmatpush1.msra.mxu0 %v87
  %212 = vmatprep.subr.mxu0 0.0
  %213 = vmatpush1.msra.mxu0 %v86
  %214 = vmatprep.subr.mxu0 0.0
  %215 = vmatpush1.msra.mxu0 %v85
  %216 = vmatprep.subr.mxu0 0.0
  %217 = vmatpush1.msra.mxu0 %v84
  %218 = vmatprep.subr.mxu0 0.0
  %219 = vmatpush1.msra.mxu0 %v83
  %220 = vmatprep.subr.mxu0 0.0
  %221 = vmatpush1.msra.mxu0 %v82
  %222 = vmatprep.subr.mxu0 0.0
  %223 = vmatpush1.msra.mxu0 %v81
  %224 = vmatprep.subr.mxu0 0.0
  %225 = vmatpush1.msra.mxu0 %v80
  %226 = vmatprep.subr.mxu0 0.0
  %227 = vmatpush1.msra.mxu0 %v79
  %228 = vmatprep.subr.mxu0 0.0
  %229 = vmatpush1.msra.mxu0 %v78
  %230 = vmatprep.subr.mxu0 0.0
  %231 = vmatpush1.msra.mxu0 %v77
  %232 = vmatprep.subr.mxu0 0.0
  %233 = vmatpush1.msra.mxu0 %v76
  %234 = vmatprep.subr.mxu0 0.0
  %235 = vmatpush1.msra.mxu0 %v75
  %236 = vmatprep.subr.mxu0 0.0
  %237 = vmatpush1.msra.mxu0 %v74
  %238 = vmatprep.subr.mxu0 0.0
  %239 = vmatpush1.msra.mxu0 %v73
  %240 = vmatprep.subr.mxu0 0.0
  %241 = vmatpush1.msra.mxu0 %v72
  %242 = vmatprep.subr.mxu0 0.0
  %243 = vmatpush2.msra.mxu0 %v103
  %244 = vmatprep.subr.mxu0 0.0
  %245 = vmatpush2.msra.mxu0 %v102
  %246 = vmatprep.subr.mxu0 0.0
  %247 = vmatpush2.msra.mxu0 %v101
  %248 = vmatprep.subr.mxu0 0.0
  %249 = vmatpush2.msra.mxu0 %v100
  %250 = vmatprep.subr.mxu0 0.0
  %251 = vmatpush2.msra.mxu0 %v99
  %252 = vmatprep.subr.mxu0 0.0
  %253 = vmatpush2.msra.mxu0 %v98
  %254 = vmatprep.subr.mxu0 0.0
  %255 = vmatpush2.msra.mxu0 %v97
  %256 = vmatprep.subr.mxu0 0.0
  %257 = vmatpush2.msra.mxu0 %v96
  %258 = vmatprep.subr.mxu0 0.0
  %259 = vmatpush2.msra.mxu0 %v95
  %260 = vmatprep.subr.mxu0 0.0
  %261 = vmatpush2.msra.mxu0 %v94
  %262 = vmatprep.subr.mxu0 0.0
  %263 = vmatpush2.msra.mxu0 %v93
  %264 = vmatprep.subr.mxu0 0.0
  %265 = vmatpush2.msra.mxu0 %v92
  %266 = vmatprep.subr.mxu0 0.0
  %267 = vmatpush2.msra.mxu0 %v91
  %268 = vmatprep.subr.mxu0 0.0
  %269 = vmatpush2.msra.mxu0 %v90
  %270 = vmatprep.subr.mxu0 0.0
  %271 = vmatpush2.msra.mxu0 %v89
  %272 = vmatprep.subr.mxu0 0.0
  %273 = vmatpush2.msra.mxu0 %v88
  %274 = vmatprep.mubr.f32.mxu0 %v23
  %275 = vmatmul.mubr.f32.gmra.mxu0 %v22
  %v276 = vpop.f32.mrf.mxu0
  %v277 = vadd.f32 %v192, %v276
  %v278 = vpop.f32.mrf.mxu0
  %279 = vmatprep.mubr.f32.mxu0 %v28
  %280 = vmatmul.mubr.f32.gmra.mxu0 %v27
  %v281 = vpop.f32.mrf.mxu0
  %v282 = vadd.f32 %v197, %v281
  %v283 = vpop.f32.mrf.mxu0
  %284 = vmatprep.mubr.f32.mxu0 %v33
  %285 = vmatmul.mubr.f32.gmra.mxu0 %v32
  %v286 = vpop.f32.mrf.mxu0
  %v287 = vadd.f32 %v202, %v286
  %v288 = vpop.f32.mrf.mxu0
  %289 = vmatprep.mubr.f32.mxu0 %v38
  %290 = vmatmul.mubr.f32.gmra.mxu0 %v37
  %v291 = vpop.f32.mrf.mxu0
  %v292 = vadd.f32 %v207, %v291
  %v293 = vpop.f32.mrf.mxu0
  %294 = vdwg.mxu0
  %295 = vmatprep.subr.mxu0 0.0
  %296 = vmatpush1.msra.mxu0 0.0
  %297 = vmatprep.subr.mxu0 0.0
  %298 = vmatpush1.msra.mxu0 0.0
  %299 = vmatprep.subr.mxu0 0.0
  %300 = vmatpush1.msra.mxu0 0.0
  %301 = vmatprep.subr.mxu0 0.0
  %302 = vmatpush1.msra.mxu0 0.0
  %303 = vmatprep.subr.mxu0 0.0
  %304 = vmatpush1.msra.mxu0 0.0
  %305 = vmatprep.subr.mxu0 0.0
  %306 = vmatpush1.msra.mxu0 0.0
  %307 = vmatprep.subr.mxu0 0.0
  %308 = vmatpush1.msra.mxu0 0.0
  %309 = vmatprep.subr.mxu0 0.0
  %310 = vmatpush1.msra.mxu0 0.0
  %311 = vmatprep.subr.mxu0 0.0
  %312 = vmatpush1.msra.mxu0 %v111
  %313 = vmatprep.subr.mxu0 0.0
  %314 = vmatpush1.msra.mxu0 %v110
  %315 = vmatprep.subr.mxu0 0.0
  %316 = vmatpush1.msra.mxu0 %v109
  %317 = vmatprep.subr.mxu0 0.0
  %318 = vmatpush1.msra.mxu0 %v108
  %319 = vmatprep.subr.mxu0 0.0
  %320 = vmatpush1.msra.mxu0 %v107
  %321 = vmatprep.subr.mxu0 0.0
  %322 = vmatpush1.msra.mxu0 %v106
  %323 = vmatprep.subr.mxu0 0.0
  %324 = vmatpush1.msra.mxu0 %v105
  %325 = vmatprep.subr.mxu0 0.0
  %326 = vmatpush1.msra.mxu0 %v104
  %327 = vmatprep.subr.mxu0 0.0
  %328 = vmatpush2.msra.mxu0 0.0
  %329 = vmatprep.subr.mxu0 0.0
  %330 = vmatpush2.msra.mxu0 0.0
  %331 = vmatprep.subr.mxu0 0.0
  %332 = vmatpush2.msra.mxu0 0.0
  %333 = vmatprep.subr.mxu0 0.0
  %334 = vmatpush2.msra.mxu0 0.0
  %335 = vmatprep.subr.mxu0 0.0
  %336 = vmatpush2.msra.mxu0 0.0
  %337 = vmatprep.subr.mxu0 0.0
  %338 = vmatpush2.msra.mxu0 0.0
  %339 = vmatprep.subr.mxu0 0.0
  %340 = vmatpush2.msra.mxu0 0.0
  %341 = vmatprep.subr.mxu0 0.0
  %342 = vmatpush2.msra.mxu0 0.0
  %343 = vmatprep.subr.mxu0 0.0
  %344 = vmatpush2.msra.mxu0 0.0
  %345 = vmatprep.subr.mxu0 0.0
  %346 = vmatpush2.msra.mxu0 0.0
  %347 = vmatprep.subr.mxu0 0.0
  %348 = vmatpush2.msra.mxu0 0.0
  %349 = vmatprep.subr.mxu0 0.0
  %350 = vmatpush2.msra.mxu0 0.0
  %351 = vmatprep.subr.mxu0 0.0
  %352 = vmatpush2.msra.mxu0 0.0
  %353 = vmatprep.subr.mxu0 0.0
  %354 = vmatpush2.msra.mxu0 0.0
  %355 = vmatprep.subr.mxu0 0.0
  %356 = vmatpush2.msra.mxu0 0.0
  %357 = vmatprep.subr.mxu0 0.0
  %358 = vmatpush2.msra.mxu0 0.0
  %359 = vmatprep.mubr.f32.mxu0 0.0
  %360 = vmatmul.mubr.f32.gmra.mxu0 %v114
  %v361 = vpop.f32.mrf.mxu0
  %v362 = vadd.f32 %v277, %v361
  %v363 = vpop.f32.mrf.mxu0
  %364 = vmatprep.mubr.f32.mxu0 0.0
  %365 = vmatmul.mubr.f32.gmra.mxu0 %v117
  %v366 = vpop.f32.mrf.mxu0
  %v367 = vadd.f32 %v282, %v366
  %v368 = vpop.f32.mrf.mxu0
  %369 = vmatprep.mubr.f32.mxu0 0.0
  %370 = vmatmul.mubr.f32.gmra.mxu0 %v120
  %v371 = vpop.f32.mrf.mxu0
  %v372 = vadd.f32 %v287, %v371
  %v373 = vpop.f32.mrf.mxu0
  %374 = vmatprep.mubr.f32.mxu0 0.0
  %375 = vmatmul.mubr.f32.gmra.mxu0 %v123
  %v376 = vpop.f32.mrf.mxu0
  %v377 = vadd.f32 %v292, %v376
  %v378 = vpop.f32.mrf.mxu0
  %379 = vdwg.mxu0
  %v380 = vld [vmem:[%s2] sm:$0x1]
  %v381 = vld [vmem:[%s3] sm:$0x1]
  %v382 = vld [vmem:[%s4] sm:$0xff]
  %v383 = vld [vmem:[%s4 + $0x8] sm:$0xff]
  %v384 = vld [vmem:[%s4 + $0x10] sm:$0xff]
  %v385 = vld [vmem:[%s4 + $0x18] sm:$0xff]
  %v386 = vsel %vm112, %v362, 0.0
  %v387 = vsel %vm112, %v367, 0.0
  %v388 = vadd.f32 %v386, %v387
  %v389 = vsel %vm112, %v372, 0.0
  %v390 = vadd.f32 %v388, %v389
  %v391 = vsel %vm112, %v377, 0.0
  %v392 = vadd.f32 %v390, %v391
  %v393 = vrot.slane %v392, 4
  %v394 = vadd.f32 %v392, %v393
  %v395 = vrot.slane %v394, 2
  %v396 = vadd.f32 %v394, %v395
  %v397 = vrot.slane %v396, 1
  %v398 = vadd.f32 %v396, %v397
  %v399 = vrcp.pop 32.0
  %v400 = vmul.f32 %v398, %v399
  %v401 = vsub.f32 %v362, %v400
  %v402 = vsub.f32 %v367, %v400
  %v403 = vsub.f32 %v372, %v400
  %v404 = vsub.f32 %v377, %v400
  %v405 = vmul.f32 %v401, %v401
  %v406 = vmul.f32 %v402, %v402
  %v407 = vmul.f32 %v403, %v403
  %v408 = vmul.f32 %v404, %v404
  %v409 = vsel %vm112, %v405, 0.0
  %v410 = vsel %vm112, %v406, 0.0
  %v411 = vadd.f32 %v409, %v410
  %v412 = vsel %vm112, %v407, 0.0
  %v413 = vadd.f32 %v411, %v412
  %v414 = vsel %vm112, %v408, 0.0
  %v415 = vadd.f32 %v413, %v414
  %v416 = vrot.slane %v415, 4
  %v417 = vadd.f32 %v415, %v416
  %v418 = vrot.slane %v417, 2
  %v419 = vadd.f32 %v417, %v418
  %v420 = vrot.slane %v419, 1
  %v421 = vadd.f32 %v419, %v420
  %v422 = vmul.f32 %v421, %v399
  %v423 = vadd.f32 %v422, 1e-05
  %v424 = vrsqrt.pop %v423
  %v425 = vmul.f32 %v401, %v424
  %v426 = vmul.f32 %v402, %v424
  %v427 = vmul.f32 %v403, %v424
  %v428 = vmul.f32 %v404, %v424
  %v430 = vlaneseq
  %v431 = vshrl.u32 %v430, 7
  %v432 = vsub.s32 0, %v431
  %v433 = vrot.slane %v380, %v432
  %v435 = vmul.f32 %v425, %v433
  %v436 = vmul.f32 %v426, %v433
  %v437 = vmul.f32 %v427, %v433
  %v438 = vmul.f32 %v428, %v433
  %v440 = vlaneseq
  %v441 = vshrl.u32 %v440, 7
  %v442 = vsub.s32 0, %v441
  %v443 = vrot.slane %v381, %v442
  %v445 = vadd.f32 %v435, %v443
  %v446 = vadd.f32 %v436, %v443
  %v447 = vadd.f32 %v437, %v443
  %v448 = vadd.f32 %v438, %v443
  %v449 = vadd.f32 %v445, %v382
  %v450 = vadd.f32 %v446, %v383
  %v451 = vadd.f32 %v447, %v384
  %v452 = vadd.f32 %v448, %v385
  %v453 = vmax.f32 %v449, 0.0
  %v454 = vmax.f32 %v450, 0.0
  %v455 = vmax.f32 %v451, 0.0
  %v456 = vmax.f32 %v452, 0.0
  %457 = vst.msk [vmem:[%s5] sm:$0xff] %vm112, %v453
  %458 = vst.msk [vmem:[%s5 + $0x8] sm:$0xff] %vm112, %v454
  %459 = vst.msk [vmem:[%s5 + $0x10] sm:$0xff] %vm112, %v455
  %460 = vst.msk [vmem:[%s5 + $0x18] sm:$0xff] %vm112, %v456
  // Predicated region
  $region22: #{my_resnet_forward.20} parent=0 // pred_check
    _
  $region23: #{my_resnet_forward.20} parent=0 // pred_check_branch
    %462 = sbr.rel (0) target = $region25
  $region24: #{my_resnet_forward.20} parent=0 // pred_region
    _
  $region25: #{my_resnet_forward.20} parent=0 // pred_fallthru
    _
  // Predicated region
  $region26: #{my_resnet_forward.20} parent=0 // pred_check
    _
  $region27: #{my_resnet_forward.20} parent=0 // pred_check_branch
    %464 = sbr.rel (0) target = $region29
  $region28: #{my_resnet_forward.20} parent=0 // pred_region
    _
  $region29: #{my_resnet_forward.20} parent=0 // pred_fallthru
    _

// kernel: my_resnet_forward.21
$region0: #{my_resnet_forward.21}
  #allocation0 [shape = 'u32[]', space=smem, size = 0x4, offset = 0x4, fixed_abs, tag = 'smem constant byte address 0x4 - core index']
  #allocation1 [shape = 'u32[144,128]{1,0:T(1,128)}', space=vmem, size = 0x12000, scoped, tag = 'internal scratch']
  %s0 = inlined_call_operand.vmem [shape: f32[2,16,64], index: 0, kind: input, shape index: {}]
  %s1 = inlined_call_operand.vmem [shape: f32[64,10], index: 1, kind: input, shape index: {}]
  %s2 = inlined_call_operand.vmem [shape: f32[1,10], index: 2, kind: input, shape index: {}]
  %s3 = inlined_call_operand.hbm [shape: f32[2,10], index: 3, kind: output, shape index: {}]
  %s4 = sld [smem:[#allocation0]]
  $region22: #{my_resnet_forward.21} parent=0
    _
  %s6 = ssub.s32 1, %s4
  %s7 = scalar_select 0, %s6, %s4
  $region1: #{my_resnet_forward.21} parent=0
    #allocation2 [shape = 'u8[1024]{0}', space=vmem, size = 0x400, scoped, tag = 'output window, operand 0, single buffered']
    #allocation3 [shape = 's32[1]{0}', space=sflag, size = 0x4, scoped, tag = 'scoped memory for my_resnet_forward.21']
    %8 = vsyncpa [#allocation3], 0
    // Predicated region
    $region2: #{my_resnet_forward.21} parent=1 // pred_check
      _
    $region3: #{my_resnet_forward.21} parent=1 // pred_check_branch
      %10 = sbr.rel (0) target = $region5
    $region4: #{my_resnet_forward.21} parent=1 // pred_region
      _
    $region5: #{my_resnet_forward.21} parent=1 // pred_fallthru
      _
    // Predicated region
    $region6: #{my_resnet_forward.21} parent=1 // pred_check
      _
    $region7: #{my_resnet_forward.21} parent=1 // pred_check_branch
      %12 = sbr.rel (0) target = $region9
    $region8: #{my_resnet_forward.21} parent=1 // pred_region
      _
    $region9: #{my_resnet_forward.21} parent=1 // pred_fallthru
      _
    // Predicated region
    $region10: #{my_resnet_forward.21} parent=1 // pred_check
      _
    $region11: #{my_resnet_forward.21} parent=1 // pred_check_branch
      %14 = sbr.rel (0) target = $region13
    $region12: #{my_resnet_forward.21} parent=1 // pred_region
      _
    $region13: #{my_resnet_forward.21} parent=1 // pred_fallthru
      _
    %v15 = vld [vmem:[%s0] sm:$0xff]
    %v16 = vld [vmem:[%s0 + $0x8] sm:$0xff]
    %v17 = vld [vmem:[%s0 + $0x10] sm:$0xff]
    %v18 = vld [vmem:[%s0 + $0x18] sm:$0xff]
    %vm19 = vcmask 523264
    %v20 = vsel %vm19, %v15, 0.0
    %v21 = vsel %vm19, %v16, 0.0
    %v22 = vadd.f32 %v20, %v21
    %v23 = vrot.slane %v22, 4
    %v24 = vadd.f32 %v22, %v23
    %v25 = vrot.slane %v24, 2
    %v26 = vadd.f32 %v24, %v25
    %v27 = vrot.slane %v26, 1
    %v28 = vadd.f32 %v26, %v27
    %v29 = vsel %vm19, %v17, 0.0
    %v30 = vsel %vm19, %v18, 0.0
    %v31 = vadd.f32 %v29, %v30
    %v32 = vrot.slane %v31, 4
    %v33 = vadd.f32 %v31, %v32
    %v34 = vrot.slane %v33, 2
    %v35 = vadd.f32 %v33, %v34
    %v36 = vrot.slane %v35, 1
    %v37 = vadd.f32 %v35, %v36
    %v38 = vrcp.pop 16.0
    %v39 = vmul.f32 %v28, %v38
    %v40 = vmul.f32 %v37, %v38
    %v41 = vld [vmem:[%s1] sm:$0xff]
    %v42 = vld [vmem:[%s1 + $0x8] sm:$0xff]
    %v43 = vld [vmem:[%s1 + $0x10] sm:$0xff]
    %v44 = vld [vmem:[%s1 + $0x18] sm:$0xff]
    %v45 = vld [vmem:[%s1 + $0x20] sm:$0xff]
    %v46 = vld [vmem:[%s1 + $0x28] sm:$0xff]
    %v47 = vld [vmem:[%s1 + $0x30] sm:$0xff]
    %v48 = vld [vmem:[%s1 + $0x38] sm:$0xff]
    %v49 = vld [vmem:[%s2] sm:$0x1]
    %v51 = vlaneseq
    %v52 = vshrl.u32 %v51, 7
    %v53 = vsub.s32 0, %v52
    %v54 = vrot.slane %v49, %v53
    %vm58 = vcmask 1041409
    %v59 = vsel %vm58, %v40, %v39
    %v60 = vsel %vm19, %v59, 0
    %62 = vmatprep.subr.mxu0 0.0
    %63 = vmatpush1.msra.mxu0 0.0
    %64 = vmatprep.subr.mxu0 0.0
    %65 = vmatpush1.msra.mxu0 0.0
    %66 = vmatprep.subr.mxu0 0.0
    %67 = vmatpush1.msra.mxu0 0.0
    %68 = vmatprep.subr.mxu0 0.0
    %69 = vmatpush1.msra.mxu0 0.0
    %70 = vmatprep.subr.mxu0 0.0
    %71 = vmatpush1.msra.mxu0 0.0
    %72 = vmatprep.subr.mxu0 0.0
    %73 = vmatpush1.msra.mxu0 0.0
    %74 = vmatprep.subr.mxu0 0.0
    %75 = vmatpush1.msra.mxu0 0.0
    %76 = vmatprep.subr.mxu0 0.0
    %77 = vmatpush1.msra.mxu0 0.0
    %78 = vmatprep.subr.mxu0 0.0
    %79 = vmatpush1.msra.mxu0 %v48
    %80 = vmatprep.subr.mxu0 0.0
    %81 = vmatpush1.msra.mxu0 %v47
    %82 = vmatprep.subr.mxu0 0.0
    %83 = vmatpush1.msra.mxu0 %v46
    %84 = vmatprep.subr.mxu0 0.0
    %85 = vmatpush1.msra.mxu0 %v45
    %86 = vmatprep.subr.mxu0 0.0
    %87 = vmatpush1.msra.mxu0 %v44
    %88 = vmatprep.subr.mxu0 0.0
    %89 = vmatpush1.msra.mxu0 %v43
    %90 = vmatprep.subr.mxu0 0.0
    %91 = vmatpush1.msra.mxu0 %v42
    %92 = vmatprep.subr.mxu0 0.0
    %93 = vmatpush1.msra.mxu0 %v41
    %94 = vmatprep.subr.mxu0 0.0
    %95 = vmatpush2.msra.mxu0 0.0
    %96 = vmatprep.subr.mxu0 0.0
    %97 = vmatpush2.msra.mxu0 0.0
    %98 = vmatprep.subr.mxu0 0.0
    %99 = vmatpush2.msra.mxu0 0.0
    %100 = vmatprep.subr.mxu0 0.0
    %101 = vmatpush2.msra.mxu0 0.0
    %102 = vmatprep.subr.mxu0 0.0
    %103 = vmatpush2.msra.mxu0 0.0
    %104 = vmatprep.subr.mxu0 0.0
    %105 = vmatpush2.msra.mxu0 0.0
    %106 = vmatprep.subr.mxu0 0.0
    %107 = vmatpush2.msra.mxu0 0.0
    %108 = vmatprep.subr.mxu0 0.0
    %109 = vmatpush2.msra.mxu0 0.0
    %110 = vmatprep.subr.mxu0 0.0
    %111 = vmatpush2.msra.mxu0 0.0
    %112 = vmatprep.subr.mxu0 0.0
    %113 = vmatpush2.msra.mxu0 0.0
    %114 = vmatprep.subr.mxu0 0.0
    %115 = vmatpush2.msra.mxu0 0.0
    %116 = vmatprep.subr.mxu0 0.0
    %117 = vmatpush2.msra.mxu0 0.0
    %118 = vmatprep.subr.mxu0 0.0
    %119 = vmatpush2.msra.mxu0 0.0
    %120 = vmatprep.subr.mxu0 0.0
    %121 = vmatpush2.msra.mxu0 0.0
    %122 = vmatprep.subr.mxu0 0.0
    %123 = vmatpush2.msra.mxu0 0.0
    %124 = vmatprep.subr.mxu0 0.0
    %125 = vmatpush2.msra.mxu0 0.0
    %126 = vmatprep.mubr.f32.mxu0 0.0
    %127 = vmatmul.mubr.f32.gmra.mxu0 %v60
    %v128 = vpop.f32.mrf.mxu0
    %v129 = vadd.f32 %v54, %v128
    %v130 = vpop.f32.mrf.mxu0
    %131 = vdwg.mxu0
    %vm132 = vcmask 74752
    %133 = vst.msk [vmem:[#allocation2] sm:$0x3] %vm132, %v129
    // Predicated region
    $region14: #{my_resnet_forward.21} parent=1 // pred_check
      _
    $region15: #{my_resnet_forward.21} parent=1 // pred_check_branch
      %135 = sbr.rel (0) target = $region17
    $region16: #{my_resnet_forward.21} parent=1 // pred_region
      %s137 = ssub.s32 32, 32
      %138 = vsyncadd [#allocation3], %s137
      %s140 = sshll.u32 [#allocation2], 4
      %s141 = int_to_ptr.vmem [resolvable:$true] %s140
      %143 = dma.vmem_to_hbm [thread:$0]  %s141, 32, %s3, [#allocation3]
    $region17: #{my_resnet_forward.21} parent=1 // pred_fallthru
      _
    // Predicated region
    $region18: #{my_resnet_forward.21} parent=1 // pred_check
      _
    $region19: #{my_resnet_forward.21} parent=1 // pred_check_branch
      %145 = sbr.rel (0) target = $region21
    $region20: #{my_resnet_forward.21} parent=1 // pred_region
      %146 = dma.done [#allocation3], 32
    $region21: #{my_resnet_forward.21} parent=1 // pred_fallthru
      _
    %147 = vsyncpa [#allocation3], 1

</llo_original>
